<compile_context>
chip_gen: v7x
topology: tpu7x:2x2x1
jax: 0.10.0
libtpu: 0.0.40
codegen_flags: <defaults>
</compile_context>

<pallas_src>
import math
import functools

import jax
import jax.numpy as jnp
from jax.experimental import pallas as pl
from jax.experimental.pallas import tpu as pltpu


# ---------------------------------------------------------------------------
# Kernel
# ---------------------------------------------------------------------------
def encoder_layer_kernel(x_ref, mask_ref,
                         wqkv_ref, bqkv_ref, wo_ref, bo_ref,
                         a1_ref, g1_ref, a2_ref, g2_ref,
                         w1_ref, b1_ref, w2_ref, b2_ref,
                         out_ref, *scratch,
                         heads, eps, ff_chunk, use_slab, approx_recip):
    Bb, S, D = x_ref.shape
    R = Bb * S
    dk = D // heads
    d_ff = w1_ref.shape[1]
    f32 = jnp.float32
    bf16 = jnp.bfloat16

    def layernorm(z, alpha, bias):
        # torch Norm: alpha * (x - mean) / (std + eps) + bias, std unbiased.
        mean = jnp.mean(z, axis=-1, keepdims=True)
        zc = z - mean
        var = jnp.sum(zc * zc, axis=-1, keepdims=True) / (D - 1)
        denom = jnp.sqrt(var) + eps
        if approx_recip:
            return alpha * zc * pl.reciprocal(denom, approx=True) + bias
        return alpha * zc / denom + bias

    x = x_ref[...].astype(f32).reshape(R, D)

    # Boolean keep-mask hoisted out of the head loop; exact integer test on
    # the int8 mask matches torch masked_fill(mask == 0, -1e9).
    keep = mask_ref[...] != 0                                    # (Bb, S, S)

    a1 = a1_ref[0]
    g1 = g1_ref[0]
    a2 = a2_ref[0]
    g2 = g2_ref[0]

    # ----- sub-layer 1: pre-norm multi-head self-attention -----
    x2 = layernorm(x, a1, g1)

    # Fused QKV projection: one MXU pass (bf16 operands, f32 accumulation).
    qkv = jnp.dot(x2.astype(bf16), wqkv_ref[...],
                  preferred_element_type=f32) + bqkv_ref[0]      # (R, 3D) f32
    q = qkv[:, :D].astype(bf16)
    k = qkv[:, D:2 * D].astype(bf16)
    v = qkv[:, 2 * D:].astype(bf16)

    scale = 1.0 / math.sqrt(dk)
    concat_ref = scratch[0] if use_slab else None
    attn = None if use_slab else jnp.zeros((R, D), f32)

    for h in range(heads):          # static loop: heads is compile-time const
        sl = slice(h * dk, (h + 1) * dk)
        qh = q[:, sl].reshape(Bb, S, dk)
        kh = k[:, sl].reshape(Bb, S, dk)
        vh = v[:, sl].reshape(Bb, S, dk)
        # batched over Bb inside the head — scores / softmax stay f32
        s = jnp.einsum("bqd,bkd->bqk", qh, kh,
                       preferred_element_type=f32) * scale
        s = jnp.where(keep, s, -1e9)          # masked_fill, exactly like torch
        s = s - jnp.max(s, axis=-1, keepdims=True)
        p = jnp.exp(s)
        psum = jnp.sum(p, axis=-1, keepdims=True)
        if approx_recip:
            p = p * pl.reciprocal(psum, approx=True)
        else:
            p = p / psum
        oh = jnp.einsum("bqk,bkd->bqd", p.astype(bf16), vh,
                        preferred_element_type=f32).reshape(R, dk)
        if use_slab:
            # lane-dense bf16 slab write (dk % 128 == 0): no masked vst
            concat_ref[:, sl] = oh.astype(bf16)
        else:
            # dk < 128: avoid masked partial-lane stores entirely by
            # accumulating the output projection per head (block matmul).
            attn = attn + jnp.dot(oh.astype(bf16), wo_ref[sl, :],
                                  preferred_element_type=f32)

    if use_slab:
        attn = jnp.dot(concat_ref[...], wo_ref[...],
                       preferred_element_type=f32)
    x = x + (attn + bo_ref[0])      # dropout_1 == identity (inference)

    # ----- sub-layer 2: pre-norm feed-forward (d_ff chunked) -----
    x2 = layernorm(x, a2, g2).astype(bf16)
    ff = jnp.zeros((R, D), f32)
    for c0 in range(0, d_ff, ff_chunk):
        csl = slice(c0, c0 + ff_chunk)
        h1 = jnp.dot(x2, w1_ref[:, csl],
                     preferred_element_type=f32) + b1_ref[0, csl]
        h1 = jnp.maximum(h1, 0.0).astype(bf16)    # cast right after relu
        ff = ff + jnp.dot(h1, w2_ref[csl, :], preferred_element_type=f32)
    x = x + (ff + b2_ref[0])        # dropout_2 == identity (inference)

    out_ref[...] = x.reshape(Bb, S, D).astype(out_ref.dtype)


# ---------------------------------------------------------------------------
# Wrapper helpers
# ---------------------------------------------------------------------------
def prepare_params(params):
    """One-time weight packing / casting (hoist out of the per-call path)."""
    bf16 = jnp.bfloat16
    f32 = jnp.float32
    return {
        "wqkv": jnp.concatenate([params["wq"], params["wk"], params["wv"]],
                                axis=1).astype(bf16),            # (D, 3D)
        "bqkv": jnp.concatenate([params["bq"], params["bk"], params["bv"]],
                                axis=1).astype(f32),             # (1, 3D)
        "wo": params["wo"].astype(bf16),
        "bo": params["bo"].astype(f32),
        "alpha1": params["alpha1"].astype(f32),
        "bias1": params["bias1"].astype(f32),
        "alpha2": params["alpha2"].astype(f32),
        "bias2": params["bias2"].astype(f32),
        "w1": params["w1"].astype(bf16),
        "b1": params["b1"].astype(f32),
        "w2": params["w2"].astype(bf16),
        "b2": params["b2"].astype(f32),
    }


def _pick_block_b(B, S, target_rows=1024):
    """Pack Bb batches per grid step so Bb*S rows feed the MXU; prefer an even
    number of grid steps (v7x has 2 TensorCores) when that still leaves >=128
    rows per step."""
    divs = [d for d in range(1, B + 1) if B % d == 0]
    cands = [d for d in divs if d * S <= target_rows] or [1]
    best = max(cands)
    if (B // best) % 2 != 0:
        even = [d for d in cands if (B // d) % 2 == 0 and d * S >= 128]
        if even:
            best = max(even)
    return best


def _vmem_cap_bytes():
    """Per-generation scoped-VMEM cap: ~7/8 of physical, never above 100 MiB
    (v5e/v6e have 128 MiB, v7x has 64 MiB per TensorCore)."""
    try:
        phys = int(pltpu.get_tpu_info().vmem_capacity_bytes)
    except Exception:
        phys = 64 * 2 ** 20        # conservative default (v7x per-TC VMEM)
    return min(100 * 2 ** 20, (phys * 7) // 8)


def encoder_layer(x, mask, params, *, heads, eps=1e-6, block_b=None,
                  approx_recip=False, target_rows=1024):
    """x: (B, S, D) f32; mask: (B, S, S), nonzero = attend (any dtype, int8
    preferred); params: raw (make_params) or prepared (prepare_params)."""
    B, S, D = x.shape
    assert D % heads == 0, "d_model must be divisible by heads"
    if "wqkv" not in params:
        params = prepare_params(params)
    d_ff = params["w1"].shape[1]

    mask_i8 = mask if mask.dtype == jnp.int8 else (mask != 0).astype(jnp.int8)

    if block_b is None:
        block_b = _pick_block_b(B, S, target_rows)
    assert B % block_b == 0
    grid_b = B // block_b
    rows = block_b * S

    dk = D // heads
    use_slab = (dk % 128 == 0)      # lane-dense slab writes only when aligned

    # In-kernel d_ff chunking keeps the live (rows, d_ff) intermediate small.
    if d_ff <= 1024:
        ff_chunk = d_ff
    else:
        ff_chunk = next((c for c in (1024, 768, 512, 256) if d_ff % c == 0),
                        d_ff)

    # Advisory cost estimate for XLA's scheduler.
    flops = (2 * B * S * D * (3 * D)        # fused QKV
             + 2 * B * S * D * D            # output projection
             + 4 * B * S * D * d_ff         # FFN (two matmuls)
             + 4 * B * heads * S * S * dk)  # QK^T and PV
    transc = B * heads * S * S + 4 * B * S
    weight_bytes = 2 * (3 * D * D + D * D + 2 * D * d_ff)         # bf16
    bias_bytes = 4 * (3 * D + D + 4 * D + d_ff + D)               # f32
    bytes_accessed = 4 * B * S * D * 2 + B * S * S + weight_bytes + bias_bytes
    cost = pl.CostEstimate(flops=int(flops), transcendentals=int(transc),
                           bytes_accessed=int(bytes_accessed))

    # VMEM budget: single-buffered weights + double-buffered activation
    # blocks + slab + live intermediates, with 2x headroom, clamped to the
    # per-generation cap.
    io_bytes = 2 * (2 * rows * D * 4 + block_b * S * S)
    slab_bytes = rows * D * 2 if use_slab else 0
    live_bytes = 4 * rows * (3 * D + 4 * D + ff_chunk) + 4 * block_b * S * S
    resident = weight_bytes + bias_bytes + io_bytes + slab_bytes + live_bytes
    vmem_limit = int(min(_vmem_cap_bytes(), max(32 * 2 ** 20, 2 * resident)))

    kernel = functools.partial(encoder_layer_kernel, heads=heads, eps=eps,
                               ff_chunk=ff_chunk, use_slab=use_slab,
                               approx_recip=approx_recip)

    operands = (x, mask_i8, params["wqkv"], params["bqkv"],
                params["wo"], params["bo"],
                params["alpha1"], params["bias1"],
                params["alpha2"], params["bias2"],
                params["w1"], params["b1"], params["w2"], params["b2"])

    def _make_call(single_buffer_consts):
        def const_spec(shape):
            nd = len(shape)
            if single_buffer_consts:
                # Constant index_map -> the second pipeline buffer is waste.
                return pl.BlockSpec(shape, lambda b, _nd=nd: (0,) * _nd,
                                    pipeline_mode=pl.Buffered(1))
            return pl.BlockSpec(shape, lambda b, _nd=nd: (0,) * _nd)

        in_specs = [
            pl.BlockSpec((block_b, S, D), lambda b: (b, 0, 0)),   # x
            pl.BlockSpec((block_b, S, S), lambda b: (b, 0, 0)),   # mask (int8)
            const_spec((D, 3 * D)), const_spec((1, 3 * D)),       # wqkv, bqkv
            const_spec((D, D)), const_spec((1, D)),               # wo, bo
            const_spec((1, D)), const_spec((1, D)),               # alpha1, bias1
            const_spec((1, D)), const_spec((1, D)),               # alpha2, bias2
            const_spec((D, d_ff)), const_spec((1, d_ff)),         # w1, b1
            const_spec((d_ff, D)), const_spec((1, D)),            # w2, b2
        ]
        out_specs = pl.BlockSpec((block_b, S, D), lambda b: (b, 0, 0))
        scratch_shapes = ([pltpu.VMEM((rows, D), jnp.bfloat16)]
                          if use_slab else [])

        return pl.pallas_call(
            kernel,
            out_shape=jax.ShapeDtypeStruct((B, S, D), jnp.float32),
            grid_spec=pltpu.PrefetchScalarGridSpec(
                num_scalar_prefetch=0,
                grid=(grid_b,),
                in_specs=in_specs,
                out_specs=out_specs,
                scratch_shapes=scratch_shapes),
            compiler_params=pltpu.CompilerParams(
                dimension_semantics=("parallel",),
                vmem_limit_bytes=vmem_limit),
            cost_estimate=cost,
        )

    try:
        return _make_call(True)(*operands)
    except Exception:
        # Fallback if this jax version rejects pipeline_mode=pl.Buffered(1).
        return _make_call(False)(*operands)


# ---------------------------------------------------------------------------
# References
# ---------------------------------------------------------------------------
def encoder_layer_reference(x, mask, params, *, heads, eps=1e-6):
    """Pure-JAX reference mirroring the kernel's numerics exactly: bf16
    matmul operands, f32 accumulation, exact f32 divisions, torch-style
    masked_fill(-1e9)."""
    B, S, D = x.shape
    dk = D // heads
    bf16 = jnp.bfloat16
    f32 = jnp.float32

    def mm(a, w):
        return jnp.dot(a.astype(bf16), w.astype(bf16),
                       preferred_element_type=f32)

    def ln(z, a, g):
        mean = jnp.mean(z, axis=-1, keepdims=True)
        zc = z - mean
        var = jnp.sum(zc * zc, axis=-1, keepdims=True) / (D - 1)
        return a * zc / (jnp.sqrt(var) + eps) + g

    x = x.astype(f32)
    x2 = ln(x, params["alpha1"][0], params["bias1"][0])
    q = mm(x2, params["wq"]) + params["bq"][0]
    k = mm(x2, params["wk"]) + params["bk"][0]
    v = mm(x2, params["wv"]) + params["bv"][0]
    q = q.reshape(B, S, heads, dk).transpose(0, 2, 1, 3).astype(bf16)
    k = k.reshape(B, S, heads, dk).transpose(0, 2, 1, 3).astype(bf16)
    v = v.reshape(B, S, heads, dk).transpose(0, 2, 1, 3).astype(bf16)
    scores = jnp.einsum("bhqd,bhkd->bhqk", q, k,
                        preferred_element_type=f32) / math.sqrt(dk)
    scores = jnp.where(mask[:, None, :, :] == 0, -1e9, scores)
    scores = scores - jnp.max(scores, axis=-1, keepdims=True)
    p = jnp.exp(scores)
    p = p / jnp.sum(p, axis=-1, keepdims=True)
    o = jnp.einsum("bhqk,bhkd->bhqd", p.astype(bf16), v,
                   preferred_element_type=f32)
    o = o.transpose(0, 2, 1, 3).reshape(B, S, D)
    x = x + (mm(o, params["wo"]) + params["bo"][0])
    x2 = ln(x, params["alpha2"][0], params["bias2"][0])
    h = jnp.maximum(mm(x2, params["w1"]) + params["b1"][0], 0.0)
    x = x + (mm(h, params["w2"]) + params["b2"][0])
    return x


def encoder_layer_reference_f32(x, mask, params, *, heads, eps=1e-6):
    """All-f32, HIGHEST-precision reference — exactly the PyTorch forward."""
    B, S, D = x.shape
    dk = D // heads
    hp = jax.lax.Precision.HIGHEST

    def mm(a, w):
        return jnp.dot(a, w, precision=hp)

    def ln(z, a, g):
        mean = jnp.mean(z, axis=-1, keepdims=True)
        zc = z - mean
        var = jnp.sum(zc * zc, axis=-1, keepdims=True) / (D - 1)
        return a * zc / (jnp.sqrt(var) + eps) + g

    x = x.astype(jnp.float32)
    x2 = ln(x, params["alpha1"][0], params["bias1"][0])
    q = (mm(x2, params["wq"]) + params["bq"][0]).reshape(B, S, heads, dk)
    k = (mm(x2, params["wk"]) + params["bk"][0]).reshape(B, S, heads, dk)
    v = (mm(x2, params["wv"]) + params["bv"][0]).reshape(B, S, heads, dk)
    q, k, v = (t.transpose(0, 2, 1, 3) for t in (q, k, v))
    scores = jnp.einsum("bhqd,bhkd->bhqk", q, k,
                        precision=hp) / math.sqrt(dk)
    scores = jnp.where(mask[:, None, :, :] == 0, -1e9, scores)
    scores = jax.nn.softmax(scores, axis=-1)
    o = jnp.einsum("bhqk,bhkd->bhqd", scores, v, precision=hp)
    o = o.transpose(0, 2, 1, 3).reshape(B, S, D)
    x = x + (mm(o, params["wo"]) + params["bo"][0])
    x2 = ln(x, params["alpha2"][0], params["bias2"][0])
    h = jax.nn.relu(mm(x2, params["w1"]) + params["b1"][0])
    x = x + (mm(h, params["w2"]) + params["b2"][0])
    return x


def make_params(key, d_model, d_ff):
    keys = jax.random.split(key, 12)
    s = 0.05
    return {
        "wq": s * jax.random.normal(keys[0], (d_model, d_model), jnp.float32),
        "bq": s * jax.random.normal(keys[1], (1, d_model), jnp.float32),
        "wk": s * jax.random.normal(keys[2], (d_model, d_model), jnp.float32),
        "bk": s * jax.random.normal(keys[3], (1, d_model), jnp.float32),
        "wv": s * jax.random.normal(keys[4], (d_model, d_model), jnp.float32),
        "bv": s * jax.random.normal(keys[5], (1, d_model), jnp.float32),
        "wo": s * jax.random.normal(keys[6], (d_model, d_model), jnp.float32),
        "bo": s * jax.random.normal(keys[7], (1, d_model), jnp.float32),
        "alpha1": jnp.ones((1, d_model), jnp.float32),
        "bias1": jnp.zeros((1, d_model), jnp.float32),
        "alpha2": jnp.ones((1, d_model), jnp.float32),
        "bias2": jnp.zeros((1, d_model), jnp.float32),
        "w1": s * jax.random.normal(keys[8], (d_model, d_ff), jnp.float32),
        "b1": s * jax.random.normal(keys[9], (1, d_ff), jnp.float32),
        "w2": s * jax.random.normal(keys[10], (d_ff, d_model), jnp.float32),
        "b2": s * jax.random.normal(keys[11], (1, d_model), jnp.float32),
    }


if __name__ == "__main__":
    B, S, D = 2, 8, 32
    HEADS = 4
    D_FF = 1024  # matches FeedForward default d_ff=1024

    key = jax.random.PRNGKey(0)
    kx, kp = jax.random.split(key)
    x = jax.random.normal(kx, (B, S, D), jnp.float32)
    # causal mask (every query row attends to at least one key)
    mask = jnp.tril(jnp.ones((S, S), jnp.float32))[None].repeat(B, axis=0)
    params = make_params(kp, D, D_FF)

    # One-time preprocessing hoisted out of the per-call path.
    prepared = prepare_params(params)
    mask_i8 = (mask != 0).astype(jnp.int8)

    out = encoder_layer(x, mask_i8, prepared, heads=HEADS)
    out = jax.block_until_ready(out)
    assert out.shape == (B, S, D)
    assert bool(jnp.all(jnp.isfinite(out)))

    # Tight check against a reference that mirrors the kernel's mixed
    # precision (bf16 MXU operands, f32 accumulation, exact divisions).
    ref_mixed = encoder_layer_reference(x, mask, params, heads=HEADS)
    diff_mixed = float(jnp.max(jnp.abs(out - ref_mixed)))
    assert jnp.allclose(out, ref_mixed, atol=2e-3, rtol=2e-3), (
        f"mixed-precision reference max abs diff {diff_mixed}")

    # Coarse drift bound against the exact all-f32 PyTorch math (bounds the
    # bf16-operand policy's deviation from the original module).
    ref_f32 = encoder_layer_reference_f32(x, mask, params, heads=HEADS)
    diff_f32 = float(jnp.max(jnp.abs(out - ref_f32)))
    assert diff_f32 < 1e-1, f"f32 torch-reference max abs diff {diff_f32}"

    print("KERNEL_OK")
</pallas_src>

<mosaic_0001>
module attributes {stable_mosaic.version = 11 : i64} {
  func.func @encoder_layer_kernel(%arg0: i32, %arg1: memref<2x8x32xf32, #tpu.memory_space<vmem>>, %arg2: memref<2x8x8xi8, #tpu.memory_space<vmem>>, %arg3: memref<32x96xbf16, #tpu.memory_space<vmem>>, %arg4: memref<1x96xf32, #tpu.memory_space<vmem>>, %arg5: memref<32x32xbf16, #tpu.memory_space<vmem>>, %arg6: memref<1x32xf32, #tpu.memory_space<vmem>>, %arg7: memref<1x32xf32, #tpu.memory_space<vmem>>, %arg8: memref<1x32xf32, #tpu.memory_space<vmem>>, %arg9: memref<1x32xf32, #tpu.memory_space<vmem>>, %arg10: memref<1x32xf32, #tpu.memory_space<vmem>>, %arg11: memref<32x1024xbf16, #tpu.memory_space<vmem>>, %arg12: memref<1x1024xf32, #tpu.memory_space<vmem>>, %arg13: memref<1024x32xbf16, #tpu.memory_space<vmem>>, %arg14: memref<1x32xf32, #tpu.memory_space<vmem>>, %arg15: memref<2x8x32xf32, #tpu.memory_space<vmem>>) attributes {dimension_semantics = [#tpu.dimension_semantics<parallel>], iteration_bounds = array<i64: 1>, scalar_prefetch = 0 : i64, scratch_operands = 0 : i64, tpu.core_type = #tpu.core_type<tc>, window_params = [{transform_indices = @transform_0, window_bounds = array<i64: 2, 8, 32>}, {transform_indices = @transform_1, window_bounds = array<i64: 2, 8, 8>}, {pipeline_mode = #tpu.pipeline_mode<synchronous>, transform_indices = @transform_2, window_bounds = array<i64: 32, 96>}, {pipeline_mode = #tpu.pipeline_mode<synchronous>, transform_indices = @transform_3, window_bounds = array<i64: 1, 96>}, {pipeline_mode = #tpu.pipeline_mode<synchronous>, transform_indices = @transform_4, window_bounds = array<i64: 32, 32>}, {pipeline_mode = #tpu.pipeline_mode<synchronous>, transform_indices = @transform_5, window_bounds = array<i64: 1, 32>}, {pipeline_mode = #tpu.pipeline_mode<synchronous>, transform_indices = @transform_6, window_bounds = array<i64: 1, 32>}, {pipeline_mode = #tpu.pipeline_mode<synchronous>, transform_indices = @transform_7, window_bounds = array<i64: 1, 32>}, {pipeline_mode = #tpu.pipeline_mode<synchronous>, transform_indices = @transform_8, window_bounds = array<i64: 1, 32>}, {pipeline_mode = #tpu.pipeline_mode<synchronous>, transform_indices = @transform_9, window_bounds = array<i64: 1, 32>}, {pipeline_mode = #tpu.pipeline_mode<synchronous>, transform_indices = @transform_10, window_bounds = array<i64: 32, 1024>}, {pipeline_mode = #tpu.pipeline_mode<synchronous>, transform_indices = @transform_11, window_bounds = array<i64: 1, 1024>}, {pipeline_mode = #tpu.pipeline_mode<synchronous>, transform_indices = @transform_12, window_bounds = array<i64: 1024, 32>}, {pipeline_mode = #tpu.pipeline_mode<synchronous>, transform_indices = @transform_13, window_bounds = array<i64: 1, 32>}, {transform_indices = @transform_14, window_bounds = array<i64: 2, 8, 32>}]} {
    %c0 = arith.constant 0 : index
    %c0_0 = arith.constant 0 : index
    %c0_1 = arith.constant 0 : index
    %0 = vector.load %arg1[%c0, %c0_0, %c0_1] : memref<2x8x32xf32, #tpu.memory_space<vmem>>, vector<2x8x32xf32>
    %1 = vector.shape_cast %0 : vector<2x8x32xf32> to vector<16x32xf32>
    %c0_2 = arith.constant 0 : index
    %c0_3 = arith.constant 0 : index
    %c0_4 = arith.constant 0 : index
    %2 = vector.load %arg2[%c0_2, %c0_3, %c0_4] : memref<2x8x8xi8, #tpu.memory_space<vmem>>, vector<2x8x8xi8>
    %c0_i8 = arith.constant 0 : i8
    %3 = vector.broadcast %c0_i8 : i8 to vector<2x8x8xi8>
    %4 = arith.cmpi ne, %2, %3 : vector<2x8x8xi8>
    %c0_5 = arith.constant 0 : index
    %c0_6 = arith.constant 0 : index
    %5 = vector.load %arg7[%c0_5, %c0_6] : memref<1x32xf32, #tpu.memory_space<vmem>>, vector<1x32xf32>
    %6 = vector.shape_cast %5 : vector<1x32xf32> to vector<32xf32>
    %c0_7 = arith.constant 0 : index
    %c0_8 = arith.constant 0 : index
    %7 = vector.load %arg8[%c0_7, %c0_8] : memref<1x32xf32, #tpu.memory_space<vmem>>, vector<1x32xf32>
    %8 = vector.shape_cast %7 : vector<1x32xf32> to vector<32xf32>
    %c0_9 = arith.constant 0 : index
    %c0_10 = arith.constant 0 : index
    %9 = vector.load %arg9[%c0_9, %c0_10] : memref<1x32xf32, #tpu.memory_space<vmem>>, vector<1x32xf32>
    %10 = vector.shape_cast %9 : vector<1x32xf32> to vector<32xf32>
    %c0_11 = arith.constant 0 : index
    %c0_12 = arith.constant 0 : index
    %11 = vector.load %arg10[%c0_11, %c0_12] : memref<1x32xf32, #tpu.memory_space<vmem>>, vector<1x32xf32>
    %12 = vector.shape_cast %11 : vector<1x32xf32> to vector<32xf32>
    %cst = arith.constant dense<0.000000e+00> : vector<16xf32>
    %13 = vector.multi_reduction <add>, %1, %cst [1] : vector<16x32xf32> to vector<16xf32>
    %14 = vector.shape_cast %13 : vector<16xf32> to vector<16x1xf32>
    %cst_13 = arith.constant 3.200000e+01 : f32
    %15 = vector.broadcast %cst_13 : f32 to vector<16x1xf32>
    %16 = arith.divf %14, %15 : vector<16x1xf32>
    %17 = vector.broadcast %16 : vector<16x1xf32> to vector<16x32xf32>
    %18 = arith.subf %1, %17 : vector<16x32xf32>
    %19 = arith.mulf %18, %18 : vector<16x32xf32>
    %cst_14 = arith.constant dense<0.000000e+00> : vector<16xf32>
    %20 = vector.multi_reduction <add>, %19, %cst_14 [1] : vector<16x32xf32> to vector<16xf32>
    %21 = vector.shape_cast %20 : vector<16xf32> to vector<16x1xf32>
    %cst_15 = arith.constant 3.100000e+01 : f32
    %22 = vector.broadcast %cst_15 : f32 to vector<16x1xf32>
    %23 = arith.divf %21, %22 : vector<16x1xf32>
    %24 = math.sqrt %23 : vector<16x1xf32>
    %cst_16 = arith.constant 9.99999997E-7 : f32
    %25 = vector.broadcast %cst_16 : f32 to vector<16x1xf32>
    %26 = arith.addf %24, %25 : vector<16x1xf32>
    %27 = vector.shape_cast %6 : vector<32xf32> to vector<1x32xf32>
    %28 = vector.broadcast %27 : vector<1x32xf32> to vector<16x32xf32>
    %29 = arith.mulf %28, %18 : vector<16x32xf32>
    %30 = vector.broadcast %26 : vector<16x1xf32> to vector<16x32xf32>
    %31 = arith.divf %29, %30 : vector<16x32xf32>
    %32 = vector.shape_cast %8 : vector<32xf32> to vector<1x32xf32>
    %33 = vector.broadcast %32 : vector<1x32xf32> to vector<16x32xf32>
    %34 = arith.addf %31, %33 : vector<16x32xf32>
    %35 = arith.truncf %34 : vector<16x32xf32> to vector<16x32xbf16>
    %c0_17 = arith.constant 0 : index
    %c0_18 = arith.constant 0 : index
    %36 = vector.load %arg3[%c0_17, %c0_18] : memref<32x96xbf16, #tpu.memory_space<vmem>>, vector<32x96xbf16>
    %cst_19 = arith.constant dense<0.000000e+00> : vector<16x96xf32>
    %37 = tpu.matmul %35, %36, %cst_19 {dimension_numbers = #tpu.dot_dimension_numbers<[1], [0], [0], [1], [0, 0, 1, 1], [], []>} : vector<16x32xbf16>, vector<32x96xbf16>, vector<16x96xf32> -> vector<16x96xf32>
    %c0_20 = arith.constant 0 : index
    %c0_21 = arith.constant 0 : index
    %38 = vector.load %arg4[%c0_20, %c0_21] : memref<1x96xf32, #tpu.memory_space<vmem>>, vector<1x96xf32>
    %39 = vector.shape_cast %38 : vector<1x96xf32> to vector<96xf32>
    %40 = vector.shape_cast %39 : vector<96xf32> to vector<1x96xf32>
    %41 = vector.broadcast %40 : vector<1x96xf32> to vector<16x96xf32>
    %42 = arith.addf %37, %41 : vector<16x96xf32>
    %43 = vector.extract_strided_slice %42 {offsets = [0, 0], sizes = [16, 32], strides = [1, 1]} : vector<16x96xf32> to vector<16x32xf32>
    %44 = arith.truncf %43 : vector<16x32xf32> to vector<16x32xbf16>
    %45 = vector.extract_strided_slice %42 {offsets = [0, 32], sizes = [16, 32], strides = [1, 1]} : vector<16x96xf32> to vector<16x32xf32>
    %46 = arith.truncf %45 : vector<16x32xf32> to vector<16x32xbf16>
    %47 = vector.extract_strided_slice %42 {offsets = [0, 64], sizes = [16, 32], strides = [1, 1]} : vector<16x96xf32> to vector<16x32xf32>
    %48 = arith.truncf %47 : vector<16x32xf32> to vector<16x32xbf16>
    %cst_22 = arith.constant 0.000000e+00 : f32
    %49 = vector.broadcast %cst_22 : f32 to vector<16x32xf32>
    %50 = vector.extract_strided_slice %44 {offsets = [0, 0], sizes = [16, 8], strides = [1, 1]} : vector<16x32xbf16> to vector<16x8xbf16>
    %51 = vector.shape_cast %50 : vector<16x8xbf16> to vector<2x8x8xbf16>
    %52 = vector.extract_strided_slice %46 {offsets = [0, 0], sizes = [16, 8], strides = [1, 1]} : vector<16x32xbf16> to vector<16x8xbf16>
    %53 = vector.shape_cast %52 : vector<16x8xbf16> to vector<2x8x8xbf16>
    %54 = vector.extract_strided_slice %48 {offsets = [0, 0], sizes = [16, 8], strides = [1, 1]} : vector<16x32xbf16> to vector<16x8xbf16>
    %55 = vector.shape_cast %54 : vector<16x8xbf16> to vector<2x8x8xbf16>
    "tpu.trace_start"() <{level = 10 : i32, message = "bqd,bkd->bqk"}> : () -> ()
    %cst_23 = arith.constant dense<0.000000e+00> : vector<2x8x8xf32>
    %56 = tpu.matmul %51, %53, %cst_23 {dimension_numbers = #tpu.dot_dimension_numbers<[2], [2], [1], [1], [0, 0, 0, 1, 1, 1], [0], [0]>} : vector<2x8x8xbf16>, vector<2x8x8xbf16>, vector<2x8x8xf32> -> vector<2x8x8xf32>
    "tpu.trace_stop"() : () -> ()
    %cst_24 = arith.constant 0.353553385 : f32
    %57 = vector.broadcast %cst_24 : f32 to vector<2x8x8xf32>
    %58 = arith.mulf %56, %57 : vector<2x8x8xf32>
    %cst_25 = arith.constant -1.000000e+09 : f32
    %59 = vector.broadcast %cst_25 : f32 to vector<2x8x8xf32>
    %60 = arith.select %4, %58, %59 : vector<2x8x8xi1>, vector<2x8x8xf32>
    %cst_26 = arith.constant dense<0xFF800000> : vector<2x8xf32>
    %61 = vector.multi_reduction <maximumf>, %60, %cst_26 [2] : vector<2x8x8xf32> to vector<2x8xf32>
    %62 = vector.shape_cast %61 : vector<2x8xf32> to vector<2x8x1xf32>
    %63 = vector.broadcast %62 : vector<2x8x1xf32> to vector<2x8x8xf32>
    %64 = arith.subf %60, %63 : vector<2x8x8xf32>
    %65 = math.exp %64 : vector<2x8x8xf32>
    %cst_27 = arith.constant dense<0.000000e+00> : vector<2x8xf32>
    %66 = vector.multi_reduction <add>, %65, %cst_27 [2] : vector<2x8x8xf32> to vector<2x8xf32>
    %67 = vector.shape_cast %66 : vector<2x8xf32> to vector<2x8x1xf32>
    %68 = vector.broadcast %67 : vector<2x8x1xf32> to vector<2x8x8xf32>
    %69 = arith.divf %65, %68 : vector<2x8x8xf32>
    %70 = arith.truncf %69 : vector<2x8x8xf32> to vector<2x8x8xbf16>
    "tpu.trace_start"() <{level = 10 : i32, message = "bqk,bkd->bqd"}> : () -> ()
    %cst_28 = arith.constant dense<0.000000e+00> : vector<2x8x8xf32>
    %71 = tpu.matmul %70, %55, %cst_28 {dimension_numbers = #tpu.dot_dimension_numbers<[2], [1], [1], [2], [0, 0, 0, 1, 1, 2], [0], [0]>} : vector<2x8x8xbf16>, vector<2x8x8xbf16>, vector<2x8x8xf32> -> vector<2x8x8xf32>
    "tpu.trace_stop"() : () -> ()
    %72 = vector.shape_cast %71 : vector<2x8x8xf32> to vector<16x8xf32>
    %73 = arith.truncf %72 : vector<16x8xf32> to vector<16x8xbf16>
    %c0_29 = arith.constant 0 : index
    %c0_30 = arith.constant 0 : index
    %74 = vector.load %arg5[%c0_29, %c0_30] : memref<32x32xbf16, #tpu.memory_space<vmem>>, vector<8x32xbf16>
    %cst_31 = arith.constant dense<0.000000e+00> : vector<16x32xf32>
    %75 = tpu.matmul %73, %74, %cst_31 {dimension_numbers = #tpu.dot_dimension_numbers<[1], [0], [0], [1], [0, 0, 1, 1], [], []>} : vector<16x8xbf16>, vector<8x32xbf16>, vector<16x32xf32> -> vector<16x32xf32>
    %76 = arith.addf %49, %75 : vector<16x32xf32>
    %77 = vector.extract_strided_slice %44 {offsets = [0, 8], sizes = [16, 8], strides = [1, 1]} : vector<16x32xbf16> to vector<16x8xbf16>
    %78 = vector.shape_cast %77 : vector<16x8xbf16> to vector<2x8x8xbf16>
    %79 = vector.extract_strided_slice %46 {offsets = [0, 8], sizes = [16, 8], strides = [1, 1]} : vector<16x32xbf16> to vector<16x8xbf16>
    %80 = vector.shape_cast %79 : vector<16x8xbf16> to vector<2x8x8xbf16>
    %81 = vector.extract_strided_slice %48 {offsets = [0, 8], sizes = [16, 8], strides = [1, 1]} : vector<16x32xbf16> to vector<16x8xbf16>
    %82 = vector.shape_cast %81 : vector<16x8xbf16> to vector<2x8x8xbf16>
    "tpu.trace_start"() <{level = 10 : i32, message = "bqd,bkd->bqk"}> : () -> ()
    %cst_32 = arith.constant dense<0.000000e+00> : vector<2x8x8xf32>
    %83 = tpu.matmul %78, %80, %cst_32 {dimension_numbers = #tpu.dot_dimension_numbers<[2], [2], [1], [1], [0, 0, 0, 1, 1, 1], [0], [0]>} : vector<2x8x8xbf16>, vector<2x8x8xbf16>, vector<2x8x8xf32> -> vector<2x8x8xf32>
    "tpu.trace_stop"() : () -> ()
    %cst_33 = arith.constant 0.353553385 : f32
    %84 = vector.broadcast %cst_33 : f32 to vector<2x8x8xf32>
    %85 = arith.mulf %83, %84 : vector<2x8x8xf32>
    %cst_34 = arith.constant -1.000000e+09 : f32
    %86 = vector.broadcast %cst_34 : f32 to vector<2x8x8xf32>
    %87 = arith.select %4, %85, %86 : vector<2x8x8xi1>, vector<2x8x8xf32>
    %cst_35 = arith.constant dense<0xFF800000> : vector<2x8xf32>
    %88 = vector.multi_reduction <maximumf>, %87, %cst_35 [2] : vector<2x8x8xf32> to vector<2x8xf32>
    %89 = vector.shape_cast %88 : vector<2x8xf32> to vector<2x8x1xf32>
    %90 = vector.broadcast %89 : vector<2x8x1xf32> to vector<2x8x8xf32>
    %91 = arith.subf %87, %90 : vector<2x8x8xf32>
    %92 = math.exp %91 : vector<2x8x8xf32>
    %cst_36 = arith.constant dense<0.000000e+00> : vector<2x8xf32>
    %93 = vector.multi_reduction <add>, %92, %cst_36 [2] : vector<2x8x8xf32> to vector<2x8xf32>
    %94 = vector.shape_cast %93 : vector<2x8xf32> to vector<2x8x1xf32>
    %95 = vector.broadcast %94 : vector<2x8x1xf32> to vector<2x8x8xf32>
    %96 = arith.divf %92, %95 : vector<2x8x8xf32>
    %97 = arith.truncf %96 : vector<2x8x8xf32> to vector<2x8x8xbf16>
    "tpu.trace_start"() <{level = 10 : i32, message = "bqk,bkd->bqd"}> : () -> ()
    %cst_37 = arith.constant dense<0.000000e+00> : vector<2x8x8xf32>
    %98 = tpu.matmul %97, %82, %cst_37 {dimension_numbers = #tpu.dot_dimension_numbers<[2], [1], [1], [2], [0, 0, 0, 1, 1, 2], [0], [0]>} : vector<2x8x8xbf16>, vector<2x8x8xbf16>, vector<2x8x8xf32> -> vector<2x8x8xf32>
    "tpu.trace_stop"() : () -> ()
    %99 = vector.shape_cast %98 : vector<2x8x8xf32> to vector<16x8xf32>
    %100 = arith.truncf %99 : vector<16x8xf32> to vector<16x8xbf16>
    %c8 = arith.constant 8 : index
    %c0_38 = arith.constant 0 : index
    %101 = vector.load %arg5[%c8, %c0_38] : memref<32x32xbf16, #tpu.memory_space<vmem>>, vector<8x32xbf16>
    %cst_39 = arith.constant dense<0.000000e+00> : vector<16x32xf32>
    %102 = tpu.matmul %100, %101, %cst_39 {dimension_numbers = #tpu.dot_dimension_numbers<[1], [0], [0], [1], [0, 0, 1, 1], [], []>} : vector<16x8xbf16>, vector<8x32xbf16>, vector<16x32xf32> -> vector<16x32xf32>
    %103 = arith.addf %76, %102 : vector<16x32xf32>
    %104 = vector.extract_strided_slice %44 {offsets = [0, 16], sizes = [16, 8], strides = [1, 1]} : vector<16x32xbf16> to vector<16x8xbf16>
    %105 = vector.shape_cast %104 : vector<16x8xbf16> to vector<2x8x8xbf16>
    %106 = vector.extract_strided_slice %46 {offsets = [0, 16], sizes = [16, 8], strides = [1, 1]} : vector<16x32xbf16> to vector<16x8xbf16>
    %107 = vector.shape_cast %106 : vector<16x8xbf16> to vector<2x8x8xbf16>
    %108 = vector.extract_strided_slice %48 {offsets = [0, 16], sizes = [16, 8], strides = [1, 1]} : vector<16x32xbf16> to vector<16x8xbf16>
    %109 = vector.shape_cast %108 : vector<16x8xbf16> to vector<2x8x8xbf16>
    "tpu.trace_start"() <{level = 10 : i32, message = "bqd,bkd->bqk"}> : () -> ()
    %cst_40 = arith.constant dense<0.000000e+00> : vector<2x8x8xf32>
    %110 = tpu.matmul %105, %107, %cst_40 {dimension_numbers = #tpu.dot_dimension_numbers<[2], [2], [1], [1], [0, 0, 0, 1, 1, 1], [0], [0]>} : vector<2x8x8xbf16>, vector<2x8x8xbf16>, vector<2x8x8xf32> -> vector<2x8x8xf32>
    "tpu.trace_stop"() : () -> ()
    %cst_41 = arith.constant 0.353553385 : f32
    %111 = vector.broadcast %cst_41 : f32 to vector<2x8x8xf32>
    %112 = arith.mulf %110, %111 : vector<2x8x8xf32>
    %cst_42 = arith.constant -1.000000e+09 : f32
    %113 = vector.broadcast %cst_42 : f32 to vector<2x8x8xf32>
    %114 = arith.select %4, %112, %113 : vector<2x8x8xi1>, vector<2x8x8xf32>
    %cst_43 = arith.constant dense<0xFF800000> : vector<2x8xf32>
    %115 = vector.multi_reduction <maximumf>, %114, %cst_43 [2] : vector<2x8x8xf32> to vector<2x8xf32>
    %116 = vector.shape_cast %115 : vector<2x8xf32> to vector<2x8x1xf32>
    %117 = vector.broadcast %116 : vector<2x8x1xf32> to vector<2x8x8xf32>
    %118 = arith.subf %114, %117 : vector<2x8x8xf32>
    %119 = math.exp %118 : vector<2x8x8xf32>
    %cst_44 = arith.constant dense<0.000000e+00> : vector<2x8xf32>
    %120 = vector.multi_reduction <add>, %119, %cst_44 [2] : vector<2x8x8xf32> to vector<2x8xf32>
    %121 = vector.shape_cast %120 : vector<2x8xf32> to vector<2x8x1xf32>
    %122 = vector.broadcast %121 : vector<2x8x1xf32> to vector<2x8x8xf32>
    %123 = arith.divf %119, %122 : vector<2x8x8xf32>
    %124 = arith.truncf %123 : vector<2x8x8xf32> to vector<2x8x8xbf16>
    "tpu.trace_start"() <{level = 10 : i32, message = "bqk,bkd->bqd"}> : () -> ()
    %cst_45 = arith.constant dense<0.000000e+00> : vector<2x8x8xf32>
    %125 = tpu.matmul %124, %109, %cst_45 {dimension_numbers = #tpu.dot_dimension_numbers<[2], [1], [1], [2], [0, 0, 0, 1, 1, 2], [0], [0]>} : vector<2x8x8xbf16>, vector<2x8x8xbf16>, vector<2x8x8xf32> -> vector<2x8x8xf32>
    "tpu.trace_stop"() : () -> ()
    %126 = vector.shape_cast %125 : vector<2x8x8xf32> to vector<16x8xf32>
    %127 = arith.truncf %126 : vector<16x8xf32> to vector<16x8xbf16>
    %c16 = arith.constant 16 : index
    %c0_46 = arith.constant 0 : index
    %128 = vector.load %arg5[%c16, %c0_46] : memref<32x32xbf16, #tpu.memory_space<vmem>>, vector<8x32xbf16>
    %cst_47 = arith.constant dense<0.000000e+00> : vector<16x32xf32>
    %129 = tpu.matmul %127, %128, %cst_47 {dimension_numbers = #tpu.dot_dimension_numbers<[1], [0], [0], [1], [0, 0, 1, 1], [], []>} : vector<16x8xbf16>, vector<8x32xbf16>, vector<16x32xf32> -> vector<16x32xf32>
    %130 = arith.addf %103, %129 : vector<16x32xf32>
    %131 = vector.extract_strided_slice %44 {offsets = [0, 24], sizes = [16, 8], strides = [1, 1]} : vector<16x32xbf16> to vector<16x8xbf16>
    %132 = vector.shape_cast %131 : vector<16x8xbf16> to vector<2x8x8xbf16>
    %133 = vector.extract_strided_slice %46 {offsets = [0, 24], sizes = [16, 8], strides = [1, 1]} : vector<16x32xbf16> to vector<16x8xbf16>
    %134 = vector.shape_cast %133 : vector<16x8xbf16> to vector<2x8x8xbf16>
    %135 = vector.extract_strided_slice %48 {offsets = [0, 24], sizes = [16, 8], strides = [1, 1]} : vector<16x32xbf16> to vector<16x8xbf16>
    %136 = vector.shape_cast %135 : vector<16x8xbf16> to vector<2x8x8xbf16>
    "tpu.trace_start"() <{level = 10 : i32, message = "bqd,bkd->bqk"}> : () -> ()
    %cst_48 = arith.constant dense<0.000000e+00> : vector<2x8x8xf32>
    %137 = tpu.matmul %132, %134, %cst_48 {dimension_numbers = #tpu.dot_dimension_numbers<[2], [2], [1], [1], [0, 0, 0, 1, 1, 1], [0], [0]>} : vector<2x8x8xbf16>, vector<2x8x8xbf16>, vector<2x8x8xf32> -> vector<2x8x8xf32>
    "tpu.trace_stop"() : () -> ()
    %cst_49 = arith.constant 0.353553385 : f32
    %138 = vector.broadcast %cst_49 : f32 to vector<2x8x8xf32>
    %139 = arith.mulf %137, %138 : vector<2x8x8xf32>
    %cst_50 = arith.constant -1.000000e+09 : f32
    %140 = vector.broadcast %cst_50 : f32 to vector<2x8x8xf32>
    %141 = arith.select %4, %139, %140 : vector<2x8x8xi1>, vector<2x8x8xf32>
    %cst_51 = arith.constant dense<0xFF800000> : vector<2x8xf32>
    %142 = vector.multi_reduction <maximumf>, %141, %cst_51 [2] : vector<2x8x8xf32> to vector<2x8xf32>
    %143 = vector.shape_cast %142 : vector<2x8xf32> to vector<2x8x1xf32>
    %144 = vector.broadcast %143 : vector<2x8x1xf32> to vector<2x8x8xf32>
    %145 = arith.subf %141, %144 : vector<2x8x8xf32>
    %146 = math.exp %145 : vector<2x8x8xf32>
    %cst_52 = arith.constant dense<0.000000e+00> : vector<2x8xf32>
    %147 = vector.multi_reduction <add>, %146, %cst_52 [2] : vector<2x8x8xf32> to vector<2x8xf32>
    %148 = vector.shape_cast %147 : vector<2x8xf32> to vector<2x8x1xf32>
    %149 = vector.broadcast %148 : vector<2x8x1xf32> to vector<2x8x8xf32>
    %150 = arith.divf %146, %149 : vector<2x8x8xf32>
    %151 = arith.truncf %150 : vector<2x8x8xf32> to vector<2x8x8xbf16>
    "tpu.trace_start"() <{level = 10 : i32, message = "bqk,bkd->bqd"}> : () -> ()
    %cst_53 = arith.constant dense<0.000000e+00> : vector<2x8x8xf32>
    %152 = tpu.matmul %151, %136, %cst_53 {dimension_numbers = #tpu.dot_dimension_numbers<[2], [1], [1], [2], [0, 0, 0, 1, 1, 2], [0], [0]>} : vector<2x8x8xbf16>, vector<2x8x8xbf16>, vector<2x8x8xf32> -> vector<2x8x8xf32>
    "tpu.trace_stop"() : () -> ()
    %153 = vector.shape_cast %152 : vector<2x8x8xf32> to vector<16x8xf32>
    %154 = arith.truncf %153 : vector<16x8xf32> to vector<16x8xbf16>
    %c24 = arith.constant 24 : index
    %c0_54 = arith.constant 0 : index
    %155 = vector.load %arg5[%c24, %c0_54] : memref<32x32xbf16, #tpu.memory_space<vmem>>, vector<8x32xbf16>
    %cst_55 = arith.constant dense<0.000000e+00> : vector<16x32xf32>
    %156 = tpu.matmul %154, %155, %cst_55 {dimension_numbers = #tpu.dot_dimension_numbers<[1], [0], [0], [1], [0, 0, 1, 1], [], []>} : vector<16x8xbf16>, vector<8x32xbf16>, vector<16x32xf32> -> vector<16x32xf32>
    %157 = arith.addf %130, %156 : vector<16x32xf32>
    %c0_56 = arith.constant 0 : index
    %c0_57 = arith.constant 0 : index
    %158 = vector.load %arg6[%c0_56, %c0_57] : memref<1x32xf32, #tpu.memory_space<vmem>>, vector<1x32xf32>
    %159 = vector.shape_cast %158 : vector<1x32xf32> to vector<32xf32>
    %160 = vector.shape_cast %159 : vector<32xf32> to vector<1x32xf32>
    %161 = vector.broadcast %160 : vector<1x32xf32> to vector<16x32xf32>
    %162 = arith.addf %157, %161 : vector<16x32xf32>
    %163 = arith.addf %1, %162 : vector<16x32xf32>
    %cst_58 = arith.constant dense<0.000000e+00> : vector<16xf32>
    %164 = vector.multi_reduction <add>, %163, %cst_58 [1] : vector<16x32xf32> to vector<16xf32>
    %165 = vector.shape_cast %164 : vector<16xf32> to vector<16x1xf32>
    %cst_59 = arith.constant 3.200000e+01 : f32
    %166 = vector.broadcast %cst_59 : f32 to vector<16x1xf32>
    %167 = arith.divf %165, %166 : vector<16x1xf32>
    %168 = vector.broadcast %167 : vector<16x1xf32> to vector<16x32xf32>
    %169 = arith.subf %163, %168 : vector<16x32xf32>
    %170 = arith.mulf %169, %169 : vector<16x32xf32>
    %cst_60 = arith.constant dense<0.000000e+00> : vector<16xf32>
    %171 = vector.multi_reduction <add>, %170, %cst_60 [1] : vector<16x32xf32> to vector<16xf32>
    %172 = vector.shape_cast %171 : vector<16xf32> to vector<16x1xf32>
    %cst_61 = arith.constant 3.100000e+01 : f32
    %173 = vector.broadcast %cst_61 : f32 to vector<16x1xf32>
    %174 = arith.divf %172, %173 : vector<16x1xf32>
    %175 = math.sqrt %174 : vector<16x1xf32>
    %cst_62 = arith.constant 9.99999997E-7 : f32
    %176 = vector.broadcast %cst_62 : f32 to vector<16x1xf32>
    %177 = arith.addf %175, %176 : vector<16x1xf32>
    %178 = vector.shape_cast %10 : vector<32xf32> to vector<1x32xf32>
    %179 = vector.broadcast %178 : vector<1x32xf32> to vector<16x32xf32>
    %180 = arith.mulf %179, %169 : vector<16x32xf32>
    %181 = vector.broadcast %177 : vector<16x1xf32> to vector<16x32xf32>
    %182 = arith.divf %180, %181 : vector<16x32xf32>
    %183 = vector.shape_cast %12 : vector<32xf32> to vector<1x32xf32>
    %184 = vector.broadcast %183 : vector<1x32xf32> to vector<16x32xf32>
    %185 = arith.addf %182, %184 : vector<16x32xf32>
    %186 = arith.truncf %185 : vector<16x32xf32> to vector<16x32xbf16>
    %cst_63 = arith.constant 0.000000e+00 : f32
    %187 = vector.broadcast %cst_63 : f32 to vector<16x32xf32>
    %c0_64 = arith.constant 0 : index
    %c0_65 = arith.constant 0 : index
    %188 = vector.load %arg11[%c0_64, %c0_65] : memref<32x1024xbf16, #tpu.memory_space<vmem>>, vector<32x1024xbf16>
    %cst_66 = arith.constant dense<0.000000e+00> : vector<16x1024xf32>
    %189 = tpu.matmul %186, %188, %cst_66 {dimension_numbers = #tpu.dot_dimension_numbers<[1], [0], [0], [1], [0, 0, 1, 1], [], []>} : vector<16x32xbf16>, vector<32x1024xbf16>, vector<16x1024xf32> -> vector<16x1024xf32>
    %c0_67 = arith.constant 0 : index
    %c0_68 = arith.constant 0 : index
    %190 = vector.load %arg12[%c0_67, %c0_68] : memref<1x1024xf32, #tpu.memory_space<vmem>>, vector<1x1024xf32>
    %191 = vector.shape_cast %190 : vector<1x1024xf32> to vector<1024xf32>
    %192 = vector.shape_cast %191 : vector<1024xf32> to vector<1x1024xf32>
    %193 = vector.broadcast %192 : vector<1x1024xf32> to vector<16x1024xf32>
    %194 = arith.addf %189, %193 : vector<16x1024xf32>
    %cst_69 = arith.constant 0.000000e+00 : f32
    %195 = vector.broadcast %cst_69 : f32 to vector<16x1024xf32>
    %196 = arith.maximumf %194, %195 : vector<16x1024xf32>
    %197 = arith.truncf %196 : vector<16x1024xf32> to vector<16x1024xbf16>
    %c0_70 = arith.constant 0 : index
    %c0_71 = arith.constant 0 : index
    %198 = vector.load %arg13[%c0_70, %c0_71] : memref<1024x32xbf16, #tpu.memory_space<vmem>>, vector<1024x32xbf16>
    %cst_72 = arith.constant dense<0.000000e+00> : vector<16x32xf32>
    %199 = tpu.matmul %197, %198, %cst_72 {dimension_numbers = #tpu.dot_dimension_numbers<[1], [0], [0], [1], [0, 0, 1, 1], [], []>} : vector<16x1024xbf16>, vector<1024x32xbf16>, vector<16x32xf32> -> vector<16x32xf32>
    %200 = arith.addf %187, %199 : vector<16x32xf32>
    %c0_73 = arith.constant 0 : index
    %c0_74 = arith.constant 0 : index
    %201 = vector.load %arg14[%c0_73, %c0_74] : memref<1x32xf32, #tpu.memory_space<vmem>>, vector<1x32xf32>
    %202 = vector.shape_cast %201 : vector<1x32xf32> to vector<32xf32>
    %203 = vector.shape_cast %202 : vector<32xf32> to vector<1x32xf32>
    %204 = vector.broadcast %203 : vector<1x32xf32> to vector<16x32xf32>
    %205 = arith.addf %200, %204 : vector<16x32xf32>
    %206 = arith.addf %163, %205 : vector<16x32xf32>
    %207 = vector.shape_cast %206 : vector<16x32xf32> to vector<2x8x32xf32>
    %c0_75 = arith.constant 0 : index
    %c0_76 = arith.constant 0 : index
    %c0_77 = arith.constant 0 : index
    %208 = vector.load %arg15[%c0_75, %c0_76, %c0_77] : memref<2x8x32xf32, #tpu.memory_space<vmem>>, vector<2x8x32xf32>
    tpu.vector_store %arg15[%c0_75, %c0_76, %c0_77], %207 {strides = array<i32>} : memref<2x8x32xf32, #tpu.memory_space<vmem>>, vector<2x8x32xf32>,
    return
  }
  func.func @transform_0(%arg0: i32) -> (i32, i32, i32) {
    %c0_i32 = arith.constant 0 : i32
    %c0_i32_0 = arith.constant 0 : i32
    %c0_i32_1 = arith.constant 0 : i32
    return %arg0, %c0_i32, %c0_i32_0 : i32, i32, i32
  }
  func.func @transform_1(%arg0: i32) -> (i32, i32, i32) {
    %c0_i32 = arith.constant 0 : i32
    %c0_i32_0 = arith.constant 0 : i32
    %c0_i32_1 = arith.constant 0 : i32
    return %arg0, %c0_i32, %c0_i32_0 : i32, i32, i32
  }
  func.func @transform_2(%arg0: i32) -> (i32, i32) {
    %c0_i32 = arith.constant 0 : i32
    %c0_i32_0 = arith.constant 0 : i32
    %c0_i32_1 = arith.constant 0 : i32
    return %c0_i32, %c0_i32_0 : i32, i32
  }
  func.func @transform_3(%arg0: i32) -> (i32, i32) {
    %c0_i32 = arith.constant 0 : i32
    %c0_i32_0 = arith.constant 0 : i32
    %c0_i32_1 = arith.constant 0 : i32
    return %c0_i32, %c0_i32_0 : i32, i32
  }
  func.func @transform_4(%arg0: i32) -> (i32, i32) {
    %c0_i32 = arith.constant 0 : i32
    %c0_i32_0 = arith.constant 0 : i32
    %c0_i32_1 = arith.constant 0 : i32
    return %c0_i32, %c0_i32_0 : i32, i32
  }
  func.func @transform_5(%arg0: i32) -> (i32, i32) {
    %c0_i32 = arith.constant 0 : i32
    %c0_i32_0 = arith.constant 0 : i32
    %c0_i32_1 = arith.constant 0 : i32
    return %c0_i32, %c0_i32_0 : i32, i32
  }
  func.func @transform_6(%arg0: i32) -> (i32, i32) {
    %c0_i32 = arith.constant 0 : i32
    %c0_i32_0 = arith.constant 0 : i32
    %c0_i32_1 = arith.constant 0 : i32
    return %c0_i32, %c0_i32_0 : i32, i32
  }
  func.func @transform_7(%arg0: i32) -> (i32, i32) {
    %c0_i32 = arith.constant 0 : i32
    %c0_i32_0 = arith.constant 0 : i32
    %c0_i32_1 = arith.constant 0 : i32
    return %c0_i32, %c0_i32_0 : i32, i32
  }
  func.func @transform_8(%arg0: i32) -> (i32, i32) {
    %c0_i32 = arith.constant 0 : i32
    %c0_i32_0 = arith.constant 0 : i32
    %c0_i32_1 = arith.constant 0 : i32
    return %c0_i32, %c0_i32_0 : i32, i32
  }
  func.func @transform_9(%arg0: i32) -> (i32, i32) {
    %c0_i32 = arith.constant 0 : i32
    %c0_i32_0 = arith.constant 0 : i32
    %c0_i32_1 = arith.constant 0 : i32
    return %c0_i32, %c0_i32_0 : i32, i32
  }
  func.func @transform_10(%arg0: i32) -> (i32, i32) {
    %c0_i32 = arith.constant 0 : i32
    %c0_i32_0 = arith.constant 0 : i32
    %c0_i32_1 = arith.constant 0 : i32
    return %c0_i32, %c0_i32_0 : i32, i32
  }
  func.func @transform_11(%arg0: i32) -> (i32, i32) {
    %c0_i32 = arith.constant 0 : i32
    %c0_i32_0 = arith.constant 0 : i32
    %c0_i32_1 = arith.constant 0 : i32
    return %c0_i32, %c0_i32_0 : i32, i32
  }
  func.func @transform_12(%arg0: i32) -> (i32, i32) {
    %c0_i32 = arith.constant 0 : i32
    %c0_i32_0 = arith.constant 0 : i32
    %c0_i32_1 = arith.constant 0 : i32
    return %c0_i32, %c0_i32_0 : i32, i32
  }
  func.func @transform_13(%arg0: i32) -> (i32, i32) {
    %c0_i32 = arith.constant 0 : i32
    %c0_i32_0 = arith.constant 0 : i32
    %c0_i32_1 = arith.constant 0 : i32
    return %c0_i32, %c0_i32_0 : i32, i32
  }
  func.func @transform_14(%arg0: i32) -> (i32, i32, i32) {
    %c0_i32 = arith.constant 0 : i32
    %c0_i32_0 = arith.constant 0 : i32
    %c0_i32_1 = arith.constant 0 : i32
    return %arg0, %c0_i32, %c0_i32_0 : i32, i32, i32
  }
}

module attributes {stable_mosaic.version = 11 : i64} {
  func.func @encoder_layer_kernel(%arg0: i32, %arg1: memref<2x8x32xf32, #tpu.memory_space<vmem>>, %arg2: memref<2x8x8xi8, #tpu.memory_space<vmem>>, %arg3: memref<32x96xbf16, #tpu.memory_space<vmem>>, %arg4: memref<1x96xf32, #tpu.memory_space<vmem>>, %arg5: memref<32x32xbf16, #tpu.memory_space<vmem>>, %arg6: memref<1x32xf32, #tpu.memory_space<vmem>>, %arg7: memref<1x32xf32, #tpu.memory_space<vmem>>, %arg8: memref<1x32xf32, #tpu.memory_space<vmem>>, %arg9: memref<1x32xf32, #tpu.memory_space<vmem>>, %arg10: memref<1x32xf32, #tpu.memory_space<vmem>>, %arg11: memref<32x1024xbf16, #tpu.memory_space<vmem>>, %arg12: memref<1x1024xf32, #tpu.memory_space<vmem>>, %arg13: memref<1024x32xbf16, #tpu.memory_space<vmem>>, %arg14: memref<1x32xf32, #tpu.memory_space<vmem>>, %arg15: memref<2x8x32xf32, #tpu.memory_space<vmem>>) attributes {dimension_semantics = [#tpu.dimension_semantics<parallel>], iteration_bounds = array<i64: 1>, scalar_prefetch = 0 : i64, scratch_operands = 0 : i64, tpu.core_type = #tpu.core_type<tc>, window_params = [{transform_indices = @transform_0, window_bounds = array<i64: 2, 8, 32>}, {transform_indices = @transform_1, window_bounds = array<i64: 2, 8, 8>}, {pipeline_mode = #tpu.pipeline_mode<synchronous>, transform_indices = @transform_2, window_bounds = array<i64: 32, 96>}, {pipeline_mode = #tpu.pipeline_mode<synchronous>, transform_indices = @transform_3, window_bounds = array<i64: 1, 96>}, {pipeline_mode = #tpu.pipeline_mode<synchronous>, transform_indices = @transform_4, window_bounds = array<i64: 32, 32>}, {pipeline_mode = #tpu.pipeline_mode<synchronous>, transform_indices = @transform_5, window_bounds = array<i64: 1, 32>}, {pipeline_mode = #tpu.pipeline_mode<synchronous>, transform_indices = @transform_6, window_bounds = array<i64: 1, 32>}, {pipeline_mode = #tpu.pipeline_mode<synchronous>, transform_indices = @transform_7, window_bounds = array<i64: 1, 32>}, {pipeline_mode = #tpu.pipeline_mode<synchronous>, transform_indices = @transform_8, window_bounds = array<i64: 1, 32>}, {pipeline_mode = #tpu.pipeline_mode<synchronous>, transform_indices = @transform_9, window_bounds = array<i64: 1, 32>}, {pipeline_mode = #tpu.pipeline_mode<synchronous>, transform_indices = @transform_10, window_bounds = array<i64: 32, 1024>}, {pipeline_mode = #tpu.pipeline_mode<synchronous>, transform_indices = @transform_11, window_bounds = array<i64: 1, 1024>}, {pipeline_mode = #tpu.pipeline_mode<synchronous>, transform_indices = @transform_12, window_bounds = array<i64: 1024, 32>}, {pipeline_mode = #tpu.pipeline_mode<synchronous>, transform_indices = @transform_13, window_bounds = array<i64: 1, 32>}, {transform_indices = @transform_14, window_bounds = array<i64: 2, 8, 32>}]} {
    %c0 = arith.constant 0 : index
    %c0_0 = arith.constant 0 : index
    %c0_1 = arith.constant 0 : index
    %0 = vector.load %arg1[%c0, %c0_0, %c0_1] : memref<2x8x32xf32, #tpu.memory_space<vmem>>, vector<2x8x32xf32>
    %1 = vector.shape_cast %0 : vector<2x8x32xf32> to vector<16x32xf32>
    %c0_2 = arith.constant 0 : index
    %c0_3 = arith.constant 0 : index
    %c0_4 = arith.constant 0 : index
    %2 = vector.load %arg2[%c0_2, %c0_3, %c0_4] : memref<2x8x8xi8, #tpu.memory_space<vmem>>, vector<2x8x8xi8>
    %c0_i8 = arith.constant 0 : i8
    %3 = vector.broadcast %c0_i8 : i8 to vector<2x8x8xi8>
    %4 = arith.cmpi ne, %2, %3 : vector<2x8x8xi8>
    %c0_5 = arith.constant 0 : index
    %c0_6 = arith.constant 0 : index
    %5 = vector.load %arg7[%c0_5, %c0_6] : memref<1x32xf32, #tpu.memory_space<vmem>>, vector<1x32xf32>
    %6 = vector.shape_cast %5 : vector<1x32xf32> to vector<32xf32>
    %c0_7 = arith.constant 0 : index
    %c0_8 = arith.constant 0 : index
    %7 = vector.load %arg8[%c0_7, %c0_8] : memref<1x32xf32, #tpu.memory_space<vmem>>, vector<1x32xf32>
    %8 = vector.shape_cast %7 : vector<1x32xf32> to vector<32xf32>
    %c0_9 = arith.constant 0 : index
    %c0_10 = arith.constant 0 : index
    %9 = vector.load %arg9[%c0_9, %c0_10] : memref<1x32xf32, #tpu.memory_space<vmem>>, vector<1x32xf32>
    %10 = vector.shape_cast %9 : vector<1x32xf32> to vector<32xf32>
    %c0_11 = arith.constant 0 : index
    %c0_12 = arith.constant 0 : index
    %11 = vector.load %arg10[%c0_11, %c0_12] : memref<1x32xf32, #tpu.memory_space<vmem>>, vector<1x32xf32>
    %12 = vector.shape_cast %11 : vector<1x32xf32> to vector<32xf32>
    %cst = arith.constant dense<0.000000e+00> : vector<16xf32>
    %13 = vector.multi_reduction <add>, %1, %cst [1] : vector<16x32xf32> to vector<16xf32>
    %14 = vector.shape_cast %13 : vector<16xf32> to vector<16x1xf32>
    %cst_13 = arith.constant 3.200000e+01 : f32
    %15 = vector.broadcast %cst_13 : f32 to vector<16x1xf32>
    %16 = arith.divf %14, %15 : vector<16x1xf32>
    %17 = vector.broadcast %16 : vector<16x1xf32> to vector<16x32xf32>
    %18 = arith.subf %1, %17 : vector<16x32xf32>
    %19 = arith.mulf %18, %18 : vector<16x32xf32>
    %cst_14 = arith.constant dense<0.000000e+00> : vector<16xf32>
    %20 = vector.multi_reduction <add>, %19, %cst_14 [1] : vector<16x32xf32> to vector<16xf32>
    %21 = vector.shape_cast %20 : vector<16xf32> to vector<16x1xf32>
    %cst_15 = arith.constant 3.100000e+01 : f32
    %22 = vector.broadcast %cst_15 : f32 to vector<16x1xf32>
    %23 = arith.divf %21, %22 : vector<16x1xf32>
    %24 = math.sqrt %23 : vector<16x1xf32>
    %cst_16 = arith.constant 9.99999997E-7 : f32
    %25 = vector.broadcast %cst_16 : f32 to vector<16x1xf32>
    %26 = arith.addf %24, %25 : vector<16x1xf32>
    %27 = vector.shape_cast %6 : vector<32xf32> to vector<1x32xf32>
    %28 = vector.broadcast %27 : vector<1x32xf32> to vector<16x32xf32>
    %29 = arith.mulf %28, %18 : vector<16x32xf32>
    %30 = vector.broadcast %26 : vector<16x1xf32> to vector<16x32xf32>
    %31 = arith.divf %29, %30 : vector<16x32xf32>
    %32 = vector.shape_cast %8 : vector<32xf32> to vector<1x32xf32>
    %33 = vector.broadcast %32 : vector<1x32xf32> to vector<16x32xf32>
    %34 = arith.addf %31, %33 : vector<16x32xf32>
    %35 = arith.truncf %34 : vector<16x32xf32> to vector<16x32xbf16>
    %c0_17 = arith.constant 0 : index
    %c0_18 = arith.constant 0 : index
    %36 = vector.load %arg3[%c0_17, %c0_18] : memref<32x96xbf16, #tpu.memory_space<vmem>>, vector<32x96xbf16>
    %cst_19 = arith.constant dense<0.000000e+00> : vector<16x96xf32>
    %37 = tpu.matmul %35, %36, %cst_19 {dimension_numbers = #tpu.dot_dimension_numbers<[1], [0], [0], [1], [0, 0, 1, 1], [], []>} : vector<16x32xbf16>, vector<32x96xbf16>, vector<16x96xf32> -> vector<16x96xf32>
    %c0_20 = arith.constant 0 : index
    %c0_21 = arith.constant 0 : index
    %38 = vector.load %arg4[%c0_20, %c0_21] : memref<1x96xf32, #tpu.memory_space<vmem>>, vector<1x96xf32>
    %39 = vector.shape_cast %38 : vector<1x96xf32> to vector<96xf32>
    %40 = vector.shape_cast %39 : vector<96xf32> to vector<1x96xf32>
    %41 = vector.broadcast %40 : vector<1x96xf32> to vector<16x96xf32>
    %42 = arith.addf %37, %41 : vector<16x96xf32>
    %43 = vector.extract_strided_slice %42 {offsets = [0, 0], sizes = [16, 32], strides = [1, 1]} : vector<16x96xf32> to vector<16x32xf32>
    %44 = arith.truncf %43 : vector<16x32xf32> to vector<16x32xbf16>
    %45 = vector.extract_strided_slice %42 {offsets = [0, 32], sizes = [16, 32], strides = [1, 1]} : vector<16x96xf32> to vector<16x32xf32>
    %46 = arith.truncf %45 : vector<16x32xf32> to vector<16x32xbf16>
    %47 = vector.extract_strided_slice %42 {offsets = [0, 64], sizes = [16, 32], strides = [1, 1]} : vector<16x96xf32> to vector<16x32xf32>
    %48 = arith.truncf %47 : vector<16x32xf32> to vector<16x32xbf16>
    %cst_22 = arith.constant 0.000000e+00 : f32
    %49 = vector.broadcast %cst_22 : f32 to vector<16x32xf32>
    %50 = vector.extract_strided_slice %44 {offsets = [0, 0], sizes = [16, 8], strides = [1, 1]} : vector<16x32xbf16> to vector<16x8xbf16>
    %51 = vector.shape_cast %50 : vector<16x8xbf16> to vector<2x8x8xbf16>
    %52 = vector.extract_strided_slice %46 {offsets = [0, 0], sizes = [16, 8], strides = [1, 1]} : vector<16x32xbf16> to vector<16x8xbf16>
    %53 = vector.shape_cast %52 : vector<16x8xbf16> to vector<2x8x8xbf16>
    %54 = vector.extract_strided_slice %48 {offsets = [0, 0], sizes = [16, 8], strides = [1, 1]} : vector<16x32xbf16> to vector<16x8xbf16>
    %55 = vector.shape_cast %54 : vector<16x8xbf16> to vector<2x8x8xbf16>
    "tpu.trace_start"() <{level = 10 : i32, message = "bqd,bkd->bqk"}> : () -> ()
    %cst_23 = arith.constant dense<0.000000e+00> : vector<2x8x8xf32>
    %56 = tpu.matmul %51, %53, %cst_23 {dimension_numbers = #tpu.dot_dimension_numbers<[2], [2], [1], [1], [0, 0, 0, 1, 1, 1], [0], [0]>} : vector<2x8x8xbf16>, vector<2x8x8xbf16>, vector<2x8x8xf32> -> vector<2x8x8xf32>
    "tpu.trace_stop"() : () -> ()
    %cst_24 = arith.constant 0.353553385 : f32
    %57 = vector.broadcast %cst_24 : f32 to vector<2x8x8xf32>
    %58 = arith.mulf %56, %57 : vector<2x8x8xf32>
    %cst_25 = arith.constant -1.000000e+09 : f32
    %59 = vector.broadcast %cst_25 : f32 to vector<2x8x8xf32>
    %60 = arith.select %4, %58, %59 : vector<2x8x8xi1>, vector<2x8x8xf32>
    %cst_26 = arith.constant dense<0xFF800000> : vector<2x8xf32>
    %61 = vector.multi_reduction <maximumf>, %60, %cst_26 [2] : vector<2x8x8xf32> to vector<2x8xf32>
    %62 = vector.shape_cast %61 : vector<2x8xf32> to vector<2x8x1xf32>
    %63 = vector.broadcast %62 : vector<2x8x1xf32> to vector<2x8x8xf32>
    %64 = arith.subf %60, %63 : vector<2x8x8xf32>
    %65 = math.exp %64 : vector<2x8x8xf32>
    %cst_27 = arith.constant dense<0.000000e+00> : vector<2x8xf32>
    %66 = vector.multi_reduction <add>, %65, %cst_27 [2] : vector<2x8x8xf32> to vector<2x8xf32>
    %67 = vector.shape_cast %66 : vector<2x8xf32> to vector<2x8x1xf32>
    %68 = vector.broadcast %67 : vector<2x8x1xf32> to vector<2x8x8xf32>
    %69 = arith.divf %65, %68 : vector<2x8x8xf32>
    %70 = arith.truncf %69 : vector<2x8x8xf32> to vector<2x8x8xbf16>
    "tpu.trace_start"() <{level = 10 : i32, message = "bqk,bkd->bqd"}> : () -> ()
    %cst_28 = arith.constant dense<0.000000e+00> : vector<2x8x8xf32>
    %71 = tpu.matmul %70, %55, %cst_28 {dimension_numbers = #tpu.dot_dimension_numbers<[2], [1], [1], [2], [0, 0, 0, 1, 1, 2], [0], [0]>} : vector<2x8x8xbf16>, vector<2x8x8xbf16>, vector<2x8x8xf32> -> vector<2x8x8xf32>
    "tpu.trace_stop"() : () -> ()
    %72 = vector.shape_cast %71 : vector<2x8x8xf32> to vector<16x8xf32>
    %73 = arith.truncf %72 : vector<16x8xf32> to vector<16x8xbf16>
    %c0_29 = arith.constant 0 : index
    %c0_30 = arith.constant 0 : index
    %74 = vector.load %arg5[%c0_29, %c0_30] : memref<32x32xbf16, #tpu.memory_space<vmem>>, vector<8x32xbf16>
    %cst_31 = arith.constant dense<0.000000e+00> : vector<16x32xf32>
    %75 = tpu.matmul %73, %74, %cst_31 {dimension_numbers = #tpu.dot_dimension_numbers<[1], [0], [0], [1], [0, 0, 1, 1], [], []>} : vector<16x8xbf16>, vector<8x32xbf16>, vector<16x32xf32> -> vector<16x32xf32>
    %76 = arith.addf %49, %75 : vector<16x32xf32>
    %77 = vector.extract_strided_slice %44 {offsets = [0, 8], sizes = [16, 8], strides = [1, 1]} : vector<16x32xbf16> to vector<16x8xbf16>
    %78 = vector.shape_cast %77 : vector<16x8xbf16> to vector<2x8x8xbf16>
    %79 = vector.extract_strided_slice %46 {offsets = [0, 8], sizes = [16, 8], strides = [1, 1]} : vector<16x32xbf16> to vector<16x8xbf16>
    %80 = vector.shape_cast %79 : vector<16x8xbf16> to vector<2x8x8xbf16>
    %81 = vector.extract_strided_slice %48 {offsets = [0, 8], sizes = [16, 8], strides = [1, 1]} : vector<16x32xbf16> to vector<16x8xbf16>
    %82 = vector.shape_cast %81 : vector<16x8xbf16> to vector<2x8x8xbf16>
    "tpu.trace_start"() <{level = 10 : i32, message = "bqd,bkd->bqk"}> : () -> ()
    %cst_32 = arith.constant dense<0.000000e+00> : vector<2x8x8xf32>
    %83 = tpu.matmul %78, %80, %cst_32 {dimension_numbers = #tpu.dot_dimension_numbers<[2], [2], [1], [1], [0, 0, 0, 1, 1, 1], [0], [0]>} : vector<2x8x8xbf16>, vector<2x8x8xbf16>, vector<2x8x8xf32> -> vector<2x8x8xf32>
    "tpu.trace_stop"() : () -> ()
    %cst_33 = arith.constant 0.353553385 : f32
    %84 = vector.broadcast %cst_33 : f32 to vector<2x8x8xf32>
    %85 = arith.mulf %83, %84 : vector<2x8x8xf32>
    %cst_34 = arith.constant -1.000000e+09 : f32
    %86 = vector.broadcast %cst_34 : f32 to vector<2x8x8xf32>
    %87 = arith.select %4, %85, %86 : vector<2x8x8xi1>, vector<2x8x8xf32>
    %cst_35 = arith.constant dense<0xFF800000> : vector<2x8xf32>
    %88 = vector.multi_reduction <maximumf>, %87, %cst_35 [2] : vector<2x8x8xf32> to vector<2x8xf32>
    %89 = vector.shape_cast %88 : vector<2x8xf32> to vector<2x8x1xf32>
    %90 = vector.broadcast %89 : vector<2x8x1xf32> to vector<2x8x8xf32>
    %91 = arith.subf %87, %90 : vector<2x8x8xf32>
    %92 = math.exp %91 : vector<2x8x8xf32>
    %cst_36 = arith.constant dense<0.000000e+00> : vector<2x8xf32>
    %93 = vector.multi_reduction <add>, %92, %cst_36 [2] : vector<2x8x8xf32> to vector<2x8xf32>
    %94 = vector.shape_cast %93 : vector<2x8xf32> to vector<2x8x1xf32>
    %95 = vector.broadcast %94 : vector<2x8x1xf32> to vector<2x8x8xf32>
    %96 = arith.divf %92, %95 : vector<2x8x8xf32>
    %97 = arith.truncf %96 : vector<2x8x8xf32> to vector<2x8x8xbf16>
    "tpu.trace_start"() <{level = 10 : i32, message = "bqk,bkd->bqd"}> : () -> ()
    %cst_37 = arith.constant dense<0.000000e+00> : vector<2x8x8xf32>
    %98 = tpu.matmul %97, %82, %cst_37 {dimension_numbers = #tpu.dot_dimension_numbers<[2], [1], [1], [2], [0, 0, 0, 1, 1, 2], [0], [0]>} : vector<2x8x8xbf16>, vector<2x8x8xbf16>, vector<2x8x8xf32> -> vector<2x8x8xf32>
    "tpu.trace_stop"() : () -> ()
    %99 = vector.shape_cast %98 : vector<2x8x8xf32> to vector<16x8xf32>
    %100 = arith.truncf %99 : vector<16x8xf32> to vector<16x8xbf16>
    %c8 = arith.constant 8 : index
    %c0_38 = arith.constant 0 : index
    %101 = vector.load %arg5[%c8, %c0_38] : memref<32x32xbf16, #tpu.memory_space<vmem>>, vector<8x32xbf16>
    %cst_39 = arith.constant dense<0.000000e+00> : vector<16x32xf32>
    %102 = tpu.matmul %100, %101, %cst_39 {dimension_numbers = #tpu.dot_dimension_numbers<[1], [0], [0], [1], [0, 0, 1, 1], [], []>} : vector<16x8xbf16>, vector<8x32xbf16>, vector<16x32xf32> -> vector<16x32xf32>
    %103 = arith.addf %76, %102 : vector<16x32xf32>
    %104 = vector.extract_strided_slice %44 {offsets = [0, 16], sizes = [16, 8], strides = [1, 1]} : vector<16x32xbf16> to vector<16x8xbf16>
    %105 = vector.shape_cast %104 : vector<16x8xbf16> to vector<2x8x8xbf16>
    %106 = vector.extract_strided_slice %46 {offsets = [0, 16], sizes = [16, 8], strides = [1, 1]} : vector<16x32xbf16> to vector<16x8xbf16>
    %107 = vector.shape_cast %106 : vector<16x8xbf16> to vector<2x8x8xbf16>
    %108 = vector.extract_strided_slice %48 {offsets = [0, 16], sizes = [16, 8], strides = [1, 1]} : vector<16x32xbf16> to vector<16x8xbf16>
    %109 = vector.shape_cast %108 : vector<16x8xbf16> to vector<2x8x8xbf16>
    "tpu.trace_start"() <{level = 10 : i32, message = "bqd,bkd->bqk"}> : () -> ()
    %cst_40 = arith.constant dense<0.000000e+00> : vector<2x8x8xf32>
    %110 = tpu.matmul %105, %107, %cst_40 {dimension_numbers = #tpu.dot_dimension_numbers<[2], [2], [1], [1], [0, 0, 0, 1, 1, 1], [0], [0]>} : vector<2x8x8xbf16>, vector<2x8x8xbf16>, vector<2x8x8xf32> -> vector<2x8x8xf32>
    "tpu.trace_stop"() : () -> ()
    %cst_41 = arith.constant 0.353553385 : f32
    %111 = vector.broadcast %cst_41 : f32 to vector<2x8x8xf32>
    %112 = arith.mulf %110, %111 : vector<2x8x8xf32>
    %cst_42 = arith.constant -1.000000e+09 : f32
    %113 = vector.broadcast %cst_42 : f32 to vector<2x8x8xf32>
    %114 = arith.select %4, %112, %113 : vector<2x8x8xi1>, vector<2x8x8xf32>
    %cst_43 = arith.constant dense<0xFF800000> : vector<2x8xf32>
    %115 = vector.multi_reduction <maximumf>, %114, %cst_43 [2] : vector<2x8x8xf32> to vector<2x8xf32>
    %116 = vector.shape_cast %115 : vector<2x8xf32> to vector<2x8x1xf32>
    %117 = vector.broadcast %116 : vector<2x8x1xf32> to vector<2x8x8xf32>
    %118 = arith.subf %114, %117 : vector<2x8x8xf32>
    %119 = math.exp %118 : vector<2x8x8xf32>
    %cst_44 = arith.constant dense<0.000000e+00> : vector<2x8xf32>
    %120 = vector.multi_reduction <add>, %119, %cst_44 [2] : vector<2x8x8xf32> to vector<2x8xf32>
    %121 = vector.shape_cast %120 : vector<2x8xf32> to vector<2x8x1xf32>
    %122 = vector.broadcast %121 : vector<2x8x1xf32> to vector<2x8x8xf32>
    %123 = arith.divf %119, %122 : vector<2x8x8xf32>
    %124 = arith.truncf %123 : vector<2x8x8xf32> to vector<2x8x8xbf16>
    "tpu.trace_start"() <{level = 10 : i32, message = "bqk,bkd->bqd"}> : () -> ()
    %cst_45 = arith.constant dense<0.000000e+00> : vector<2x8x8xf32>
    %125 = tpu.matmul %124, %109, %cst_45 {dimension_numbers = #tpu.dot_dimension_numbers<[2], [1], [1], [2], [0, 0, 0, 1, 1, 2], [0], [0]>} : vector<2x8x8xbf16>, vector<2x8x8xbf16>, vector<2x8x8xf32> -> vector<2x8x8xf32>
    "tpu.trace_stop"() : () -> ()
    %126 = vector.shape_cast %125 : vector<2x8x8xf32> to vector<16x8xf32>
    %127 = arith.truncf %126 : vector<16x8xf32> to vector<16x8xbf16>
    %c16 = arith.constant 16 : index
    %c0_46 = arith.constant 0 : index
    %128 = vector.load %arg5[%c16, %c0_46] : memref<32x32xbf16, #tpu.memory_space<vmem>>, vector<8x32xbf16>
    %cst_47 = arith.constant dense<0.000000e+00> : vector<16x32xf32>
    %129 = tpu.matmul %127, %128, %cst_47 {dimension_numbers = #tpu.dot_dimension_numbers<[1], [0], [0], [1], [0, 0, 1, 1], [], []>} : vector<16x8xbf16>, vector<8x32xbf16>, vector<16x32xf32> -> vector<16x32xf32>
    %130 = arith.addf %103, %129 : vector<16x32xf32>
    %131 = vector.extract_strided_slice %44 {offsets = [0, 24], sizes = [16, 8], strides = [1, 1]} : vector<16x32xbf16> to vector<16x8xbf16>
    %132 = vector.shape_cast %131 : vector<16x8xbf16> to vector<2x8x8xbf16>
    %133 = vector.extract_strided_slice %46 {offsets = [0, 24], sizes = [16, 8], strides = [1, 1]} : vector<16x32xbf16> to vector<16x8xbf16>
    %134 = vector.shape_cast %133 : vector<16x8xbf16> to vector<2x8x8xbf16>
    %135 = vector.extract_strided_slice %48 {offsets = [0, 24], sizes = [16, 8], strides = [1, 1]} : vector<16x32xbf16> to vector<16x8xbf16>
    %136 = vector.shape_cast %135 : vector<16x8xbf16> to vector<2x8x8xbf16>
    "tpu.trace_start"() <{level = 10 : i32, message = "bqd,bkd->bqk"}> : () -> ()
    %cst_48 = arith.constant dense<0.000000e+00> : vector<2x8x8xf32>
    %137 = tpu.matmul %132, %134, %cst_48 {dimension_numbers = #tpu.dot_dimension_numbers<[2], [2], [1], [1], [0, 0, 0, 1, 1, 1], [0], [0]>} : vector<2x8x8xbf16>, vector<2x8x8xbf16>, vector<2x8x8xf32> -> vector<2x8x8xf32>
    "tpu.trace_stop"() : () -> ()
    %cst_49 = arith.constant 0.353553385 : f32
    %138 = vector.broadcast %cst_49 : f32 to vector<2x8x8xf32>
    %139 = arith.mulf %137, %138 : vector<2x8x8xf32>
    %cst_50 = arith.constant -1.000000e+09 : f32
    %140 = vector.broadcast %cst_50 : f32 to vector<2x8x8xf32>
    %141 = arith.select %4, %139, %140 : vector<2x8x8xi1>, vector<2x8x8xf32>
    %cst_51 = arith.constant dense<0xFF800000> : vector<2x8xf32>
    %142 = vector.multi_reduction <maximumf>, %141, %cst_51 [2] : vector<2x8x8xf32> to vector<2x8xf32>
    %143 = vector.shape_cast %142 : vector<2x8xf32> to vector<2x8x1xf32>
    %144 = vector.broadcast %143 : vector<2x8x1xf32> to vector<2x8x8xf32>
    %145 = arith.subf %141, %144 : vector<2x8x8xf32>
    %146 = math.exp %145 : vector<2x8x8xf32>
    %cst_52 = arith.constant dense<0.000000e+00> : vector<2x8xf32>
    %147 = vector.multi_reduction <add>, %146, %cst_52 [2] : vector<2x8x8xf32> to vector<2x8xf32>
    %148 = vector.shape_cast %147 : vector<2x8xf32> to vector<2x8x1xf32>
    %149 = vector.broadcast %148 : vector<2x8x1xf32> to vector<2x8x8xf32>
    %150 = arith.divf %146, %149 : vector<2x8x8xf32>
    %151 = arith.truncf %150 : vector<2x8x8xf32> to vector<2x8x8xbf16>
    "tpu.trace_start"() <{level = 10 : i32, message = "bqk,bkd->bqd"}> : () -> ()
    %cst_53 = arith.constant dense<0.000000e+00> : vector<2x8x8xf32>
    %152 = tpu.matmul %151, %136, %cst_53 {dimension_numbers = #tpu.dot_dimension_numbers<[2], [1], [1], [2], [0, 0, 0, 1, 1, 2], [0], [0]>} : vector<2x8x8xbf16>, vector<2x8x8xbf16>, vector<2x8x8xf32> -> vector<2x8x8xf32>
    "tpu.trace_stop"() : () -> ()
    %153 = vector.shape_cast %152 : vector<2x8x8xf32> to vector<16x8xf32>
    %154 = arith.truncf %153 : vector<16x8xf32> to vector<16x8xbf16>
    %c24 = arith.constant 24 : index
    %c0_54 = arith.constant 0 : index
    %155 = vector.load %arg5[%c24, %c0_54] : memref<32x32xbf16, #tpu.memory_space<vmem>>, vector<8x32xbf16>
    %cst_55 = arith.constant dense<0.000000e+00> : vector<16x32xf32>
    %156 = tpu.matmul %154, %155, %cst_55 {dimension_numbers = #tpu.dot_dimension_numbers<[1], [0], [0], [1], [0, 0, 1, 1], [], []>} : vector<16x8xbf16>, vector<8x32xbf16>, vector<16x32xf32> -> vector<16x32xf32>
    %157 = arith.addf %130, %156 : vector<16x32xf32>
    %c0_56 = arith.constant 0 : index
    %c0_57 = arith.constant 0 : index
    %158 = vector.load %arg6[%c0_56, %c0_57] : memref<1x32xf32, #tpu.memory_space<vmem>>, vector<1x32xf32>
    %159 = vector.shape_cast %158 : vector<1x32xf32> to vector<32xf32>
    %160 = vector.shape_cast %159 : vector<32xf32> to vector<1x32xf32>
    %161 = vector.broadcast %160 : vector<1x32xf32> to vector<16x32xf32>
    %162 = arith.addf %157, %161 : vector<16x32xf32>
    %163 = arith.addf %1, %162 : vector<16x32xf32>
    %cst_58 = arith.constant dense<0.000000e+00> : vector<16xf32>
    %164 = vector.multi_reduction <add>, %163, %cst_58 [1] : vector<16x32xf32> to vector<16xf32>
    %165 = vector.shape_cast %164 : vector<16xf32> to vector<16x1xf32>
    %cst_59 = arith.constant 3.200000e+01 : f32
    %166 = vector.broadcast %cst_59 : f32 to vector<16x1xf32>
    %167 = arith.divf %165, %166 : vector<16x1xf32>
    %168 = vector.broadcast %167 : vector<16x1xf32> to vector<16x32xf32>
    %169 = arith.subf %163, %168 : vector<16x32xf32>
    %170 = arith.mulf %169, %169 : vector<16x32xf32>
    %cst_60 = arith.constant dense<0.000000e+00> : vector<16xf32>
    %171 = vector.multi_reduction <add>, %170, %cst_60 [1] : vector<16x32xf32> to vector<16xf32>
    %172 = vector.shape_cast %171 : vector<16xf32> to vector<16x1xf32>
    %cst_61 = arith.constant 3.100000e+01 : f32
    %173 = vector.broadcast %cst_61 : f32 to vector<16x1xf32>
    %174 = arith.divf %172, %173 : vector<16x1xf32>
    %175 = math.sqrt %174 : vector<16x1xf32>
    %cst_62 = arith.constant 9.99999997E-7 : f32
    %176 = vector.broadcast %cst_62 : f32 to vector<16x1xf32>
    %177 = arith.addf %175, %176 : vector<16x1xf32>
    %178 = vector.shape_cast %10 : vector<32xf32> to vector<1x32xf32>
    %179 = vector.broadcast %178 : vector<1x32xf32> to vector<16x32xf32>
    %180 = arith.mulf %179, %169 : vector<16x32xf32>
    %181 = vector.broadcast %177 : vector<16x1xf32> to vector<16x32xf32>
    %182 = arith.divf %180, %181 : vector<16x32xf32>
    %183 = vector.shape_cast %12 : vector<32xf32> to vector<1x32xf32>
    %184 = vector.broadcast %183 : vector<1x32xf32> to vector<16x32xf32>
    %185 = arith.addf %182, %184 : vector<16x32xf32>
    %186 = arith.truncf %185 : vector<16x32xf32> to vector<16x32xbf16>
    %cst_63 = arith.constant 0.000000e+00 : f32
    %187 = vector.broadcast %cst_63 : f32 to vector<16x32xf32>
    %c0_64 = arith.constant 0 : index
    %c0_65 = arith.constant 0 : index
    %188 = vector.load %arg11[%c0_64, %c0_65] : memref<32x1024xbf16, #tpu.memory_space<vmem>>, vector<32x1024xbf16>
    %cst_66 = arith.constant dense<0.000000e+00> : vector<16x1024xf32>
    %189 = tpu.matmul %186, %188, %cst_66 {dimension_numbers = #tpu.dot_dimension_numbers<[1], [0], [0], [1], [0, 0, 1, 1], [], []>} : vector<16x32xbf16>, vector<32x1024xbf16>, vector<16x1024xf32> -> vector<16x1024xf32>
    %c0_67 = arith.constant 0 : index
    %c0_68 = arith.constant 0 : index
    %190 = vector.load %arg12[%c0_67, %c0_68] : memref<1x1024xf32, #tpu.memory_space<vmem>>, vector<1x1024xf32>
    %191 = vector.shape_cast %190 : vector<1x1024xf32> to vector<1024xf32>
    %192 = vector.shape_cast %191 : vector<1024xf32> to vector<1x1024xf32>
    %193 = vector.broadcast %192 : vector<1x1024xf32> to vector<16x1024xf32>
    %194 = arith.addf %189, %193 : vector<16x1024xf32>
    %cst_69 = arith.constant 0.000000e+00 : f32
    %195 = vector.broadcast %cst_69 : f32 to vector<16x1024xf32>
    %196 = arith.maximumf %194, %195 : vector<16x1024xf32>
    %197 = arith.truncf %196 : vector<16x1024xf32> to vector<16x1024xbf16>
    %c0_70 = arith.constant 0 : index
    %c0_71 = arith.constant 0 : index
    %198 = vector.load %arg13[%c0_70, %c0_71] : memref<1024x32xbf16, #tpu.memory_space<vmem>>, vector<1024x32xbf16>
    %cst_72 = arith.constant dense<0.000000e+00> : vector<16x32xf32>
    %199 = tpu.matmul %197, %198, %cst_72 {dimension_numbers = #tpu.dot_dimension_numbers<[1], [0], [0], [1], [0, 0, 1, 1], [], []>} : vector<16x1024xbf16>, vector<1024x32xbf16>, vector<16x32xf32> -> vector<16x32xf32>
    %200 = arith.addf %187, %199 : vector<16x32xf32>
    %c0_73 = arith.constant 0 : index
    %c0_74 = arith.constant 0 : index
    %201 = vector.load %arg14[%c0_73, %c0_74] : memref<1x32xf32, #tpu.memory_space<vmem>>, vector<1x32xf32>
    %202 = vector.shape_cast %201 : vector<1x32xf32> to vector<32xf32>
    %203 = vector.shape_cast %202 : vector<32xf32> to vector<1x32xf32>
    %204 = vector.broadcast %203 : vector<1x32xf32> to vector<16x32xf32>
    %205 = arith.addf %200, %204 : vector<16x32xf32>
    %206 = arith.addf %163, %205 : vector<16x32xf32>
    %207 = vector.shape_cast %206 : vector<16x32xf32> to vector<2x8x32xf32>
    %c0_75 = arith.constant 0 : index
    %c0_76 = arith.constant 0 : index
    %c0_77 = arith.constant 0 : index
    %208 = vector.load %arg15[%c0_75, %c0_76, %c0_77] : memref<2x8x32xf32, #tpu.memory_space<vmem>>, vector<2x8x32xf32>
    tpu.vector_store %arg15[%c0_75, %c0_76, %c0_77], %207 {strides = array<i32>} : memref<2x8x32xf32, #tpu.memory_space<vmem>>, vector<2x8x32xf32>,
    return
  }
  func.func @transform_0(%arg0: i32) -> (i32, i32, i32) {
    %c0_i32 = arith.constant 0 : i32
    %c0_i32_0 = arith.constant 0 : i32
    %c0_i32_1 = arith.constant 0 : i32
    return %arg0, %c0_i32, %c0_i32_0 : i32, i32, i32
  }
  func.func @transform_1(%arg0: i32) -> (i32, i32, i32) {
    %c0_i32 = arith.constant 0 : i32
    %c0_i32_0 = arith.constant 0 : i32
    %c0_i32_1 = arith.constant 0 : i32
    return %arg0, %c0_i32, %c0_i32_0 : i32, i32, i32
  }
  func.func @transform_2(%arg0: i32) -> (i32, i32) {
    %c0_i32 = arith.constant 0 : i32
    %c0_i32_0 = arith.constant 0 : i32
    %c0_i32_1 = arith.constant 0 : i32
    return %c0_i32, %c0_i32_0 : i32, i32
  }
  func.func @transform_3(%arg0: i32) -> (i32, i32) {
    %c0_i32 = arith.constant 0 : i32
    %c0_i32_0 = arith.constant 0 : i32
    %c0_i32_1 = arith.constant 0 : i32
    return %c0_i32, %c0_i32_0 : i32, i32
  }
  func.func @transform_4(%arg0: i32) -> (i32, i32) {
    %c0_i32 = arith.constant 0 : i32
    %c0_i32_0 = arith.constant 0 : i32
    %c0_i32_1 = arith.constant 0 : i32
    return %c0_i32, %c0_i32_0 : i32, i32
  }
  func.func @transform_5(%arg0: i32) -> (i32, i32) {
    %c0_i32 = arith.constant 0 : i32
    %c0_i32_0 = arith.constant 0 : i32
    %c0_i32_1 = arith.constant 0 : i32
    return %c0_i32, %c0_i32_0 : i32, i32
  }
  func.func @transform_6(%arg0: i32) -> (i32, i32) {
    %c0_i32 = arith.constant 0 : i32
    %c0_i32_0 = arith.constant 0 : i32
    %c0_i32_1 = arith.constant 0 : i32
    return %c0_i32, %c0_i32_0 : i32, i32
  }
  func.func @transform_7(%arg0: i32) -> (i32, i32) {
    %c0_i32 = arith.constant 0 : i32
    %c0_i32_0 = arith.constant 0 : i32
    %c0_i32_1 = arith.constant 0 : i32
    return %c0_i32, %c0_i32_0 : i32, i32
  }
  func.func @transform_8(%arg0: i32) -> (i32, i32) {
    %c0_i32 = arith.constant 0 : i32
    %c0_i32_0 = arith.constant 0 : i32
    %c0_i32_1 = arith.constant 0 : i32
    return %c0_i32, %c0_i32_0 : i32, i32
  }
  func.func @transform_9(%arg0: i32) -> (i32, i32) {
    %c0_i32 = arith.constant 0 : i32
    %c0_i32_0 = arith.constant 0 : i32
    %c0_i32_1 = arith.constant 0 : i32
    return %c0_i32, %c0_i32_0 : i32, i32
  }
  func.func @transform_10(%arg0: i32) -> (i32, i32) {
    %c0_i32 = arith.constant 0 : i32
    %c0_i32_0 = arith.constant 0 : i32
    %c0_i32_1 = arith.constant 0 : i32
    return %c0_i32, %c0_i32_0 : i32, i32
  }
  func.func @transform_11(%arg0: i32) -> (i32, i32) {
    %c0_i32 = arith.constant 0 : i32
    %c0_i32_0 = arith.constant 0 : i32
    %c0_i32_1 = arith.constant 0 : i32
    return %c0_i32, %c0_i32_0 : i32, i32
  }
  func.func @transform_12(%arg0: i32) -> (i32, i32) {
    %c0_i32 = arith.constant 0 : i32
    %c0_i32_0 = arith.constant 0 : i32
    %c0_i32_1 = arith.constant 0 : i32
    return %c0_i32, %c0_i32_0 : i32, i32
  }
  func.func @transform_13(%arg0: i32) -> (i32, i32) {
    %c0_i32 = arith.constant 0 : i32
    %c0_i32_0 = arith.constant 0 : i32
    %c0_i32_1 = arith.constant 0 : i32
    return %c0_i32, %c0_i32_0 : i32, i32
  }
  func.func @transform_14(%arg0: i32) -> (i32, i32, i32) {
    %c0_i32 = arith.constant 0 : i32
    %c0_i32_0 = arith.constant 0 : i32
    %c0_i32_1 = arith.constant 0 : i32
    return %arg0, %c0_i32, %c0_i32_0 : i32, i32, i32
  }
}

</mosaic_0001>

<llo_original>
// kernel: tpu_custom_call.1
$region0: #{tpu_custom_call.1}
  #allocation0 [shape = 'u32[]', space=smem, size = 0x4, offset = 0x4, fixed_abs, tag = 'smem constant byte address 0x4 - core index']
  #allocation1 [shape = 'u32[144,128]{1,0:T(1,128)}', space=vmem, size = 0x12000, scoped, tag = 'internal scratch']
  %s0 = inlined_call_operand.vmem [shape: f32[2,8,32], index: 0, kind: input, shape index: {}]
  %s1 = inlined_call_operand.vmem [shape: s8[2,8,8], index: 1, kind: input, shape index: {}]
  %s2 = inlined_call_operand.vmem [shape: bf16[32,96], index: 2, kind: input, shape index: {}]
  %s3 = inlined_call_operand.vmem [shape: f32[1,96], index: 3, kind: input, shape index: {}]
  %s4 = inlined_call_operand.vmem [shape: bf16[32,32], index: 4, kind: input, shape index: {}]
  %s5 = inlined_call_operand.vmem [shape: f32[1,32], index: 5, kind: input, shape index: {}]
  %s6 = inlined_call_operand.vmem [shape: f32[1,32], index: 6, kind: input, shape index: {}]
  %s7 = inlined_call_operand.vmem [shape: f32[1,32], index: 7, kind: input, shape index: {}]
  %s8 = inlined_call_operand.vmem [shape: f32[1,32], index: 8, kind: input, shape index: {}]
  %s9 = inlined_call_operand.vmem [shape: f32[1,32], index: 9, kind: input, shape index: {}]
  %s10 = inlined_call_operand.vmem [shape: bf16[32,1024], index: 10, kind: input, shape index: {}]
  %s11 = inlined_call_operand.vmem [shape: f32[1,1024], index: 11, kind: input, shape index: {}]
  %s12 = inlined_call_operand.vmem [shape: bf16[1024,32], index: 12, kind: input, shape index: {}]
  %s13 = inlined_call_operand.vmem [shape: f32[1,32], index: 13, kind: input, shape index: {}]
  %s14 = inlined_call_operand.hbm [shape: f32[2,8,32], index: 14, kind: output, shape index: {}]
  %s15 = sld [smem:[#allocation0]]
  $region66: #{tpu_custom_call.1} parent=0
    _
  %s17 = ssub.s32 1, %s15
  %s18 = scalar_select 0, %s17, %s15
  $region1: #{tpu_custom_call.1} parent=0
    #allocation2 [shape = 'u8[8192]{0}', space=vmem, size = 0x2000, scoped, tag = 'output window, operand 0, single buffered']
    #allocation3 [shape = 's32[1]{0}', space=sflag, size = 0x4, scoped, tag = 'scoped memory for tpu_custom_call.1']
    %19 = vsyncpa [#allocation3], 0
    // Predicated region
    $region2: #{tpu_custom_call.1} parent=1 // pred_check
      _
    $region3: #{tpu_custom_call.1} parent=1 // pred_check_branch
      %21 = sbr.rel (0) target = $region5
    $region4: #{tpu_custom_call.1} parent=1 // pred_region
      _
    $region5: #{tpu_custom_call.1} parent=1 // pred_fallthru
      _
    // Predicated region
    $region6: #{tpu_custom_call.1} parent=1 // pred_check
      _
    $region7: #{tpu_custom_call.1} parent=1 // pred_check_branch
      %23 = sbr.rel (0) target = $region9
    $region8: #{tpu_custom_call.1} parent=1 // pred_region
      _
    $region9: #{tpu_custom_call.1} parent=1 // pred_fallthru
      _
    // Predicated region
    $region10: #{tpu_custom_call.1} parent=1 // pred_check
      _
    $region11: #{tpu_custom_call.1} parent=1 // pred_check_branch
      %25 = sbr.rel (0) target = $region13
    $region12: #{tpu_custom_call.1} parent=1 // pred_region
      _
    $region13: #{tpu_custom_call.1} parent=1 // pred_fallthru
      _
    // Predicated region
    $region14: #{tpu_custom_call.1} parent=1 // pred_check
      _
    $region15: #{tpu_custom_call.1} parent=1 // pred_check_branch
      %27 = sbr.rel (0) target = $region17
    $region16: #{tpu_custom_call.1} parent=1 // pred_region
      _
    $region17: #{tpu_custom_call.1} parent=1 // pred_fallthru
      _
    // Predicated region
    $region18: #{tpu_custom_call.1} parent=1 // pred_check
      _
    $region19: #{tpu_custom_call.1} parent=1 // pred_check_branch
      %29 = sbr.rel (0) target = $region21
    $region20: #{tpu_custom_call.1} parent=1 // pred_region
      _
    $region21: #{tpu_custom_call.1} parent=1 // pred_fallthru
      _
    // Predicated region
    $region22: #{tpu_custom_call.1} parent=1 // pred_check
      _
    $region23: #{tpu_custom_call.1} parent=1 // pred_check_branch
      %31 = sbr.rel (0) target = $region25
    $region24: #{tpu_custom_call.1} parent=1 // pred_region
      _
    $region25: #{tpu_custom_call.1} parent=1 // pred_fallthru
      _
    // Predicated region
    $region26: #{tpu_custom_call.1} parent=1 // pred_check
      _
    $region27: #{tpu_custom_call.1} parent=1 // pred_check_branch
      %33 = sbr.rel (0) target = $region29
    $region28: #{tpu_custom_call.1} parent=1 // pred_region
      _
    $region29: #{tpu_custom_call.1} parent=1 // pred_fallthru
      _
    // Predicated region
    $region30: #{tpu_custom_call.1} parent=1 // pred_check
      _
    $region31: #{tpu_custom_call.1} parent=1 // pred_check_branch
      %35 = sbr.rel (0) target = $region33
    $region32: #{tpu_custom_call.1} parent=1 // pred_region
      _
    $region33: #{tpu_custom_call.1} parent=1 // pred_fallthru
      _
    // Predicated region
    $region34: #{tpu_custom_call.1} parent=1 // pred_check
      _
    $region35: #{tpu_custom_call.1} parent=1 // pred_check_branch
      %37 = sbr.rel (0) target = $region37
    $region36: #{tpu_custom_call.1} parent=1 // pred_region
      _
    $region37: #{tpu_custom_call.1} parent=1 // pred_fallthru
      _
    // Predicated region
    $region38: #{tpu_custom_call.1} parent=1 // pred_check
      _
    $region39: #{tpu_custom_call.1} parent=1 // pred_check_branch
      %39 = sbr.rel (0) target = $region41
    $region40: #{tpu_custom_call.1} parent=1 // pred_region
      _
    $region41: #{tpu_custom_call.1} parent=1 // pred_fallthru
      _
    // Predicated region
    $region42: #{tpu_custom_call.1} parent=1 // pred_check
      _
    $region43: #{tpu_custom_call.1} parent=1 // pred_check_branch
      %41 = sbr.rel (0) target = $region45
    $region44: #{tpu_custom_call.1} parent=1 // pred_region
      _
    $region45: #{tpu_custom_call.1} parent=1 // pred_fallthru
      _
    // Predicated region
    $region46: #{tpu_custom_call.1} parent=1 // pred_check
      _
    $region47: #{tpu_custom_call.1} parent=1 // pred_check_branch
      %43 = sbr.rel (0) target = $region49
    $region48: #{tpu_custom_call.1} parent=1 // pred_region
      _
    $region49: #{tpu_custom_call.1} parent=1 // pred_fallthru
      _
    // Predicated region
    $region50: #{tpu_custom_call.1} parent=1 // pred_check
      _
    $region51: #{tpu_custom_call.1} parent=1 // pred_check_branch
      %45 = sbr.rel (0) target = $region53
    $region52: #{tpu_custom_call.1} parent=1 // pred_region
      _
    $region53: #{tpu_custom_call.1} parent=1 // pred_fallthru
      _
    // Predicated region
    $region54: #{tpu_custom_call.1} parent=1 // pred_check
      _
    $region55: #{tpu_custom_call.1} parent=1 // pred_check_branch
      %47 = sbr.rel (0) target = $region57
    $region56: #{tpu_custom_call.1} parent=1 // pred_region
      _
    $region57: #{tpu_custom_call.1} parent=1 // pred_fallthru
      _
    %v51 = vld [vmem:[%s0] sm:$0xff]
    %v52 = vld [vmem:[%s0 + $0x8] sm:$0xff]
    %v53 = vld [vmem:[%s1] sm:$0x3]
    %v54 = vld [vmem:[%s1 + $0x2] sm:$0x3]
    %vm55 = vnez %v53
    %vm56 = vnez %v54
    %v57 = vld [vmem:[%s6] sm:$0x1]
    %v58 = vld [vmem:[%s7] sm:$0x1]
    %v59 = vld [vmem:[%s8] sm:$0x1]
    %v60 = vld [vmem:[%s9] sm:$0x1]
    %vm61 = vcmask 261120
    %v62 = vsel %vm61, %v51, 0.0
    %63 = vadd.xlane.f32.xlu0 %v62
    %v64 = vpop.xlane.xlu0 %63
    %v65 = vsel %vm61, %v52, 0.0
    %66 = vadd.xlane.f32.xlu0 %v65
    %v67 = vpop.xlane.xlu0 %66
    %v68 = vrcp.pop 32.0
    %v69 = vmul.f32 %v64, %v68
    %v70 = vmul.f32 %v67, %v68
    %v71 = vsub.f32 %v51, %v69
    %v72 = vsub.f32 %v52, %v70
    %v73 = vmul.f32 %v71, %v71
    %v74 = vmul.f32 %v72, %v72
    %v75 = vsel %vm61, %v73, 0.0
    %76 = vadd.xlane.f32.xlu0 %v75
    %v77 = vpop.xlane.xlu0 %76
    %v78 = vsel %vm61, %v74, 0.0
    %79 = vadd.xlane.f32.xlu0 %v78
    %v80 = vpop.xlane.xlu0 %79
    %v81 = vrcp.pop 31.0
    %v82 = vmul.f32 %v77, %v81
    %v83 = vmul.f32 %v80, %v81
    %v84 = vrsqrt.pop %v82
    %v85 = vmul.f32 %v82, %v84
    %vm86 = vcmp.eq.f32.partialorder %v82, inf
    %v87 = vsel %vm86, %v82, %v85
    %vm88 = vcmp.eq.f32.partialorder %v82, 0.0
    %v89 = vand.u32 %v82, 2147483648
    %v90 = vsel %vm88, %v89, %v87
    %v91 = vrsqrt.pop %v83
    %v92 = vmul.f32 %v83, %v91
    %vm93 = vcmp.eq.f32.partialorder %v83, inf
    %v94 = vsel %vm93, %v83, %v92
    %vm95 = vcmp.eq.f32.partialorder %v83, 0.0
    %v96 = vand.u32 %v83, 2147483648
    %v97 = vsel %vm95, %v96, %v94
    %v98 = vadd.f32 %v90, 1e-06
    %v99 = vadd.f32 %v97, 1e-06
    %v101 = vlaneseq
    %v102 = vshrl.u32 %v101, 7
    %v103 = vsub.s32 0, %v102
    %v104 = vrot.slane %v57, %v103
    %v106 = vmul.f32 %v104, %v71
    %v107 = vmul.f32 %v104, %v72
    %v108 = vrcp.pop %v98
    %v109 = vmul.f32 %v106, %v108
    %v110 = vrcp.pop %v99
    %v111 = vmul.f32 %v107, %v110
    %v113 = vlaneseq
    %v114 = vshrl.u32 %v113, 7
    %v115 = vsub.s32 0, %v114
    %v116 = vrot.slane %v58, %v115
    %v118 = vadd.f32 %v109, %v116
    %v119 = vadd.f32 %v111, %v116
    %v120 = vpack.c.bf16 %v119, %v118
    %v121 = vld [vmem:[%s2] sm:$0xf]
    %v122 = vld [vmem:[%s2 + $0x4] sm:$0xf]
    %v123 = vld [vmem:[%s2 + $0x8] sm:$0xf]
    %v124 = vld [vmem:[%s2 + $0xc] sm:$0xf]
    %v125 = vld [vmem:[%s3] sm:$0x1]
    %v127 = vlaneseq
    %v128 = vshrl.u32 %v127, 7
    %v129 = vsub.s32 0, %v128
    %v130 = vrot.slane %v125, %v129
    %v136 = vunpack.c.l.b16 %v121
    %v137 = vunpack.c.l.b16 %v122
    %v138 = vunpack.c.l.b16 %v123
    %v139 = vunpack.c.l.b16 %v124
    %v140 = vpack.c.b16 %v137, %v136
    %v141 = vpack.c.b16 %v139, %v138
    %v145 = vsel %vm61, %v120, 0
    %147 = vmatprep.subr.bf16.mxu0 0
    %148 = vmatpush1.bf16.msra.mxu0 %v140
    %149 = vmatprep.subr.bf16.mxu0 0
    %150 = vmatpush1.bf16.msra.mxu0 %v141
    %151 = vmatprep.subr.bf16.mxu0 0
    %152 = vmatpush1.bf16.msra.mxu0 0
    %153 = vmatprep.subr.bf16.mxu0 0
    %154 = vmatpush1.bf16.msra.mxu0 0
    %155 = vmatprep.subr.bf16.mxu0 0
    %156 = vmatpush1.bf16.msra.mxu0 0
    %157 = vmatprep.subr.bf16.mxu0 0
    %158 = vmatpush1.bf16.msra.mxu0 0
    %159 = vmatprep.subr.bf16.mxu0 0
    %160 = vmatpush1.bf16.msra.mxu0 0
    %161 = vmatprep.subr.bf16.mxu0 0
    %162 = vmatpush1.bf16.msra.mxu0 0
    %163 = vmatprep.subr.bf16.mxu0 0
    %164 = vmatpush1.bf16.msra.mxu0 0
    %165 = vmatprep.subr.bf16.mxu0 0
    %166 = vmatpush1.bf16.msra.mxu0 0
    %167 = vmatprep.subr.bf16.mxu0 0
    %168 = vmatpush1.bf16.msra.mxu0 0
    %169 = vmatprep.subr.bf16.mxu0 0
    %170 = vmatpush1.bf16.msra.mxu0 0
    %171 = vmatprep.subr.bf16.mxu0 0
    %172 = vmatpush1.bf16.msra.mxu0 0
    %173 = vmatprep.subr.bf16.mxu0 0
    %174 = vmatpush1.bf16.msra.mxu0 0
    %175 = vmatprep.subr.bf16.mxu0 0
    %176 = vmatpush1.bf16.msra.mxu0 0
    %177 = vmatprep.subr.bf16.mxu0 0
    %178 = vmatpush1.bf16.msra.mxu0 0
    %179 = vmatprep.mubr.bf16.mxu0 0
    %180 = vmatmul.mubr.bf16.gmra.mrb[0].mxu0 %v145
    %v181 = vpop.f32.mrb[0].mxu0
    %v182 = vadd.f32 %v130, %v181
    %v183 = vpop.f32.mrb[0].mxu0
    %v184 = vpop.f32.mrb[0].mxu0
    %v185 = vadd.f32 %v130, %v184
    %v186 = vpop.f32.mrb[0].mxu0
    %187 = vdwg.mxu0
    %v188 = vpack.c.bf16 %v185, %v182
    %v190 = vunpack.c.l.b16 %v188
    %v191 = vunpack.c.h.b16 %v188
    %v192 = vpack.c.b16 %v190, %v190
    %v193 = vpack.c.b16 %v191, %v191
    %194 = vrot.lane.b32.xlu0 %v192, 96
    %v195 = vpop.permute.xlu0 %194
    %vm196 = vcmask 64512
    %v198 = vsel %vm196, %v192, 0
    %v201 = vsel %vm196, %v195, 0
    %203 = vmatprep.subr.bf16.mxu0 0
    %204 = vmatpush1.bf16.xpose.msra.mxu0 %v201
    %205 = vmatprep.subr.bf16.mxu0 0
    %206 = vmatpush1.bf16.xpose.msra.mxu0 0
    %207 = vmatprep.subr.bf16.mxu0 0
    %208 = vmatpush1.bf16.xpose.msra.mxu0 0
    %209 = vmatprep.subr.bf16.mxu0 0
    %210 = vmatpush1.bf16.xpose.msra.mxu0 0
    %211 = vmatprep.subr.bf16.mxu0 0
    %212 = vmatpush1.bf16.xpose.msra.mxu0 0
    %213 = vmatprep.subr.bf16.mxu0 0
    %214 = vmatpush1.bf16.xpose.msra.mxu0 0
    %215 = vmatprep.subr.bf16.mxu0 0
    %216 = vmatpush1.bf16.xpose.msra.mxu0 0
    %217 = vmatprep.subr.bf16.mxu0 0
    %218 = vmatpush1.bf16.xpose.msra.mxu0 0
    %219 = vmatprep.subr.bf16.mxu0 0
    %220 = vmatpush1.bf16.xpose.msra.mxu0 0
    %221 = vmatprep.subr.bf16.mxu0 0
    %222 = vmatpush1.bf16.xpose.msra.mxu0 0
    %223 = vmatprep.subr.bf16.mxu0 0
    %224 = vmatpush1.bf16.xpose.msra.mxu0 0
    %225 = vmatprep.subr.bf16.mxu0 0
    %226 = vmatpush1.bf16.xpose.msra.mxu0 0
    %227 = vmatprep.subr.bf16.mxu0 0
    %228 = vmatpush1.bf16.xpose.msra.mxu0 0
    %229 = vmatprep.subr.bf16.mxu0 0
    %230 = vmatpush1.bf16.xpose.msra.mxu0 0
    %231 = vmatprep.subr.bf16.mxu0 0
    %232 = vmatpush1.bf16.xpose.msra.mxu0 0
    %233 = vmatprep.subr.bf16.mxu0 0
    %234 = vmatpush1.bf16.xpose.msra.mxu0 0
    %235 = vmatprep.mubr.bf16.mxu0 0
    %236 = vmatmul.mubr.bf16.gmra.mrb[0].mxu0 %v198
    %v237 = vpop.f32.mrb[0].mxu0
    %v238 = vadd.f32 0.0, %v237
    %v239 = vpop.f32.mrb[0].mxu0
    %v240 = vpop.f32.mrb[0].mxu0
    %v241 = vpop.f32.mrb[0].mxu0
    %242 = vdwg.mxu0
    %243 = vrot.lane.b32.xlu0 %v193, 96
    %v244 = vpop.permute.xlu0 %243
    %v246 = vsel %vm196, %v193, 0
    %v249 = vsel %vm196, %v244, 0
    %251 = vmatprep.subr.bf16.mxu0 0
    %252 = vmatpush1.bf16.xpose.msra.mxu0 %v249
    %253 = vmatprep.subr.bf16.mxu0 0
    %254 = vmatpush1.bf16.xpose.msra.mxu0 0
    %255 = vmatprep.subr.bf16.mxu0 0
    %256 = vmatpush1.bf16.xpose.msra.mxu0 0
    %257 = vmatprep.subr.bf16.mxu0 0
    %258 = vmatpush1.bf16.xpose.msra.mxu0 0
    %259 = vmatprep.subr.bf16.mxu0 0
    %260 = vmatpush1.bf16.xpose.msra.mxu0 0
    %261 = vmatprep.subr.bf16.mxu0 0
    %262 = vmatpush1.bf16.xpose.msra.mxu0 0
    %263 = vmatprep.subr.bf16.mxu0 0
    %264 = vmatpush1.bf16.xpose.msra.mxu0 0
    %265 = vmatprep.subr.bf16.mxu0 0
    %266 = vmatpush1.bf16.xpose.msra.mxu0 0
    %267 = vmatprep.subr.bf16.mxu0 0
    %268 = vmatpush1.bf16.xpose.msra.mxu0 0
    %269 = vmatprep.subr.bf16.mxu0 0
    %270 = vmatpush1.bf16.xpose.msra.mxu0 0
    %271 = vmatprep.subr.bf16.mxu0 0
    %272 = vmatpush1.bf16.xpose.msra.mxu0 0
    %273 = vmatprep.subr.bf16.mxu0 0
    %274 = vmatpush1.bf16.xpose.msra.mxu0 0
    %275 = vmatprep.subr.bf16.mxu0 0
    %276 = vmatpush1.bf16.xpose.msra.mxu0 0
    %277 = vmatprep.subr.bf16.mxu0 0
    %278 = vmatpush1.bf16.xpose.msra.mxu0 0
    %279 = vmatprep.subr.bf16.mxu0 0
    %280 = vmatpush1.bf16.xpose.msra.mxu0 0
    %281 = vmatprep.subr.bf16.mxu0 0
    %282 = vmatpush1.bf16.xpose.msra.mxu0 0
    %283 = vmatprep.mubr.bf16.mxu0 0
    %284 = vmatmul.mubr.bf16.gmra.mrb[0].mxu0 %v246
    %v285 = vpop.f32.mrb[0].mxu0
    %v286 = vadd.f32 0.0, %v285
    %v287 = vpop.f32.mrb[0].mxu0
    %v288 = vpop.f32.mrb[0].mxu0
    %v289 = vpop.f32.mrb[0].mxu0
    %290 = vdwg.mxu0
    %v291 = vmul.f32 %v238, 0.35355338
    %v292 = vmul.f32 %v286, 0.35355338
    %v293 = vsel %vm55, 16843009, 0
    %v294 = vsel %vm56, 16843009, 0
    %v295 = vunpack.c.0.s8 %v293
    %v296 = vunpack.c.0.s8 %v294
    %vm297 = vcmp.ne.s32.totalorder %v295, 0
    %vm298 = vcmp.ne.s32.totalorder %v296, 0
    %v299 = vsel %vm297, %v291, -1e+09
    %v300 = vsel %vm298, %v292, -1e+09
    %v301 = vsel %vm196, %v299, -inf
    %302 = vmax.xlane.f32.xlu0 %v301
    %v303 = vpop.xlane.xlu0 %302
    %v304 = vsel %vm196, %v300, -inf
    %305 = vmax.xlane.f32.xlu0 %v304
    %v306 = vpop.xlane.xlu0 %305
    %v307 = vsub.f32 %v299, %v303
    %v308 = vsub.f32 %v300, %v306
    %v309 = vmul.f32 %v307, 1.442695
    %v310 = vpow.pop %v309
    %v311 = vmul.f32 %v308, 1.442695
    %v312 = vpow.pop %v311
    %v313 = vsel %vm196, %v310, 0.0
    %314 = vadd.xlane.f32.xlu0 %v313
    %v315 = vpop.xlane.xlu0 %314
    %v316 = vsel %vm196, %v312, 0.0
    %317 = vadd.xlane.f32.xlu0 %v316
    %v318 = vpop.xlane.xlu0 %317
    %v319 = vrcp.pop %v315
    %v320 = vmul.f32 %v310, %v319
    %v321 = vrcp.pop %v318
    %v322 = vmul.f32 %v312, %v321
    %v323 = vpack.c.bf16 %v320, %v320
    %v324 = vpack.c.bf16 %v322, %v322
    %325 = vrot.lane.b32.xlu0 %v192, 64
    %v326 = vpop.permute.xlu0 %325
    %v328 = vsel %vm196, %v323, 0
    %vm330 = vcmask 1043456
    %v332 = vsel %vm330, %v326, 0
    %334 = vmatprep.subr.bf16.mxu0 0
    %335 = vmatpush1.bf16.msra.mxu0 %v332
    %336 = vmatprep.subr.bf16.mxu0 0
    %337 = vmatpush1.bf16.msra.mxu0 0
    %338 = vmatprep.subr.bf16.mxu0 0
    %339 = vmatpush1.bf16.msra.mxu0 0
    %340 = vmatprep.subr.bf16.mxu0 0
    %341 = vmatpush1.bf16.msra.mxu0 0
    %342 = vmatprep.subr.bf16.mxu0 0
    %343 = vmatpush1.bf16.msra.mxu0 0
    %344 = vmatprep.subr.bf16.mxu0 0
    %345 = vmatpush1.bf16.msra.mxu0 0
    %346 = vmatprep.subr.bf16.mxu0 0
    %347 = vmatpush1.bf16.msra.mxu0 0
    %348 = vmatprep.subr.bf16.mxu0 0
    %349 = vmatpush1.bf16.msra.mxu0 0
    %350 = vmatprep.subr.bf16.mxu0 0
    %351 = vmatpush1.bf16.msra.mxu0 0
    %352 = vmatprep.subr.bf16.mxu0 0
    %353 = vmatpush1.bf16.msra.mxu0 0
    %354 = vmatprep.subr.bf16.mxu0 0
    %355 = vmatpush1.bf16.msra.mxu0 0
    %356 = vmatprep.subr.bf16.mxu0 0
    %357 = vmatpush1.bf16.msra.mxu0 0
    %358 = vmatprep.subr.bf16.mxu0 0
    %359 = vmatpush1.bf16.msra.mxu0 0
    %360 = vmatprep.subr.bf16.mxu0 0
    %361 = vmatpush1.bf16.msra.mxu0 0
    %362 = vmatprep.subr.bf16.mxu0 0
    %363 = vmatpush1.bf16.msra.mxu0 0
    %364 = vmatprep.subr.bf16.mxu0 0
    %365 = vmatpush1.bf16.msra.mxu0 0
    %366 = vmatprep.mubr.bf16.mxu0 0
    %367 = vmatmul.mubr.bf16.gmra.mrb[0].mxu0 %v328
    %v368 = vpop.f32.mrb[0].mxu0
    %v369 = vadd.f32 0.0, %v368
    %v370 = vpop.f32.mrb[0].mxu0
    %v371 = vpop.f32.mrb[0].mxu0
    %v372 = vpop.f32.mrb[0].mxu0
    %373 = vdwg.mxu0
    %374 = vrot.lane.b32.xlu0 %v193, 64
    %v375 = vpop.permute.xlu0 %374
    %v377 = vsel %vm196, %v324, 0
    %v380 = vsel %vm330, %v375, 0
    %382 = vmatprep.subr.bf16.mxu0 0
    %383 = vmatpush1.bf16.msra.mxu0 %v380
    %384 = vmatprep.subr.bf16.mxu0 0
    %385 = vmatpush1.bf16.msra.mxu0 0
    %386 = vmatprep.subr.bf16.mxu0 0
    %387 = vmatpush1.bf16.msra.mxu0 0
    %388 = vmatprep.subr.bf16.mxu0 0
    %389 = vmatpush1.bf16.msra.mxu0 0
    %390 = vmatprep.subr.bf16.mxu0 0
    %391 = vmatpush1.bf16.msra.mxu0 0
    %392 = vmatprep.subr.bf16.mxu0 0
    %393 = vmatpush1.bf16.msra.mxu0 0
    %394 = vmatprep.subr.bf16.mxu0 0
    %395 = vmatpush1.bf16.msra.mxu0 0
    %396 = vmatprep.subr.bf16.mxu0 0
    %397 = vmatpush1.bf16.msra.mxu0 0
    %398 = vmatprep.subr.bf16.mxu0 0
    %399 = vmatpush1.bf16.msra.mxu0 0
    %400 = vmatprep.subr.bf16.mxu0 0
    %401 = vmatpush1.bf16.msra.mxu0 0
    %402 = vmatprep.subr.bf16.mxu0 0
    %403 = vmatpush1.bf16.msra.mxu0 0
    %404 = vmatprep.subr.bf16.mxu0 0
    %405 = vmatpush1.bf16.msra.mxu0 0
    %406 = vmatprep.subr.bf16.mxu0 0
    %407 = vmatpush1.bf16.msra.mxu0 0
    %408 = vmatprep.subr.bf16.mxu0 0
    %409 = vmatpush1.bf16.msra.mxu0 0
    %410 = vmatprep.subr.bf16.mxu0 0
    %411 = vmatpush1.bf16.msra.mxu0 0
    %412 = vmatprep.subr.bf16.mxu0 0
    %413 = vmatpush1.bf16.msra.mxu0 0
    %414 = vmatprep.mubr.bf16.mxu0 0
    %415 = vmatmul.mubr.bf16.gmra.mrb[0].mxu0 %v377
    %v416 = vpop.f32.mrb[0].mxu0
    %v417 = vadd.f32 0.0, %v416
    %v418 = vpop.f32.mrb[0].mxu0
    %v419 = vpop.f32.mrb[0].mxu0
    %v420 = vpop.f32.mrb[0].mxu0
    %421 = vdwg.mxu0
    %v422 = vpack.c.bf16 %v417, %v369
    %v423 = vld [vmem:[%s4] sm:$0xf]
    %424 = vrot.lane.b32.xlu0 %v192, 120
    %v425 = vpop.permute.xlu0 %424
    %426 = vrot.lane.b32.xlu0 %v192, 88
    %v427 = vpop.permute.xlu0 %426
    %v429 = vsel %vm196, %v425, 0
    %v432 = vsel %vm196, %v427, 0
    %434 = vmatprep.subr.bf16.mxu0 0
    %435 = vmatpush1.bf16.xpose.msra.mxu0 %v432
    %436 = vmatprep.subr.bf16.mxu0 0
    %437 = vmatpush1.bf16.xpose.msra.mxu0 0
    %438 = vmatprep.subr.bf16.mxu0 0
    %439 = vmatpush1.bf16.xpose.msra.mxu0 0
    %440 = vmatprep.subr.bf16.mxu0 0
    %441 = vmatpush1.bf16.xpose.msra.mxu0 0
    %442 = vmatprep.subr.bf16.mxu0 0
    %443 = vmatpush1.bf16.xpose.msra.mxu0 0
    %444 = vmatprep.subr.bf16.mxu0 0
    %445 = vmatpush1.bf16.xpose.msra.mxu0 0
    %446 = vmatprep.subr.bf16.mxu0 0
    %447 = vmatpush1.bf16.xpose.msra.mxu0 0
    %448 = vmatprep.subr.bf16.mxu0 0
    %449 = vmatpush1.bf16.xpose.msra.mxu0 0
    %450 = vmatprep.subr.bf16.mxu0 0
    %451 = vmatpush1.bf16.xpose.msra.mxu0 0
    %452 = vmatprep.subr.bf16.mxu0 0
    %453 = vmatpush1.bf16.xpose.msra.mxu0 0
    %454 = vmatprep.subr.bf16.mxu0 0
    %455 = vmatpush1.bf16.xpose.msra.mxu0 0
    %456 = vmatprep.subr.bf16.mxu0 0
    %457 = vmatpush1.bf16.xpose.msra.mxu0 0
    %458 = vmatprep.subr.bf16.mxu0 0
    %459 = vmatpush1.bf16.xpose.msra.mxu0 0
    %460 = vmatprep.subr.bf16.mxu0 0
    %461 = vmatpush1.bf16.xpose.msra.mxu0 0
    %462 = vmatprep.subr.bf16.mxu0 0
    %463 = vmatpush1.bf16.xpose.msra.mxu0 0
    %464 = vmatprep.subr.bf16.mxu0 0
    %465 = vmatpush1.bf16.xpose.msra.mxu0 0
    %466 = vmatprep.mubr.bf16.mxu0 0
    %467 = vmatmul.mubr.bf16.gmra.mrb[0].mxu0 %v429
    %v468 = vpop.f32.mrb[0].mxu0
    %v469 = vadd.f32 0.0, %v468
    %v470 = vpop.f32.mrb[0].mxu0
    %v471 = vpop.f32.mrb[0].mxu0
    %v472 = vpop.f32.mrb[0].mxu0
    %473 = vdwg.mxu0
    %474 = vrot.lane.b32.xlu0 %v193, 120
    %v475 = vpop.permute.xlu0 %474
    %476 = vrot.lane.b32.xlu0 %v193, 88
    %v477 = vpop.permute.xlu0 %476
    %v479 = vsel %vm196, %v475, 0
    %v482 = vsel %vm196, %v477, 0
    %484 = vmatprep.subr.bf16.mxu0 0
    %485 = vmatpush1.bf16.xpose.msra.mxu0 %v482
    %486 = vmatprep.subr.bf16.mxu0 0
    %487 = vmatpush1.bf16.xpose.msra.mxu0 0
    %488 = vmatprep.subr.bf16.mxu0 0
    %489 = vmatpush1.bf16.xpose.msra.mxu0 0
    %490 = vmatprep.subr.bf16.mxu0 0
    %491 = vmatpush1.bf16.xpose.msra.mxu0 0
    %492 = vmatprep.subr.bf16.mxu0 0
    %493 = vmatpush1.bf16.xpose.msra.mxu0 0
    %494 = vmatprep.subr.bf16.mxu0 0
    %495 = vmatpush1.bf16.xpose.msra.mxu0 0
    %496 = vmatprep.subr.bf16.mxu0 0
    %497 = vmatpush1.bf16.xpose.msra.mxu0 0
    %498 = vmatprep.subr.bf16.mxu0 0
    %499 = vmatpush1.bf16.xpose.msra.mxu0 0
    %500 = vmatprep.subr.bf16.mxu0 0
    %501 = vmatpush1.bf16.xpose.msra.mxu0 0
    %502 = vmatprep.subr.bf16.mxu0 0
    %503 = vmatpush1.bf16.xpose.msra.mxu0 0
    %504 = vmatprep.subr.bf16.mxu0 0
    %505 = vmatpush1.bf16.xpose.msra.mxu0 0
    %506 = vmatprep.subr.bf16.mxu0 0
    %507 = vmatpush1.bf16.xpose.msra.mxu0 0
    %508 = vmatprep.subr.bf16.mxu0 0
    %509 = vmatpush1.bf16.xpose.msra.mxu0 0
    %510 = vmatprep.subr.bf16.mxu0 0
    %511 = vmatpush1.bf16.xpose.msra.mxu0 0
    %512 = vmatprep.subr.bf16.mxu0 0
    %513 = vmatpush1.bf16.xpose.msra.mxu0 0
    %514 = vmatprep.subr.bf16.mxu0 0
    %515 = vmatpush1.bf16.xpose.msra.mxu0 0
    %516 = vmatprep.mubr.bf16.mxu0 0
    %517 = vmatmul.mubr.bf16.gmra.mrb[0].mxu0 %v479
    %v518 = vpop.f32.mrb[0].mxu0
    %v519 = vadd.f32 0.0, %v518
    %v520 = vpop.f32.mrb[0].mxu0
    %v521 = vpop.f32.mrb[0].mxu0
    %v522 = vpop.f32.mrb[0].mxu0
    %523 = vdwg.mxu0
    %v524 = vmul.f32 %v469, 0.35355338
    %v525 = vmul.f32 %v519, 0.35355338
    %v526 = vsel %vm297, %v524, -1e+09
    %v527 = vsel %vm298, %v525, -1e+09
    %v528 = vsel %vm196, %v526, -inf
    %529 = vmax.xlane.f32.xlu0 %v528
    %v530 = vpop.xlane.xlu0 %529
    %v531 = vsel %vm196, %v527, -inf
    %532 = vmax.xlane.f32.xlu0 %v531
    %v533 = vpop.xlane.xlu0 %532
    %v534 = vsub.f32 %v526, %v530
    %v535 = vsub.f32 %v527, %v533
    %v536 = vmul.f32 %v534, 1.442695
    %v537 = vpow.pop %v536
    %v538 = vmul.f32 %v535, 1.442695
    %v539 = vpow.pop %v538
    %v540 = vsel %vm196, %v537, 0.0
    %541 = vadd.xlane.f32.xlu0 %v540
    %v542 = vpop.xlane.xlu0 %541
    %v543 = vsel %vm196, %v539, 0.0
    %544 = vadd.xlane.f32.xlu0 %v543
    %v545 = vpop.xlane.xlu0 %544
    %v546 = vrcp.pop %v542
    %v547 = vmul.f32 %v537, %v546
    %v548 = vrcp.pop %v545
    %v549 = vmul.f32 %v539, %v548
    %v550 = vpack.c.bf16 %v547, %v547
    %v551 = vpack.c.bf16 %v549, %v549
    %552 = vrot.lane.b32.xlu0 %v192, 56
    %v553 = vpop.permute.xlu0 %552
    %v555 = vsel %vm196, %v550, 0
    %v558 = vsel %vm330, %v553, 0
    %560 = vmatprep.subr.bf16.mxu0 0
    %561 = vmatpush1.bf16.msra.mxu0 %v558
    %562 = vmatprep.subr.bf16.mxu0 0
    %563 = vmatpush1.bf16.msra.mxu0 0
    %564 = vmatprep.subr.bf16.mxu0 0
    %565 = vmatpush1.bf16.msra.mxu0 0
    %566 = vmatprep.subr.bf16.mxu0 0
    %567 = vmatpush1.bf16.msra.mxu0 0
    %568 = vmatprep.subr.bf16.mxu0 0
    %569 = vmatpush1.bf16.msra.mxu0 0
    %570 = vmatprep.subr.bf16.mxu0 0
    %571 = vmatpush1.bf16.msra.mxu0 0
    %572 = vmatprep.subr.bf16.mxu0 0
    %573 = vmatpush1.bf16.msra.mxu0 0
    %574 = vmatprep.subr.bf16.mxu0 0
    %575 = vmatpush1.bf16.msra.mxu0 0
    %576 = vmatprep.subr.bf16.mxu0 0
    %577 = vmatpush1.bf16.msra.mxu0 0
    %578 = vmatprep.subr.bf16.mxu0 0
    %579 = vmatpush1.bf16.msra.mxu0 0
    %580 = vmatprep.subr.bf16.mxu0 0
    %581 = vmatpush1.bf16.msra.mxu0 0
    %582 = vmatprep.subr.bf16.mxu0 0
    %583 = vmatpush1.bf16.msra.mxu0 0
    %584 = vmatprep.subr.bf16.mxu0 0
    %585 = vmatpush1.bf16.msra.mxu0 0
    %586 = vmatprep.subr.bf16.mxu0 0
    %587 = vmatpush1.bf16.msra.mxu0 0
    %588 = vmatprep.subr.bf16.mxu0 0
    %589 = vmatpush1.bf16.msra.mxu0 0
    %590 = vmatprep.subr.bf16.mxu0 0
    %591 = vmatpush1.bf16.msra.mxu0 0
    %592 = vmatprep.mubr.bf16.mxu0 0
    %593 = vmatmul.mubr.bf16.gmra.mrb[0].mxu0 %v555
    %v594 = vpop.f32.mrb[0].mxu0
    %v595 = vadd.f32 0.0, %v594
    %v596 = vpop.f32.mrb[0].mxu0
    %v597 = vpop.f32.mrb[0].mxu0
    %v598 = vpop.f32.mrb[0].mxu0
    %599 = vdwg.mxu0
    %600 = vrot.lane.b32.xlu0 %v193, 56
    %v601 = vpop.permute.xlu0 %600
    %v603 = vsel %vm196, %v551, 0
    %v606 = vsel %vm330, %v601, 0
    %608 = vmatprep.subr.bf16.mxu0 0
    %609 = vmatpush1.bf16.msra.mxu0 %v606
    %610 = vmatprep.subr.bf16.mxu0 0
    %611 = vmatpush1.bf16.msra.mxu0 0
    %612 = vmatprep.subr.bf16.mxu0 0
    %613 = vmatpush1.bf16.msra.mxu0 0
    %614 = vmatprep.subr.bf16.mxu0 0
    %615 = vmatpush1.bf16.msra.mxu0 0
    %616 = vmatprep.subr.bf16.mxu0 0
    %617 = vmatpush1.bf16.msra.mxu0 0
    %618 = vmatprep.subr.bf16.mxu0 0
    %619 = vmatpush1.bf16.msra.mxu0 0
    %620 = vmatprep.subr.bf16.mxu0 0
    %621 = vmatpush1.bf16.msra.mxu0 0
    %622 = vmatprep.subr.bf16.mxu0 0
    %623 = vmatpush1.bf16.msra.mxu0 0
    %624 = vmatprep.subr.bf16.mxu0 0
    %625 = vmatpush1.bf16.msra.mxu0 0
    %626 = vmatprep.subr.bf16.mxu0 0
    %627 = vmatpush1.bf16.msra.mxu0 0
    %628 = vmatprep.subr.bf16.mxu0 0
    %629 = vmatpush1.bf16.msra.mxu0 0
    %630 = vmatprep.subr.bf16.mxu0 0
    %631 = vmatpush1.bf16.msra.mxu0 0
    %632 = vmatprep.subr.bf16.mxu0 0
    %633 = vmatpush1.bf16.msra.mxu0 0
    %634 = vmatprep.subr.bf16.mxu0 0
    %635 = vmatpush1.bf16.msra.mxu0 0
    %636 = vmatprep.subr.bf16.mxu0 0
    %637 = vmatpush1.bf16.msra.mxu0 0
    %638 = vmatprep.subr.bf16.mxu0 0
    %639 = vmatpush1.bf16.msra.mxu0 0
    %640 = vmatprep.mubr.bf16.mxu0 0
    %641 = vmatmul.mubr.bf16.gmra.mrb[0].mxu0 %v603
    %v642 = vpop.f32.mrb[0].mxu0
    %v643 = vadd.f32 0.0, %v642
    %v644 = vpop.f32.mrb[0].mxu0
    %v645 = vpop.f32.mrb[0].mxu0
    %v646 = vpop.f32.mrb[0].mxu0
    %647 = vdwg.mxu0
    %v648 = vpack.c.bf16 %v643, %v595
    %v649 = vld [vmem:[%s4 + $0x4] sm:$0xf]
    %v651 = vsel %vm196, %v648, 0
    %v654 = vsel %vm330, %v649, 0
    %656 = vmatprep.subr.bf16.mxu0 0
    %657 = vmatpush1.bf16.msra.mxu0 %v654
    %658 = vmatprep.subr.bf16.mxu0 0
    %659 = vmatpush1.bf16.msra.mxu0 0
    %660 = vmatprep.subr.bf16.mxu0 0
    %661 = vmatpush1.bf16.msra.mxu0 0
    %662 = vmatprep.subr.bf16.mxu0 0
    %663 = vmatpush1.bf16.msra.mxu0 0
    %664 = vmatprep.subr.bf16.mxu0 0
    %665 = vmatpush1.bf16.msra.mxu0 0
    %666 = vmatprep.subr.bf16.mxu0 0
    %667 = vmatpush1.bf16.msra.mxu0 0
    %668 = vmatprep.subr.bf16.mxu0 0
    %669 = vmatpush1.bf16.msra.mxu0 0
    %670 = vmatprep.subr.bf16.mxu0 0
    %671 = vmatpush1.bf16.msra.mxu0 0
    %672 = vmatprep.subr.bf16.mxu0 0
    %673 = vmatpush1.bf16.msra.mxu0 0
    %674 = vmatprep.subr.bf16.mxu0 0
    %675 = vmatpush1.bf16.msra.mxu0 0
    %676 = vmatprep.subr.bf16.mxu0 0
    %677 = vmatpush1.bf16.msra.mxu0 0
    %678 = vmatprep.subr.bf16.mxu0 0
    %679 = vmatpush1.bf16.msra.mxu0 0
    %680 = vmatprep.subr.bf16.mxu0 0
    %681 = vmatpush1.bf16.msra.mxu0 0
    %682 = vmatprep.subr.bf16.mxu0 0
    %683 = vmatpush1.bf16.msra.mxu0 0
    %684 = vmatprep.subr.bf16.mxu0 0
    %685 = vmatpush1.bf16.msra.mxu0 0
    %686 = vmatprep.subr.bf16.mxu0 0
    %687 = vmatpush1.bf16.msra.mxu0 0
    %688 = vmatprep.mubr.bf16.mxu0 0
    %689 = vmatmul.mubr.bf16.gmra.mrb[0].mxu0 %v651
    %v690 = vpop.f32.mrb[0].mxu0
    %v691 = vadd.f32 0.0, %v690
    %v692 = vpop.f32.mrb[0].mxu0
    %v693 = vpop.f32.mrb[0].mxu0
    %v694 = vadd.f32 0.0, %v693
    %v695 = vpop.f32.mrb[0].mxu0
    %696 = vdwg.mxu0
    %v698 = vsel %vm196, %v422, 0
    %v701 = vsel %vm330, %v423, 0
    %703 = vmatprep.subr.bf16.mxu0 0
    %704 = vmatpush1.bf16.msra.mxu0 %v701
    %705 = vmatprep.subr.bf16.mxu0 0
    %706 = vmatpush1.bf16.msra.mxu0 0
    %707 = vmatprep.subr.bf16.mxu0 0
    %708 = vmatpush1.bf16.msra.mxu0 0
    %709 = vmatprep.subr.bf16.mxu0 0
    %710 = vmatpush1.bf16.msra.mxu0 0
    %711 = vmatprep.subr.bf16.mxu0 0
    %712 = vmatpush1.bf16.msra.mxu0 0
    %713 = vmatprep.subr.bf16.mxu0 0
    %714 = vmatpush1.bf16.msra.mxu0 0
    %715 = vmatprep.subr.bf16.mxu0 0
    %716 = vmatpush1.bf16.msra.mxu0 0
    %717 = vmatprep.subr.bf16.mxu0 0
    %718 = vmatpush1.bf16.msra.mxu0 0
    %719 = vmatprep.subr.bf16.mxu0 0
    %720 = vmatpush1.bf16.msra.mxu0 0
    %721 = vmatprep.subr.bf16.mxu0 0
    %722 = vmatpush1.bf16.msra.mxu0 0
    %723 = vmatprep.subr.bf16.mxu0 0
    %724 = vmatpush1.bf16.msra.mxu0 0
    %725 = vmatprep.subr.bf16.mxu0 0
    %726 = vmatpush1.bf16.msra.mxu0 0
    %727 = vmatprep.subr.bf16.mxu0 0
    %728 = vmatpush1.bf16.msra.mxu0 0
    %729 = vmatprep.subr.bf16.mxu0 0
    %730 = vmatpush1.bf16.msra.mxu0 0
    %731 = vmatprep.subr.bf16.mxu0 0
    %732 = vmatpush1.bf16.msra.mxu0 0
    %733 = vmatprep.subr.bf16.mxu0 0
    %734 = vmatpush1.bf16.msra.mxu0 0
    %735 = vmatprep.mubr.bf16.mxu0 0
    %736 = vmatmul.mubr.bf16.gmra.mrb[0].mxu0 %v698
    %v737 = vpop.f32.mrb[0].mxu0
    %v738 = vadd.f32 %v691, %v737
    %v739 = vpop.f32.mrb[0].mxu0
    %v740 = vpop.f32.mrb[0].mxu0
    %v741 = vadd.f32 %v694, %v740
    %v742 = vpop.f32.mrb[0].mxu0
    %743 = vdwg.mxu0
    %744 = vrot.lane.b32.xlu0 %v192, 112
    %v745 = vpop.permute.xlu0 %744
    %746 = vrot.lane.b32.xlu0 %v192, 80
    %v747 = vpop.permute.xlu0 %746
    %v749 = vsel %vm196, %v745, 0
    %v752 = vsel %vm196, %v747, 0
    %754 = vmatprep.subr.bf16.mxu0 0
    %755 = vmatpush1.bf16.xpose.msra.mxu0 %v752
    %756 = vmatprep.subr.bf16.mxu0 0
    %757 = vmatpush1.bf16.xpose.msra.mxu0 0
    %758 = vmatprep.subr.bf16.mxu0 0
    %759 = vmatpush1.bf16.xpose.msra.mxu0 0
    %760 = vmatprep.subr.bf16.mxu0 0
    %761 = vmatpush1.bf16.xpose.msra.mxu0 0
    %762 = vmatprep.subr.bf16.mxu0 0
    %763 = vmatpush1.bf16.xpose.msra.mxu0 0
    %764 = vmatprep.subr.bf16.mxu0 0
    %765 = vmatpush1.bf16.xpose.msra.mxu0 0
    %766 = vmatprep.subr.bf16.mxu0 0
    %767 = vmatpush1.bf16.xpose.msra.mxu0 0
    %768 = vmatprep.subr.bf16.mxu0 0
    %769 = vmatpush1.bf16.xpose.msra.mxu0 0
    %770 = vmatprep.subr.bf16.mxu0 0
    %771 = vmatpush1.bf16.xpose.msra.mxu0 0
    %772 = vmatprep.subr.bf16.mxu0 0
    %773 = vmatpush1.bf16.xpose.msra.mxu0 0
    %774 = vmatprep.subr.bf16.mxu0 0
    %775 = vmatpush1.bf16.xpose.msra.mxu0 0
    %776 = vmatprep.subr.bf16.mxu0 0
    %777 = vmatpush1.bf16.xpose.msra.mxu0 0
    %778 = vmatprep.subr.bf16.mxu0 0
    %779 = vmatpush1.bf16.xpose.msra.mxu0 0
    %780 = vmatprep.subr.bf16.mxu0 0
    %781 = vmatpush1.bf16.xpose.msra.mxu0 0
    %782 = vmatprep.subr.bf16.mxu0 0
    %783 = vmatpush1.bf16.xpose.msra.mxu0 0
    %784 = vmatprep.subr.bf16.mxu0 0
    %785 = vmatpush1.bf16.xpose.msra.mxu0 0
    %786 = vmatprep.mubr.bf16.mxu0 0
    %787 = vmatmul.mubr.bf16.gmra.mrb[0].mxu0 %v749
    %v788 = vpop.f32.mrb[0].mxu0
    %v789 = vadd.f32 0.0, %v788
    %v790 = vpop.f32.mrb[0].mxu0
    %v791 = vpop.f32.mrb[0].mxu0
    %v792 = vpop.f32.mrb[0].mxu0
    %793 = vdwg.mxu0
    %794 = vrot.lane.b32.xlu0 %v193, 112
    %v795 = vpop.permute.xlu0 %794
    %796 = vrot.lane.b32.xlu0 %v193, 80
    %v797 = vpop.permute.xlu0 %796
    %v799 = vsel %vm196, %v795, 0
    %v802 = vsel %vm196, %v797, 0
    %804 = vmatprep.subr.bf16.mxu0 0
    %805 = vmatpush1.bf16.xpose.msra.mxu0 %v802
    %806 = vmatprep.subr.bf16.mxu0 0
    %807 = vmatpush1.bf16.xpose.msra.mxu0 0
    %808 = vmatprep.subr.bf16.mxu0 0
    %809 = vmatpush1.bf16.xpose.msra.mxu0 0
    %810 = vmatprep.subr.bf16.mxu0 0
    %811 = vmatpush1.bf16.xpose.msra.mxu0 0
    %812 = vmatprep.subr.bf16.mxu0 0
    %813 = vmatpush1.bf16.xpose.msra.mxu0 0
    %814 = vmatprep.subr.bf16.mxu0 0
    %815 = vmatpush1.bf16.xpose.msra.mxu0 0
    %816 = vmatprep.subr.bf16.mxu0 0
    %817 = vmatpush1.bf16.xpose.msra.mxu0 0
    %818 = vmatprep.subr.bf16.mxu0 0
    %819 = vmatpush1.bf16.xpose.msra.mxu0 0
    %820 = vmatprep.subr.bf16.mxu0 0
    %821 = vmatpush1.bf16.xpose.msra.mxu0 0
    %822 = vmatprep.subr.bf16.mxu0 0
    %823 = vmatpush1.bf16.xpose.msra.mxu0 0
    %824 = vmatprep.subr.bf16.mxu0 0
    %825 = vmatpush1.bf16.xpose.msra.mxu0 0
    %826 = vmatprep.subr.bf16.mxu0 0
    %827 = vmatpush1.bf16.xpose.msra.mxu0 0
    %828 = vmatprep.subr.bf16.mxu0 0
    %829 = vmatpush1.bf16.xpose.msra.mxu0 0
    %830 = vmatprep.subr.bf16.mxu0 0
    %831 = vmatpush1.bf16.xpose.msra.mxu0 0
    %832 = vmatprep.subr.bf16.mxu0 0
    %833 = vmatpush1.bf16.xpose.msra.mxu0 0
    %834 = vmatprep.subr.bf16.mxu0 0
    %835 = vmatpush1.bf16.xpose.msra.mxu0 0
    %836 = vmatprep.mubr.bf16.mxu0 0
    %837 = vmatmul.mubr.bf16.gmra.mrb[0].mxu0 %v799
    %v838 = vpop.f32.mrb[0].mxu0
    %v839 = vadd.f32 0.0, %v838
    %v840 = vpop.f32.mrb[0].mxu0
    %v841 = vpop.f32.mrb[0].mxu0
    %v842 = vpop.f32.mrb[0].mxu0
    %843 = vdwg.mxu0
    %v844 = vmul.f32 %v789, 0.35355338
    %v845 = vmul.f32 %v839, 0.35355338
    %v846 = vsel %vm297, %v844, -1e+09
    %v847 = vsel %vm298, %v845, -1e+09
    %v848 = vsel %vm196, %v846, -inf
    %849 = vmax.xlane.f32.xlu0 %v848
    %v850 = vpop.xlane.xlu0 %849
    %v851 = vsel %vm196, %v847, -inf
    %852 = vmax.xlane.f32.xlu0 %v851
    %v853 = vpop.xlane.xlu0 %852
    %v854 = vsub.f32 %v846, %v850
    %v855 = vsub.f32 %v847, %v853
    %v856 = vmul.f32 %v854, 1.442695
    %v857 = vpow.pop %v856
    %v858 = vmul.f32 %v855, 1.442695
    %v859 = vpow.pop %v858
    %v860 = vsel %vm196, %v857, 0.0
    %861 = vadd.xlane.f32.xlu0 %v860
    %v862 = vpop.xlane.xlu0 %861
    %v863 = vsel %vm196, %v859, 0.0
    %864 = vadd.xlane.f32.xlu0 %v863
    %v865 = vpop.xlane.xlu0 %864
    %v866 = vrcp.pop %v862
    %v867 = vmul.f32 %v857, %v866
    %v868 = vrcp.pop %v865
    %v869 = vmul.f32 %v859, %v868
    %v870 = vpack.c.bf16 %v867, %v867
    %v871 = vpack.c.bf16 %v869, %v869
    %872 = vrot.lane.b32.xlu0 %v192, 48
    %v873 = vpop.permute.xlu0 %872
    %v875 = vsel %vm196, %v870, 0
    %v878 = vsel %vm330, %v873, 0
    %880 = vmatprep.subr.bf16.mxu0 0
    %881 = vmatpush1.bf16.msra.mxu0 %v878
    %882 = vmatprep.subr.bf16.mxu0 0
    %883 = vmatpush1.bf16.msra.mxu0 0
    %884 = vmatprep.subr.bf16.mxu0 0
    %885 = vmatpush1.bf16.msra.mxu0 0
    %886 = vmatprep.subr.bf16.mxu0 0
    %887 = vmatpush1.bf16.msra.mxu0 0
    %888 = vmatprep.subr.bf16.mxu0 0
    %889 = vmatpush1.bf16.msra.mxu0 0
    %890 = vmatprep.subr.bf16.mxu0 0
    %891 = vmatpush1.bf16.msra.mxu0 0
    %892 = vmatprep.subr.bf16.mxu0 0
    %893 = vmatpush1.bf16.msra.mxu0 0
    %894 = vmatprep.subr.bf16.mxu0 0
    %895 = vmatpush1.bf16.msra.mxu0 0
    %896 = vmatprep.subr.bf16.mxu0 0
    %897 = vmatpush1.bf16.msra.mxu0 0
    %898 = vmatprep.subr.bf16.mxu0 0
    %899 = vmatpush1.bf16.msra.mxu0 0
    %900 = vmatprep.subr.bf16.mxu0 0
    %901 = vmatpush1.bf16.msra.mxu0 0
    %902 = vmatprep.subr.bf16.mxu0 0
    %903 = vmatpush1.bf16.msra.mxu0 0
    %904 = vmatprep.subr.bf16.mxu0 0
    %905 = vmatpush1.bf16.msra.mxu0 0
    %906 = vmatprep.subr.bf16.mxu0 0
    %907 = vmatpush1.bf16.msra.mxu0 0
    %908 = vmatprep.subr.bf16.mxu0 0
    %909 = vmatpush1.bf16.msra.mxu0 0
    %910 = vmatprep.subr.bf16.mxu0 0
    %911 = vmatpush1.bf16.msra.mxu0 0
    %912 = vmatprep.mubr.bf16.mxu0 0
    %913 = vmatmul.mubr.bf16.gmra.mrb[0].mxu0 %v875
    %v914 = vpop.f32.mrb[0].mxu0
    %v915 = vadd.f32 0.0, %v914
    %v916 = vpop.f32.mrb[0].mxu0
    %v917 = vpop.f32.mrb[0].mxu0
    %v918 = vpop.f32.mrb[0].mxu0
    %919 = vdwg.mxu0
    %920 = vrot.lane.b32.xlu0 %v193, 48
    %v921 = vpop.permute.xlu0 %920
    %v923 = vsel %vm196, %v871, 0
    %v926 = vsel %vm330, %v921, 0
    %928 = vmatprep.subr.bf16.mxu0 0
    %929 = vmatpush1.bf16.msra.mxu0 %v926
    %930 = vmatprep.subr.bf16.mxu0 0
    %931 = vmatpush1.bf16.msra.mxu0 0
    %932 = vmatprep.subr.bf16.mxu0 0
    %933 = vmatpush1.bf16.msra.mxu0 0
    %934 = vmatprep.subr.bf16.mxu0 0
    %935 = vmatpush1.bf16.msra.mxu0 0
    %936 = vmatprep.subr.bf16.mxu0 0
    %937 = vmatpush1.bf16.msra.mxu0 0
    %938 = vmatprep.subr.bf16.mxu0 0
    %939 = vmatpush1.bf16.msra.mxu0 0
    %940 = vmatprep.subr.bf16.mxu0 0
    %941 = vmatpush1.bf16.msra.mxu0 0
    %942 = vmatprep.subr.bf16.mxu0 0
    %943 = vmatpush1.bf16.msra.mxu0 0
    %944 = vmatprep.subr.bf16.mxu0 0
    %945 = vmatpush1.bf16.msra.mxu0 0
    %946 = vmatprep.subr.bf16.mxu0 0
    %947 = vmatpush1.bf16.msra.mxu0 0
    %948 = vmatprep.subr.bf16.mxu0 0
    %949 = vmatpush1.bf16.msra.mxu0 0
    %950 = vmatprep.subr.bf16.mxu0 0
    %951 = vmatpush1.bf16.msra.mxu0 0
    %952 = vmatprep.subr.bf16.mxu0 0
    %953 = vmatpush1.bf16.msra.mxu0 0
    %954 = vmatprep.subr.bf16.mxu0 0
    %955 = vmatpush1.bf16.msra.mxu0 0
    %956 = vmatprep.subr.bf16.mxu0 0
    %957 = vmatpush1.bf16.msra.mxu0 0
    %958 = vmatprep.subr.bf16.mxu0 0
    %959 = vmatpush1.bf16.msra.mxu0 0
    %960 = vmatprep.mubr.bf16.mxu0 0
    %961 = vmatmul.mubr.bf16.gmra.mrb[0].mxu0 %v923
    %v962 = vpop.f32.mrb[0].mxu0
    %v963 = vadd.f32 0.0, %v962
    %v964 = vpop.f32.mrb[0].mxu0
    %v965 = vpop.f32.mrb[0].mxu0
    %v966 = vpop.f32.mrb[0].mxu0
    %967 = vdwg.mxu0
    %v968 = vpack.c.bf16 %v963, %v915
    %v969 = vld [vmem:[%s4 + $0x8] sm:$0xf]
    %v971 = vsel %vm196, %v968, 0
    %v974 = vsel %vm330, %v969, 0
    %976 = vmatprep.subr.bf16.mxu0 0
    %977 = vmatpush1.bf16.msra.mxu0 %v974
    %978 = vmatprep.subr.bf16.mxu0 0
    %979 = vmatpush1.bf16.msra.mxu0 0
    %980 = vmatprep.subr.bf16.mxu0 0
    %981 = vmatpush1.bf16.msra.mxu0 0
    %982 = vmatprep.subr.bf16.mxu0 0
    %983 = vmatpush1.bf16.msra.mxu0 0
    %984 = vmatprep.subr.bf16.mxu0 0
    %985 = vmatpush1.bf16.msra.mxu0 0
    %986 = vmatprep.subr.bf16.mxu0 0
    %987 = vmatpush1.bf16.msra.mxu0 0
    %988 = vmatprep.subr.bf16.mxu0 0
    %989 = vmatpush1.bf16.msra.mxu0 0
    %990 = vmatprep.subr.bf16.mxu0 0
    %991 = vmatpush1.bf16.msra.mxu0 0
    %992 = vmatprep.subr.bf16.mxu0 0
    %993 = vmatpush1.bf16.msra.mxu0 0
    %994 = vmatprep.subr.bf16.mxu0 0
    %995 = vmatpush1.bf16.msra.mxu0 0
    %996 = vmatprep.subr.bf16.mxu0 0
    %997 = vmatpush1.bf16.msra.mxu0 0
    %998 = vmatprep.subr.bf16.mxu0 0
    %999 = vmatpush1.bf16.msra.mxu0 0
    %1000 = vmatprep.subr.bf16.mxu0 0
    %1001 = vmatpush1.bf16.msra.mxu0 0
    %1002 = vmatprep.subr.bf16.mxu0 0
    %1003 = vmatpush1.bf16.msra.mxu0 0
    %1004 = vmatprep.subr.bf16.mxu0 0
    %1005 = vmatpush1.bf16.msra.mxu0 0
    %1006 = vmatprep.subr.bf16.mxu0 0
    %1007 = vmatpush1.bf16.msra.mxu0 0
    %1008 = vmatprep.mubr.bf16.mxu0 0
    %1009 = vmatmul.mubr.bf16.gmra.mrb[0].mxu0 %v971
    %v1010 = vpop.f32.mrb[0].mxu0
    %v1011 = vadd.f32 0.0, %v1010
    %v1012 = vpop.f32.mrb[0].mxu0
    %v1013 = vpop.f32.mrb[0].mxu0
    %v1014 = vadd.f32 0.0, %v1013
    %v1015 = vpop.f32.mrb[0].mxu0
    %1016 = vdwg.mxu0
    %v1017 = vadd.f32 %v738, %v1011
    %v1018 = vadd.f32 %v741, %v1014
    %1019 = vrot.lane.b32.xlu0 %v192, 104
    %v1020 = vpop.permute.xlu0 %1019
    %1021 = vrot.lane.b32.xlu0 %v192, 72
    %v1022 = vpop.permute.xlu0 %1021
    %v1024 = vsel %vm196, %v1020, 0
    %v1027 = vsel %vm196, %v1022, 0
    %1029 = vmatprep.subr.bf16.mxu0 0
    %1030 = vmatpush1.bf16.xpose.msra.mxu0 %v1027
    %1031 = vmatprep.subr.bf16.mxu0 0
    %1032 = vmatpush1.bf16.xpose.msra.mxu0 0
    %1033 = vmatprep.subr.bf16.mxu0 0
    %1034 = vmatpush1.bf16.xpose.msra.mxu0 0
    %1035 = vmatprep.subr.bf16.mxu0 0
    %1036 = vmatpush1.bf16.xpose.msra.mxu0 0
    %1037 = vmatprep.subr.bf16.mxu0 0
    %1038 = vmatpush1.bf16.xpose.msra.mxu0 0
    %1039 = vmatprep.subr.bf16.mxu0 0
    %1040 = vmatpush1.bf16.xpose.msra.mxu0 0
    %1041 = vmatprep.subr.bf16.mxu0 0
    %1042 = vmatpush1.bf16.xpose.msra.mxu0 0
    %1043 = vmatprep.subr.bf16.mxu0 0
    %1044 = vmatpush1.bf16.xpose.msra.mxu0 0
    %1045 = vmatprep.subr.bf16.mxu0 0
    %1046 = vmatpush1.bf16.xpose.msra.mxu0 0
    %1047 = vmatprep.subr.bf16.mxu0 0
    %1048 = vmatpush1.bf16.xpose.msra.mxu0 0
    %1049 = vmatprep.subr.bf16.mxu0 0
    %1050 = vmatpush1.bf16.xpose.msra.mxu0 0
    %1051 = vmatprep.subr.bf16.mxu0 0
    %1052 = vmatpush1.bf16.xpose.msra.mxu0 0
    %1053 = vmatprep.subr.bf16.mxu0 0
    %1054 = vmatpush1.bf16.xpose.msra.mxu0 0
    %1055 = vmatprep.subr.bf16.mxu0 0
    %1056 = vmatpush1.bf16.xpose.msra.mxu0 0
    %1057 = vmatprep.subr.bf16.mxu0 0
    %1058 = vmatpush1.bf16.xpose.msra.mxu0 0
    %1059 = vmatprep.subr.bf16.mxu0 0
    %1060 = vmatpush1.bf16.xpose.msra.mxu0 0
    %1061 = vmatprep.mubr.bf16.mxu0 0
    %1062 = vmatmul.mubr.bf16.gmra.mrb[0].mxu0 %v1024
    %v1063 = vpop.f32.mrb[0].mxu0
    %v1064 = vadd.f32 0.0, %v1063
    %v1065 = vpop.f32.mrb[0].mxu0
    %v1066 = vpop.f32.mrb[0].mxu0
    %v1067 = vpop.f32.mrb[0].mxu0
    %1068 = vdwg.mxu0
    %1069 = vrot.lane.b32.xlu0 %v193, 104
    %v1070 = vpop.permute.xlu0 %1069
    %1071 = vrot.lane.b32.xlu0 %v193, 72
    %v1072 = vpop.permute.xlu0 %1071
    %v1074 = vsel %vm196, %v1070, 0
    %v1077 = vsel %vm196, %v1072, 0
    %1079 = vmatprep.subr.bf16.mxu0 0
    %1080 = vmatpush1.bf16.xpose.msra.mxu0 %v1077
    %1081 = vmatprep.subr.bf16.mxu0 0
    %1082 = vmatpush1.bf16.xpose.msra.mxu0 0
    %1083 = vmatprep.subr.bf16.mxu0 0
    %1084 = vmatpush1.bf16.xpose.msra.mxu0 0
    %1085 = vmatprep.subr.bf16.mxu0 0
    %1086 = vmatpush1.bf16.xpose.msra.mxu0 0
    %1087 = vmatprep.subr.bf16.mxu0 0
    %1088 = vmatpush1.bf16.xpose.msra.mxu0 0
    %1089 = vmatprep.subr.bf16.mxu0 0
    %1090 = vmatpush1.bf16.xpose.msra.mxu0 0
    %1091 = vmatprep.subr.bf16.mxu0 0
    %1092 = vmatpush1.bf16.xpose.msra.mxu0 0
    %1093 = vmatprep.subr.bf16.mxu0 0
    %1094 = vmatpush1.bf16.xpose.msra.mxu0 0
    %1095 = vmatprep.subr.bf16.mxu0 0
    %1096 = vmatpush1.bf16.xpose.msra.mxu0 0
    %1097 = vmatprep.subr.bf16.mxu0 0
    %1098 = vmatpush1.bf16.xpose.msra.mxu0 0
    %1099 = vmatprep.subr.bf16.mxu0 0
    %1100 = vmatpush1.bf16.xpose.msra.mxu0 0
    %1101 = vmatprep.subr.bf16.mxu0 0
    %1102 = vmatpush1.bf16.xpose.msra.mxu0 0
    %1103 = vmatprep.subr.bf16.mxu0 0
    %1104 = vmatpush1.bf16.xpose.msra.mxu0 0
    %1105 = vmatprep.subr.bf16.mxu0 0
    %1106 = vmatpush1.bf16.xpose.msra.mxu0 0
    %1107 = vmatprep.subr.bf16.mxu0 0
    %1108 = vmatpush1.bf16.xpose.msra.mxu0 0
    %1109 = vmatprep.subr.bf16.mxu0 0
    %1110 = vmatpush1.bf16.xpose.msra.mxu0 0
    %1111 = vmatprep.mubr.bf16.mxu0 0
    %1112 = vmatmul.mubr.bf16.gmra.mrb[0].mxu0 %v1074
    %v1113 = vpop.f32.mrb[0].mxu0
    %v1114 = vadd.f32 0.0, %v1113
    %v1115 = vpop.f32.mrb[0].mxu0
    %v1116 = vpop.f32.mrb[0].mxu0
    %v1117 = vpop.f32.mrb[0].mxu0
    %1118 = vdwg.mxu0
    %v1119 = vmul.f32 %v1064, 0.35355338
    %v1120 = vmul.f32 %v1114, 0.35355338
    %v1121 = vsel %vm297, %v1119, -1e+09
    %v1122 = vsel %vm298, %v1120, -1e+09
    %v1123 = vsel %vm196, %v1121, -inf
    %1124 = vmax.xlane.f32.xlu0 %v1123
    %v1125 = vpop.xlane.xlu0 %1124
    %v1126 = vsel %vm196, %v1122, -inf
    %1127 = vmax.xlane.f32.xlu0 %v1126
    %v1128 = vpop.xlane.xlu0 %1127
    %v1129 = vsub.f32 %v1121, %v1125
    %v1130 = vsub.f32 %v1122, %v1128
    %v1131 = vmul.f32 %v1129, 1.442695
    %v1132 = vpow.pop %v1131
    %v1133 = vmul.f32 %v1130, 1.442695
    %v1134 = vpow.pop %v1133
    %v1135 = vsel %vm196, %v1132, 0.0
    %1136 = vadd.xlane.f32.xlu0 %v1135
    %v1137 = vpop.xlane.xlu0 %1136
    %v1138 = vsel %vm196, %v1134, 0.0
    %1139 = vadd.xlane.f32.xlu0 %v1138
    %v1140 = vpop.xlane.xlu0 %1139
    %v1141 = vrcp.pop %v1137
    %v1142 = vmul.f32 %v1132, %v1141
    %v1143 = vrcp.pop %v1140
    %v1144 = vmul.f32 %v1134, %v1143
    %v1145 = vpack.c.bf16 %v1142, %v1142
    %v1146 = vpack.c.bf16 %v1144, %v1144
    %1147 = vrot.lane.b32.xlu0 %v192, 40
    %v1148 = vpop.permute.xlu0 %1147
    %v1150 = vsel %vm196, %v1145, 0
    %v1153 = vsel %vm330, %v1148, 0
    %1155 = vmatprep.subr.bf16.mxu0 0
    %1156 = vmatpush1.bf16.msra.mxu0 %v1153
    %1157 = vmatprep.subr.bf16.mxu0 0
    %1158 = vmatpush1.bf16.msra.mxu0 0
    %1159 = vmatprep.subr.bf16.mxu0 0
    %1160 = vmatpush1.bf16.msra.mxu0 0
    %1161 = vmatprep.subr.bf16.mxu0 0
    %1162 = vmatpush1.bf16.msra.mxu0 0
    %1163 = vmatprep.subr.bf16.mxu0 0
    %1164 = vmatpush1.bf16.msra.mxu0 0
    %1165 = vmatprep.subr.bf16.mxu0 0
    %1166 = vmatpush1.bf16.msra.mxu0 0
    %1167 = vmatprep.subr.bf16.mxu0 0
    %1168 = vmatpush1.bf16.msra.mxu0 0
    %1169 = vmatprep.subr.bf16.mxu0 0
    %1170 = vmatpush1.bf16.msra.mxu0 0
    %1171 = vmatprep.subr.bf16.mxu0 0
    %1172 = vmatpush1.bf16.msra.mxu0 0
    %1173 = vmatprep.subr.bf16.mxu0 0
    %1174 = vmatpush1.bf16.msra.mxu0 0
    %1175 = vmatprep.subr.bf16.mxu0 0
    %1176 = vmatpush1.bf16.msra.mxu0 0
    %1177 = vmatprep.subr.bf16.mxu0 0
    %1178 = vmatpush1.bf16.msra.mxu0 0
    %1179 = vmatprep.subr.bf16.mxu0 0
    %1180 = vmatpush1.bf16.msra.mxu0 0
    %1181 = vmatprep.subr.bf16.mxu0 0
    %1182 = vmatpush1.bf16.msra.mxu0 0
    %1183 = vmatprep.subr.bf16.mxu0 0
    %1184 = vmatpush1.bf16.msra.mxu0 0
    %1185 = vmatprep.subr.bf16.mxu0 0
    %1186 = vmatpush1.bf16.msra.mxu0 0
    %1187 = vmatprep.mubr.bf16.mxu0 0
    %1188 = vmatmul.mubr.bf16.gmra.mrb[0].mxu0 %v1150
    %v1189 = vpop.f32.mrb[0].mxu0
    %v1190 = vadd.f32 0.0, %v1189
    %v1191 = vpop.f32.mrb[0].mxu0
    %v1192 = vpop.f32.mrb[0].mxu0
    %v1193 = vpop.f32.mrb[0].mxu0
    %1194 = vdwg.mxu0
    %1195 = vrot.lane.b32.xlu0 %v193, 40
    %v1196 = vpop.permute.xlu0 %1195
    %v1198 = vsel %vm196, %v1146, 0
    %v1201 = vsel %vm330, %v1196, 0
    %1203 = vmatprep.subr.bf16.mxu0 0
    %1204 = vmatpush1.bf16.msra.mxu0 %v1201
    %1205 = vmatprep.subr.bf16.mxu0 0
    %1206 = vmatpush1.bf16.msra.mxu0 0
    %1207 = vmatprep.subr.bf16.mxu0 0
    %1208 = vmatpush1.bf16.msra.mxu0 0
    %1209 = vmatprep.subr.bf16.mxu0 0
    %1210 = vmatpush1.bf16.msra.mxu0 0
    %1211 = vmatprep.subr.bf16.mxu0 0
    %1212 = vmatpush1.bf16.msra.mxu0 0
    %1213 = vmatprep.subr.bf16.mxu0 0
    %1214 = vmatpush1.bf16.msra.mxu0 0
    %1215 = vmatprep.subr.bf16.mxu0 0
    %1216 = vmatpush1.bf16.msra.mxu0 0
    %1217 = vmatprep.subr.bf16.mxu0 0
    %1218 = vmatpush1.bf16.msra.mxu0 0
    %1219 = vmatprep.subr.bf16.mxu0 0
    %1220 = vmatpush1.bf16.msra.mxu0 0
    %1221 = vmatprep.subr.bf16.mxu0 0
    %1222 = vmatpush1.bf16.msra.mxu0 0
    %1223 = vmatprep.subr.bf16.mxu0 0
    %1224 = vmatpush1.bf16.msra.mxu0 0
    %1225 = vmatprep.subr.bf16.mxu0 0
    %1226 = vmatpush1.bf16.msra.mxu0 0
    %1227 = vmatprep.subr.bf16.mxu0 0
    %1228 = vmatpush1.bf16.msra.mxu0 0
    %1229 = vmatprep.subr.bf16.mxu0 0
    %1230 = vmatpush1.bf16.msra.mxu0 0
    %1231 = vmatprep.subr.bf16.mxu0 0
    %1232 = vmatpush1.bf16.msra.mxu0 0
    %1233 = vmatprep.subr.bf16.mxu0 0
    %1234 = vmatpush1.bf16.msra.mxu0 0
    %1235 = vmatprep.mubr.bf16.mxu0 0
    %1236 = vmatmul.mubr.bf16.gmra.mrb[0].mxu0 %v1198
    %v1237 = vpop.f32.mrb[0].mxu0
    %v1238 = vadd.f32 0.0, %v1237
    %v1239 = vpop.f32.mrb[0].mxu0
    %v1240 = vpop.f32.mrb[0].mxu0
    %v1241 = vpop.f32.mrb[0].mxu0
    %1242 = vdwg.mxu0
    %v1243 = vpack.c.bf16 %v1238, %v1190
    %v1244 = vld [vmem:[%s4 + $0xc] sm:$0xf]
    %v1246 = vsel %vm196, %v1243, 0
    %v1249 = vsel %vm330, %v1244, 0
    %1251 = vmatprep.subr.bf16.mxu0 0
    %1252 = vmatpush1.bf16.msra.mxu0 %v1249
    %1253 = vmatprep.subr.bf16.mxu0 0
    %1254 = vmatpush1.bf16.msra.mxu0 0
    %1255 = vmatprep.subr.bf16.mxu0 0
    %1256 = vmatpush1.bf16.msra.mxu0 0
    %1257 = vmatprep.subr.bf16.mxu0 0
    %1258 = vmatpush1.bf16.msra.mxu0 0
    %1259 = vmatprep.subr.bf16.mxu0 0
    %1260 = vmatpush1.bf16.msra.mxu0 0
    %1261 = vmatprep.subr.bf16.mxu0 0
    %1262 = vmatpush1.bf16.msra.mxu0 0
    %1263 = vmatprep.subr.bf16.mxu0 0
    %1264 = vmatpush1.bf16.msra.mxu0 0
    %1265 = vmatprep.subr.bf16.mxu0 0
    %1266 = vmatpush1.bf16.msra.mxu0 0
    %1267 = vmatprep.subr.bf16.mxu0 0
    %1268 = vmatpush1.bf16.msra.mxu0 0
    %1269 = vmatprep.subr.bf16.mxu0 0
    %1270 = vmatpush1.bf16.msra.mxu0 0
    %1271 = vmatprep.subr.bf16.mxu0 0
    %1272 = vmatpush1.bf16.msra.mxu0 0
    %1273 = vmatprep.subr.bf16.mxu0 0
    %1274 = vmatpush1.bf16.msra.mxu0 0
    %1275 = vmatprep.subr.bf16.mxu0 0
    %1276 = vmatpush1.bf16.msra.mxu0 0
    %1277 = vmatprep.subr.bf16.mxu0 0
    %1278 = vmatpush1.bf16.msra.mxu0 0
    %1279 = vmatprep.subr.bf16.mxu0 0
    %1280 = vmatpush1.bf16.msra.mxu0 0
    %1281 = vmatprep.subr.bf16.mxu0 0
    %1282 = vmatpush1.bf16.msra.mxu0 0
    %1283 = vmatprep.mubr.bf16.mxu0 0
    %1284 = vmatmul.mubr.bf16.gmra.mrb[0].mxu0 %v1246
    %v1285 = vpop.f32.mrb[0].mxu0
    %v1286 = vadd.f32 0.0, %v1285
    %v1287 = vpop.f32.mrb[0].mxu0
    %v1288 = vpop.f32.mrb[0].mxu0
    %v1289 = vadd.f32 0.0, %v1288
    %v1290 = vpop.f32.mrb[0].mxu0
    %1291 = vdwg.mxu0
    %v1292 = vadd.f32 %v1017, %v1286
    %v1293 = vadd.f32 %v1018, %v1289
    %v1294 = vld [vmem:[%s5] sm:$0x1]
    %v1296 = vlaneseq
    %v1297 = vshrl.u32 %v1296, 7
    %v1298 = vsub.s32 0, %v1297
    %v1299 = vrot.slane %v1294, %v1298
    %v1301 = vadd.f32 %v1292, %v1299
    %v1302 = vadd.f32 %v1293, %v1299
    %v1303 = vadd.f32 %v51, %v1301
    %v1304 = vadd.f32 %v52, %v1302
    %v1305 = vsel %vm61, %v1303, 0.0
    %1306 = vadd.xlane.f32.xlu0 %v1305
    %v1307 = vpop.xlane.xlu0 %1306
    %v1308 = vsel %vm61, %v1304, 0.0
    %1309 = vadd.xlane.f32.xlu0 %v1308
    %v1310 = vpop.xlane.xlu0 %1309
    %v1311 = vmul.f32 %v1307, %v68
    %v1312 = vmul.f32 %v1310, %v68
    %v1313 = vsub.f32 %v1303, %v1311
    %v1314 = vsub.f32 %v1304, %v1312
    %v1315 = vmul.f32 %v1313, %v1313
    %v1316 = vmul.f32 %v1314, %v1314
    %v1317 = vsel %vm61, %v1315, 0.0
    %1318 = vadd.xlane.f32.xlu0 %v1317
    %v1319 = vpop.xlane.xlu0 %1318
    %v1320 = vsel %vm61, %v1316, 0.0
    %1321 = vadd.xlane.f32.xlu0 %v1320
    %v1322 = vpop.xlane.xlu0 %1321
    %v1323 = vmul.f32 %v1319, %v81
    %v1324 = vmul.f32 %v1322, %v81
    %v1325 = vrsqrt.pop %v1323
    %v1326 = vmul.f32 %v1323, %v1325
    %vm1327 = vcmp.eq.f32.partialorder %v1323, inf
    %v1328 = vsel %vm1327, %v1323, %v1326
    %vm1329 = vcmp.eq.f32.partialorder %v1323, 0.0
    %v1330 = vand.u32 %v1323, 2147483648
    %v1331 = vsel %vm1329, %v1330, %v1328
    %v1332 = vrsqrt.pop %v1324
    %v1333 = vmul.f32 %v1324, %v1332
    %vm1334 = vcmp.eq.f32.partialorder %v1324, inf
    %v1335 = vsel %vm1334, %v1324, %v1333
    %vm1336 = vcmp.eq.f32.partialorder %v1324, 0.0
    %v1337 = vand.u32 %v1324, 2147483648
    %v1338 = vsel %vm1336, %v1337, %v1335
    %v1339 = vadd.f32 %v1331, 1e-06
    %v1340 = vadd.f32 %v1338, 1e-06
    %v1342 = vlaneseq
    %v1343 = vshrl.u32 %v1342, 7
    %v1344 = vsub.s32 0, %v1343
    %v1345 = vrot.slane %v59, %v1344
    %v1347 = vmul.f32 %v1345, %v1313
    %v1348 = vmul.f32 %v1345, %v1314
    %v1349 = vrcp.pop %v1339
    %v1350 = vmul.f32 %v1347, %v1349
    %v1351 = vrcp.pop %v1340
    %v1352 = vmul.f32 %v1348, %v1351
    %v1354 = vlaneseq
    %v1355 = vshrl.u32 %v1354, 7
    %v1356 = vsub.s32 0, %v1355
    %v1357 = vrot.slane %v60, %v1356
    %v1359 = vadd.f32 %v1350, %v1357
    %v1360 = vadd.f32 %v1352, %v1357
    %v1361 = vpack.c.bf16 %v1360, %v1359
    %v1362 = vld [vmem:[%s10] sm:$0xff]
    %v1363 = vld [vmem:[%s10 + $0x8] sm:$0xff]
    %v1364 = vld [vmem:[%s10 + $0x10] sm:$0xff]
    %v1365 = vld [vmem:[%s10 + $0x18] sm:$0xff]
    %v1366 = vld [vmem:[%s10 + $0x20] sm:$0xff]
    %v1367 = vld [vmem:[%s10 + $0x28] sm:$0xff]
    %v1368 = vld [vmem:[%s10 + $0x30] sm:$0xff]
    %v1369 = vld [vmem:[%s10 + $0x38] sm:$0xff]
    %v1370 = vld [vmem:[%s10 + $0x40] sm:$0xff]
    %v1371 = vld [vmem:[%s10 + $0x48] sm:$0xff]
    %v1372 = vld [vmem:[%s10 + $0x50] sm:$0xff]
    %v1373 = vld [vmem:[%s10 + $0x58] sm:$0xff]
    %v1374 = vld [vmem:[%s10 + $0x60] sm:$0xff]
    %v1375 = vld [vmem:[%s10 + $0x68] sm:$0xff]
    %v1376 = vld [vmem:[%s10 + $0x70] sm:$0xff]
    %v1377 = vld [vmem:[%s10 + $0x78] sm:$0xff]
    %v1378 = vld [vmem:[%s11] sm:$0xff]
    %v1380 = vlaneseq
    %v1381 = vshrl.u32 %v1380, 7
    %v1382 = vsub.s32 0, %v1381
    %v1383 = vrot.slane %v1378, %v1382
    %v1384 = vlaneseq
    %v1385 = vshrl.u32 %v1384, 7
    %v1386 = vsub.s32 1, %v1385
    %v1387 = vrot.slane %v1378, %v1386
    %v1388 = vlaneseq
    %v1389 = vshrl.u32 %v1388, 7
    %v1390 = vsub.s32 2, %v1389
    %v1391 = vrot.slane %v1378, %v1390
    %v1392 = vlaneseq
    %v1393 = vshrl.u32 %v1392, 7
    %v1394 = vsub.s32 3, %v1393
    %v1395 = vrot.slane %v1378, %v1394
    %v1396 = vlaneseq
    %v1397 = vshrl.u32 %v1396, 7
    %v1398 = vsub.s32 4, %v1397
    %v1399 = vrot.slane %v1378, %v1398
    %v1400 = vlaneseq
    %v1401 = vshrl.u32 %v1400, 7
    %v1402 = vsub.s32 5, %v1401
    %v1403 = vrot.slane %v1378, %v1402
    %v1404 = vlaneseq
    %v1405 = vshrl.u32 %v1404, 7
    %v1406 = vsub.s32 6, %v1405
    %v1407 = vrot.slane %v1378, %v1406
    %v1408 = vlaneseq
    %v1409 = vshrl.u32 %v1408, 7
    %v1410 = vsub.s32 7, %v1409
    %v1411 = vrot.slane %v1378, %v1410
    %v1436 = vunpack.c.l.b16 %v1362
    %v1437 = vunpack.c.h.b16 %v1362
    %v1438 = vunpack.c.l.b16 %v1363
    %v1439 = vunpack.c.h.b16 %v1363
    %v1440 = vunpack.c.l.b16 %v1364
    %v1441 = vunpack.c.h.b16 %v1364
    %v1442 = vunpack.c.l.b16 %v1365
    %v1443 = vunpack.c.h.b16 %v1365
    %v1444 = vunpack.c.l.b16 %v1366
    %v1445 = vunpack.c.h.b16 %v1366
    %v1446 = vunpack.c.l.b16 %v1367
    %v1447 = vunpack.c.h.b16 %v1367
    %v1448 = vunpack.c.l.b16 %v1368
    %v1449 = vunpack.c.h.b16 %v1368
    %v1450 = vunpack.c.l.b16 %v1369
    %v1451 = vunpack.c.h.b16 %v1369
    %v1452 = vunpack.c.l.b16 %v1370
    %v1453 = vunpack.c.h.b16 %v1370
    %v1454 = vunpack.c.l.b16 %v1371
    %v1455 = vunpack.c.h.b16 %v1371
    %v1456 = vunpack.c.l.b16 %v1372
    %v1457 = vunpack.c.h.b16 %v1372
    %v1458 = vunpack.c.l.b16 %v1373
    %v1459 = vunpack.c.h.b16 %v1373
    %v1460 = vunpack.c.l.b16 %v1374
    %v1461 = vunpack.c.h.b16 %v1374
    %v1462 = vunpack.c.l.b16 %v1375
    %v1463 = vunpack.c.h.b16 %v1375
    %v1464 = vunpack.c.l.b16 %v1376
    %v1465 = vunpack.c.h.b16 %v1376
    %v1466 = vunpack.c.l.b16 %v1377
    %v1467 = vunpack.c.h.b16 %v1377
    %v1468 = vpack.c.b16 %v1444, %v1436
    %v1469 = vpack.c.b16 %v1445, %v1437
    %v1470 = vpack.c.b16 %v1446, %v1438
    %v1471 = vpack.c.b16 %v1447, %v1439
    %v1472 = vpack.c.b16 %v1448, %v1440
    %v1473 = vpack.c.b16 %v1449, %v1441
    %v1474 = vpack.c.b16 %v1450, %v1442
    %v1475 = vpack.c.b16 %v1451, %v1443
    %v1476 = vpack.c.b16 %v1460, %v1452
    %v1477 = vpack.c.b16 %v1461, %v1453
    %v1478 = vpack.c.b16 %v1462, %v1454
    %v1479 = vpack.c.b16 %v1463, %v1455
    %v1480 = vpack.c.b16 %v1464, %v1456
    %v1481 = vpack.c.b16 %v1465, %v1457
    %v1482 = vpack.c.b16 %v1466, %v1458
    %v1483 = vpack.c.b16 %v1467, %v1459
    %v1501 = vsel %vm61, %v1361, 0
    %1503 = vmatprep.subr.bf16.mxu0 %v1469
    %1504 = vmatpush1.bf16.msra.mxu0 %v1468
    %1505 = vmatprep.subr.bf16.mxu0 %v1477
    %1506 = vmatpush1.bf16.msra.mxu0 %v1476
    %1507 = vmatprep.subr.bf16.mxu0 0
    %1508 = vmatpush1.bf16.msra.mxu0 0
    %1509 = vmatprep.subr.bf16.mxu0 0
    %1510 = vmatpush1.bf16.msra.mxu0 0
    %1511 = vmatprep.subr.bf16.mxu0 0
    %1512 = vmatpush1.bf16.msra.mxu0 0
    %1513 = vmatprep.subr.bf16.mxu0 0
    %1514 = vmatpush1.bf16.msra.mxu0 0
    %1515 = vmatprep.subr.bf16.mxu0 0
    %1516 = vmatpush1.bf16.msra.mxu0 0
    %1517 = vmatprep.subr.bf16.mxu0 0
    %1518 = vmatpush1.bf16.msra.mxu0 0
    %1519 = vmatprep.subr.bf16.mxu0 0
    %1520 = vmatpush1.bf16.msra.mxu0 0
    %1521 = vmatprep.subr.bf16.mxu0 0
    %1522 = vmatpush1.bf16.msra.mxu0 0
    %1523 = vmatprep.subr.bf16.mxu0 0
    %1524 = vmatpush1.bf16.msra.mxu0 0
    %1525 = vmatprep.subr.bf16.mxu0 0
    %1526 = vmatpush1.bf16.msra.mxu0 0
    %1527 = vmatprep.subr.bf16.mxu0 0
    %1528 = vmatpush1.bf16.msra.mxu0 0
    %1529 = vmatprep.subr.bf16.mxu0 0
    %1530 = vmatpush1.bf16.msra.mxu0 0
    %1531 = vmatprep.subr.bf16.mxu0 0
    %1532 = vmatpush1.bf16.msra.mxu0 0
    %1533 = vmatprep.subr.bf16.mxu0 0
    %1534 = vmatpush1.bf16.msra.mxu0 0
    %1535 = vmatprep.mubr.bf16.mxu0 0
    %1536 = vmatmul.mubr.bf16.gmra.mrb[0].mxu0 %v1501
    %v1537 = vpop.f32.mrb[0].mxu0
    %v1538 = vadd.f32 %v1383, %v1537
    %v1539 = vpop.f32.mrb[0].mxu0
    %v1540 = vadd.f32 %v1387, %v1539
    %v1541 = vpop.f32.mrb[0].mxu0
    %v1542 = vadd.f32 %v1383, %v1541
    %v1543 = vpop.f32.mrb[0].mxu0
    %v1544 = vadd.f32 %v1387, %v1543
    %1545 = vdwg.mxu0
    %1546 = vmatprep.subr.bf16.mxu0 %v1471
    %1547 = vmatpush1.bf16.msra.mxu0 %v1470
    %1548 = vmatprep.subr.bf16.mxu0 %v1479
    %1549 = vmatpush1.bf16.msra.mxu0 %v1478
    %1550 = vmatprep.subr.bf16.mxu0 0
    %1551 = vmatpush1.bf16.msra.mxu0 0
    %1552 = vmatprep.subr.bf16.mxu0 0
    %1553 = vmatpush1.bf16.msra.mxu0 0
    %1554 = vmatprep.subr.bf16.mxu0 0
    %1555 = vmatpush1.bf16.msra.mxu0 0
    %1556 = vmatprep.subr.bf16.mxu0 0
    %1557 = vmatpush1.bf16.msra.mxu0 0
    %1558 = vmatprep.subr.bf16.mxu0 0
    %1559 = vmatpush1.bf16.msra.mxu0 0
    %1560 = vmatprep.subr.bf16.mxu0 0
    %1561 = vmatpush1.bf16.msra.mxu0 0
    %1562 = vmatprep.subr.bf16.mxu0 0
    %1563 = vmatpush1.bf16.msra.mxu0 0
    %1564 = vmatprep.subr.bf16.mxu0 0
    %1565 = vmatpush1.bf16.msra.mxu0 0
    %1566 = vmatprep.subr.bf16.mxu0 0
    %1567 = vmatpush1.bf16.msra.mxu0 0
    %1568 = vmatprep.subr.bf16.mxu0 0
    %1569 = vmatpush1.bf16.msra.mxu0 0
    %1570 = vmatprep.subr.bf16.mxu0 0
    %1571 = vmatpush1.bf16.msra.mxu0 0
    %1572 = vmatprep.subr.bf16.mxu0 0
    %1573 = vmatpush1.bf16.msra.mxu0 0
    %1574 = vmatprep.subr.bf16.mxu0 0
    %1575 = vmatpush1.bf16.msra.mxu0 0
    %1576 = vmatprep.subr.bf16.mxu0 0
    %1577 = vmatpush1.bf16.msra.mxu0 0
    %1578 = vmatprep.mubr.bf16.mxu0 0
    %1579 = vmatmul.mubr.bf16.gmra.mrb[0].mxu0 %v1501
    %v1580 = vpop.f32.mrb[0].mxu0
    %v1581 = vadd.f32 %v1391, %v1580
    %v1582 = vpop.f32.mrb[0].mxu0
    %v1583 = vadd.f32 %v1395, %v1582
    %v1584 = vpop.f32.mrb[0].mxu0
    %v1585 = vadd.f32 %v1391, %v1584
    %v1586 = vpop.f32.mrb[0].mxu0
    %v1587 = vadd.f32 %v1395, %v1586
    %1588 = vdwg.mxu0
    %1589 = vmatprep.subr.bf16.mxu0 %v1473
    %1590 = vmatpush1.bf16.msra.mxu0 %v1472
    %1591 = vmatprep.subr.bf16.mxu0 %v1481
    %1592 = vmatpush1.bf16.msra.mxu0 %v1480
    %1593 = vmatprep.subr.bf16.mxu0 0
    %1594 = vmatpush1.bf16.msra.mxu0 0
    %1595 = vmatprep.subr.bf16.mxu0 0
    %1596 = vmatpush1.bf16.msra.mxu0 0
    %1597 = vmatprep.subr.bf16.mxu0 0
    %1598 = vmatpush1.bf16.msra.mxu0 0
    %1599 = vmatprep.subr.bf16.mxu0 0
    %1600 = vmatpush1.bf16.msra.mxu0 0
    %1601 = vmatprep.subr.bf16.mxu0 0
    %1602 = vmatpush1.bf16.msra.mxu0 0
    %1603 = vmatprep.subr.bf16.mxu0 0
    %1604 = vmatpush1.bf16.msra.mxu0 0
    %1605 = vmatprep.subr.bf16.mxu0 0
    %1606 = vmatpush1.bf16.msra.mxu0 0
    %1607 = vmatprep.subr.bf16.mxu0 0
    %1608 = vmatpush1.bf16.msra.mxu0 0
    %1609 = vmatprep.subr.bf16.mxu0 0
    %1610 = vmatpush1.bf16.msra.mxu0 0
    %1611 = vmatprep.subr.bf16.mxu0 0
    %1612 = vmatpush1.bf16.msra.mxu0 0
    %1613 = vmatprep.subr.bf16.mxu0 0
    %1614 = vmatpush1.bf16.msra.mxu0 0
    %1615 = vmatprep.subr.bf16.mxu0 0
    %1616 = vmatpush1.bf16.msra.mxu0 0
    %1617 = vmatprep.subr.bf16.mxu0 0
    %1618 = vmatpush1.bf16.msra.mxu0 0
    %1619 = vmatprep.subr.bf16.mxu0 0
    %1620 = vmatpush1.bf16.msra.mxu0 0
    %1621 = vmatprep.mubr.bf16.mxu0 0
    %1622 = vmatmul.mubr.bf16.gmra.mrb[0].mxu0 %v1501
    %v1623 = vpop.f32.mrb[0].mxu0
    %v1624 = vadd.f32 %v1399, %v1623
    %v1625 = vpop.f32.mrb[0].mxu0
    %v1626 = vadd.f32 %v1403, %v1625
    %v1627 = vpop.f32.mrb[0].mxu0
    %v1628 = vadd.f32 %v1399, %v1627
    %v1629 = vpop.f32.mrb[0].mxu0
    %v1630 = vadd.f32 %v1403, %v1629
    %1631 = vdwg.mxu0
    %1632 = vmatprep.subr.bf16.mxu0 %v1475
    %1633 = vmatpush1.bf16.msra.mxu0 %v1474
    %1634 = vmatprep.subr.bf16.mxu0 %v1483
    %1635 = vmatpush1.bf16.msra.mxu0 %v1482
    %1636 = vmatprep.subr.bf16.mxu0 0
    %1637 = vmatpush1.bf16.msra.mxu0 0
    %1638 = vmatprep.subr.bf16.mxu0 0
    %1639 = vmatpush1.bf16.msra.mxu0 0
    %1640 = vmatprep.subr.bf16.mxu0 0
    %1641 = vmatpush1.bf16.msra.mxu0 0
    %1642 = vmatprep.subr.bf16.mxu0 0
    %1643 = vmatpush1.bf16.msra.mxu0 0
    %1644 = vmatprep.subr.bf16.mxu0 0
    %1645 = vmatpush1.bf16.msra.mxu0 0
    %1646 = vmatprep.subr.bf16.mxu0 0
    %1647 = vmatpush1.bf16.msra.mxu0 0
    %1648 = vmatprep.subr.bf16.mxu0 0
    %1649 = vmatpush1.bf16.msra.mxu0 0
    %1650 = vmatprep.subr.bf16.mxu0 0
    %1651 = vmatpush1.bf16.msra.mxu0 0
    %1652 = vmatprep.subr.bf16.mxu0 0
    %1653 = vmatpush1.bf16.msra.mxu0 0
    %1654 = vmatprep.subr.bf16.mxu0 0
    %1655 = vmatpush1.bf16.msra.mxu0 0
    %1656 = vmatprep.subr.bf16.mxu0 0
    %1657 = vmatpush1.bf16.msra.mxu0 0
    %1658 = vmatprep.subr.bf16.mxu0 0
    %1659 = vmatpush1.bf16.msra.mxu0 0
    %1660 = vmatprep.subr.bf16.mxu0 0
    %1661 = vmatpush1.bf16.msra.mxu0 0
    %1662 = vmatprep.subr.bf16.mxu0 0
    %1663 = vmatpush1.bf16.msra.mxu0 0
    %1664 = vmatprep.mubr.bf16.mxu0 0
    %1665 = vmatmul.mubr.bf16.gmra.mrb[0].mxu0 %v1501
    %v1666 = vpop.f32.mrb[0].mxu0
    %v1667 = vadd.f32 %v1407, %v1666
    %v1668 = vpop.f32.mrb[0].mxu0
    %v1669 = vadd.f32 %v1411, %v1668
    %v1670 = vpop.f32.mrb[0].mxu0
    %v1671 = vadd.f32 %v1407, %v1670
    %v1672 = vpop.f32.mrb[0].mxu0
    %v1673 = vadd.f32 %v1411, %v1672
    %1674 = vdwg.mxu0
    %v1675 = vmax.f32 %v1538, 0.0
    %v1676 = vmax.f32 %v1540, 0.0
    %v1677 = vmax.f32 %v1581, 0.0
    %v1678 = vmax.f32 %v1583, 0.0
    %v1679 = vmax.f32 %v1624, 0.0
    %v1680 = vmax.f32 %v1626, 0.0
    %v1681 = vmax.f32 %v1667, 0.0
    %v1682 = vmax.f32 %v1669, 0.0
    %v1683 = vmax.f32 %v1542, 0.0
    %v1684 = vmax.f32 %v1544, 0.0
    %v1685 = vmax.f32 %v1585, 0.0
    %v1686 = vmax.f32 %v1587, 0.0
    %v1687 = vmax.f32 %v1628, 0.0
    %v1688 = vmax.f32 %v1630, 0.0
    %v1689 = vmax.f32 %v1671, 0.0
    %v1690 = vmax.f32 %v1673, 0.0
    %v1691 = vpack.c.bf16 %v1683, %v1675
    %v1692 = vpack.c.bf16 %v1684, %v1676
    %v1693 = vpack.c.bf16 %v1685, %v1677
    %v1694 = vpack.c.bf16 %v1686, %v1678
    %v1695 = vpack.c.bf16 %v1687, %v1679
    %v1696 = vpack.c.bf16 %v1688, %v1680
    %v1697 = vpack.c.bf16 %v1689, %v1681
    %v1698 = vpack.c.bf16 %v1690, %v1682
    %v1699 = vld [vmem:[%s12] sm:$0xf]
    %v1700 = vld [vmem:[%s12 + $0x4] sm:$0xf]
    %v1701 = vld [vmem:[%s12 + $0x8] sm:$0xf]
    %v1702 = vld [vmem:[%s12 + $0xc] sm:$0xf]
    %v1703 = vld [vmem:[%s12 + $0x10] sm:$0xf]
    %v1704 = vld [vmem:[%s12 + $0x14] sm:$0xf]
    %v1705 = vld [vmem:[%s12 + $0x18] sm:$0xf]
    %v1706 = vld [vmem:[%s12 + $0x1c] sm:$0xf]
    %v1707 = vld [vmem:[%s12 + $0x20] sm:$0xf]
    %v1708 = vld [vmem:[%s12 + $0x24] sm:$0xf]
    %v1709 = vld [vmem:[%s12 + $0x28] sm:$0xf]
    %v1710 = vld [vmem:[%s12 + $0x2c] sm:$0xf]
    %v1711 = vld [vmem:[%s12 + $0x30] sm:$0xf]
    %v1712 = vld [vmem:[%s12 + $0x34] sm:$0xf]
    %v1713 = vld [vmem:[%s12 + $0x38] sm:$0xf]
    %v1714 = vld [vmem:[%s12 + $0x3c] sm:$0xf]
    %v1715 = vld [vmem:[%s12 + $0x40] sm:$0xf]
    %v1716 = vld [vmem:[%s12 + $0x44] sm:$0xf]
    %v1717 = vld [vmem:[%s12 + $0x48] sm:$0xf]
    %v1718 = vld [vmem:[%s12 + $0x4c] sm:$0xf]
    %v1719 = vld [vmem:[%s12 + $0x50] sm:$0xf]
    %v1720 = vld [vmem:[%s12 + $0x54] sm:$0xf]
    %v1721 = vld [vmem:[%s12 + $0x58] sm:$0xf]
    %v1722 = vld [vmem:[%s12 + $0x5c] sm:$0xf]
    %v1723 = vld [vmem:[%s12 + $0x60] sm:$0xf]
    %v1724 = vld [vmem:[%s12 + $0x64] sm:$0xf]
    %v1725 = vld [vmem:[%s12 + $0x68] sm:$0xf]
    %v1726 = vld [vmem:[%s12 + $0x6c] sm:$0xf]
    %v1727 = vld [vmem:[%s12 + $0x70] sm:$0xf]
    %v1728 = vld [vmem:[%s12 + $0x74] sm:$0xf]
    %v1729 = vld [vmem:[%s12 + $0x78] sm:$0xf]
    %v1730 = vld [vmem:[%s12 + $0x7c] sm:$0xf]
    %v1731 = vld [vmem:[%s12 + $0x80] sm:$0xf]
    %v1732 = vld [vmem:[%s12 + $0x84] sm:$0xf]
    %v1733 = vld [vmem:[%s12 + $0x88] sm:$0xf]
    %v1734 = vld [vmem:[%s12 + $0x8c] sm:$0xf]
    %v1735 = vld [vmem:[%s12 + $0x90] sm:$0xf]
    %v1736 = vld [vmem:[%s12 + $0x94] sm:$0xf]
    %v1737 = vld [vmem:[%s12 + $0x98] sm:$0xf]
    %v1738 = vld [vmem:[%s12 + $0x9c] sm:$0xf]
    %v1739 = vld [vmem:[%s12 + $0xa0] sm:$0xf]
    %v1740 = vld [vmem:[%s12 + $0xa4] sm:$0xf]
    %v1741 = vld [vmem:[%s12 + $0xa8] sm:$0xf]
    %v1742 = vld [vmem:[%s12 + $0xac] sm:$0xf]
    %v1743 = vld [vmem:[%s12 + $0xb0] sm:$0xf]
    %v1744 = vld [vmem:[%s12 + $0xb4] sm:$0xf]
    %v1745 = vld [vmem:[%s12 + $0xb8] sm:$0xf]
    %v1746 = vld [vmem:[%s12 + $0xbc] sm:$0xf]
    %v1747 = vld [vmem:[%s12 + $0xc0] sm:$0xf]
    %v1748 = vld [vmem:[%s12 + $0xc4] sm:$0xf]
    %v1749 = vld [vmem:[%s12 + $0xc8] sm:$0xf]
    %v1750 = vld [vmem:[%s12 + $0xcc] sm:$0xf]
    %v1751 = vld [vmem:[%s12 + $0xd0] sm:$0xf]
    %v1752 = vld [vmem:[%s12 + $0xd4] sm:$0xf]
    %v1753 = vld [vmem:[%s12 + $0xd8] sm:$0xf]
    %v1754 = vld [vmem:[%s12 + $0xdc] sm:$0xf]
    %v1755 = vld [vmem:[%s12 + $0xe0] sm:$0xf]
    %v1756 = vld [vmem:[%s12 + $0xe4] sm:$0xf]
    %v1757 = vld [vmem:[%s12 + $0xe8] sm:$0xf]
    %v1758 = vld [vmem:[%s12 + $0xec] sm:$0xf]
    %v1759 = vld [vmem:[%s12 + $0xf0] sm:$0xf]
    %v1760 = vld [vmem:[%s12 + $0xf4] sm:$0xf]
    %v1761 = vld [vmem:[%s12 + $0xf8] sm:$0xf]
    %v1762 = vld [vmem:[%s12 + $0xfc] sm:$0xf]
    %v1763 = vld [vmem:[%s12 + $0x100] sm:$0xf]
    %v1764 = vld [vmem:[%s12 + $0x104] sm:$0xf]
    %v1765 = vld [vmem:[%s12 + $0x108] sm:$0xf]
    %v1766 = vld [vmem:[%s12 + $0x10c] sm:$0xf]
    %v1767 = vld [vmem:[%s12 + $0x110] sm:$0xf]
    %v1768 = vld [vmem:[%s12 + $0x114] sm:$0xf]
    %v1769 = vld [vmem:[%s12 + $0x118] sm:$0xf]
    %v1770 = vld [vmem:[%s12 + $0x11c] sm:$0xf]
    %v1771 = vld [vmem:[%s12 + $0x120] sm:$0xf]
    %v1772 = vld [vmem:[%s12 + $0x124] sm:$0xf]
    %v1773 = vld [vmem:[%s12 + $0x128] sm:$0xf]
    %v1774 = vld [vmem:[%s12 + $0x12c] sm:$0xf]
    %v1775 = vld [vmem:[%s12 + $0x130] sm:$0xf]
    %v1776 = vld [vmem:[%s12 + $0x134] sm:$0xf]
    %v1777 = vld [vmem:[%s12 + $0x138] sm:$0xf]
    %v1778 = vld [vmem:[%s12 + $0x13c] sm:$0xf]
    %v1779 = vld [vmem:[%s12 + $0x140] sm:$0xf]
    %v1780 = vld [vmem:[%s12 + $0x144] sm:$0xf]
    %v1781 = vld [vmem:[%s12 + $0x148] sm:$0xf]
    %v1782 = vld [vmem:[%s12 + $0x14c] sm:$0xf]
    %v1783 = vld [vmem:[%s12 + $0x150] sm:$0xf]
    %v1784 = vld [vmem:[%s12 + $0x154] sm:$0xf]
    %v1785 = vld [vmem:[%s12 + $0x158] sm:$0xf]
    %v1786 = vld [vmem:[%s12 + $0x15c] sm:$0xf]
    %v1787 = vld [vmem:[%s12 + $0x160] sm:$0xf]
    %v1788 = vld [vmem:[%s12 + $0x164] sm:$0xf]
    %v1789 = vld [vmem:[%s12 + $0x168] sm:$0xf]
    %v1790 = vld [vmem:[%s12 + $0x16c] sm:$0xf]
    %v1791 = vld [vmem:[%s12 + $0x170] sm:$0xf]
    %v1792 = vld [vmem:[%s12 + $0x174] sm:$0xf]
    %v1793 = vld [vmem:[%s12 + $0x178] sm:$0xf]
    %v1794 = vld [vmem:[%s12 + $0x17c] sm:$0xf]
    %v1795 = vld [vmem:[%s12 + $0x180] sm:$0xf]
    %v1796 = vld [vmem:[%s12 + $0x184] sm:$0xf]
    %v1797 = vld [vmem:[%s12 + $0x188] sm:$0xf]
    %v1798 = vld [vmem:[%s12 + $0x18c] sm:$0xf]
    %v1799 = vld [vmem:[%s12 + $0x190] sm:$0xf]
    %v1800 = vld [vmem:[%s12 + $0x194] sm:$0xf]
    %v1801 = vld [vmem:[%s12 + $0x198] sm:$0xf]
    %v1802 = vld [vmem:[%s12 + $0x19c] sm:$0xf]
    %v1803 = vld [vmem:[%s12 + $0x1a0] sm:$0xf]
    %v1804 = vld [vmem:[%s12 + $0x1a4] sm:$0xf]
    %v1805 = vld [vmem:[%s12 + $0x1a8] sm:$0xf]
    %v1806 = vld [vmem:[%s12 + $0x1ac] sm:$0xf]
    %v1807 = vld [vmem:[%s12 + $0x1b0] sm:$0xf]
    %v1808 = vld [vmem:[%s12 + $0x1b4] sm:$0xf]
    %v1809 = vld [vmem:[%s12 + $0x1b8] sm:$0xf]
    %v1810 = vld [vmem:[%s12 + $0x1bc] sm:$0xf]
    %v1811 = vld [vmem:[%s12 + $0x1c0] sm:$0xf]
    %v1812 = vld [vmem:[%s12 + $0x1c4] sm:$0xf]
    %v1813 = vld [vmem:[%s12 + $0x1c8] sm:$0xf]
    %v1814 = vld [vmem:[%s12 + $0x1cc] sm:$0xf]
    %v1815 = vld [vmem:[%s12 + $0x1d0] sm:$0xf]
    %v1816 = vld [vmem:[%s12 + $0x1d4] sm:$0xf]
    %v1817 = vld [vmem:[%s12 + $0x1d8] sm:$0xf]
    %v1818 = vld [vmem:[%s12 + $0x1dc] sm:$0xf]
    %v1819 = vld [vmem:[%s12 + $0x1e0] sm:$0xf]
    %v1820 = vld [vmem:[%s12 + $0x1e4] sm:$0xf]
    %v1821 = vld [vmem:[%s12 + $0x1e8] sm:$0xf]
    %v1822 = vld [vmem:[%s12 + $0x1ec] sm:$0xf]
    %v1823 = vld [vmem:[%s12 + $0x1f0] sm:$0xf]
    %v1824 = vld [vmem:[%s12 + $0x1f4] sm:$0xf]
    %v1825 = vld [vmem:[%s12 + $0x1f8] sm:$0xf]
    %v1826 = vld [vmem:[%s12 + $0x1fc] sm:$0xf]
    %v1827 = vld [vmem:[%s13] sm:$0x1]
    %v1829 = vlaneseq
    %v1830 = vshrl.u32 %v1829, 7
    %v1831 = vsub.s32 0, %v1830
    %v1832 = vrot.slane %v1827, %v1831
    %v1962 = vunpack.c.l.b16 %v1699
    %v1963 = vunpack.c.l.b16 %v1700
    %v1964 = vunpack.c.l.b16 %v1701
    %v1965 = vunpack.c.l.b16 %v1702
    %v1966 = vunpack.c.l.b16 %v1703
    %v1967 = vunpack.c.l.b16 %v1704
    %v1968 = vunpack.c.l.b16 %v1705
    %v1969 = vunpack.c.l.b16 %v1706
    %v1970 = vunpack.c.l.b16 %v1707
    %v1971 = vunpack.c.l.b16 %v1708
    %v1972 = vunpack.c.l.b16 %v1709
    %v1973 = vunpack.c.l.b16 %v1710
    %v1974 = vunpack.c.l.b16 %v1711
    %v1975 = vunpack.c.l.b16 %v1712
    %v1976 = vunpack.c.l.b16 %v1713
    %v1977 = vunpack.c.l.b16 %v1714
    %v1978 = vunpack.c.l.b16 %v1715
    %v1979 = vunpack.c.l.b16 %v1716
    %v1980 = vunpack.c.l.b16 %v1717
    %v1981 = vunpack.c.l.b16 %v1718
    %v1982 = vunpack.c.l.b16 %v1719
    %v1983 = vunpack.c.l.b16 %v1720
    %v1984 = vunpack.c.l.b16 %v1721
    %v1985 = vunpack.c.l.b16 %v1722
    %v1986 = vunpack.c.l.b16 %v1723
    %v1987 = vunpack.c.l.b16 %v1724
    %v1988 = vunpack.c.l.b16 %v1725
    %v1989 = vunpack.c.l.b16 %v1726
    %v1990 = vunpack.c.l.b16 %v1727
    %v1991 = vunpack.c.l.b16 %v1728
    %v1992 = vunpack.c.l.b16 %v1729
    %v1993 = vunpack.c.l.b16 %v1730
    %v1994 = vunpack.c.l.b16 %v1731
    %v1995 = vunpack.c.l.b16 %v1732
    %v1996 = vunpack.c.l.b16 %v1733
    %v1997 = vunpack.c.l.b16 %v1734
    %v1998 = vunpack.c.l.b16 %v1735
    %v1999 = vunpack.c.l.b16 %v1736
    %v2000 = vunpack.c.l.b16 %v1737
    %v2001 = vunpack.c.l.b16 %v1738
    %v2002 = vunpack.c.l.b16 %v1739
    %v2003 = vunpack.c.l.b16 %v1740
    %v2004 = vunpack.c.l.b16 %v1741
    %v2005 = vunpack.c.l.b16 %v1742
    %v2006 = vunpack.c.l.b16 %v1743
    %v2007 = vunpack.c.l.b16 %v1744
    %v2008 = vunpack.c.l.b16 %v1745
    %v2009 = vunpack.c.l.b16 %v1746
    %v2010 = vunpack.c.l.b16 %v1747
    %v2011 = vunpack.c.l.b16 %v1748
    %v2012 = vunpack.c.l.b16 %v1749
    %v2013 = vunpack.c.l.b16 %v1750
    %v2014 = vunpack.c.l.b16 %v1751
    %v2015 = vunpack.c.l.b16 %v1752
    %v2016 = vunpack.c.l.b16 %v1753
    %v2017 = vunpack.c.l.b16 %v1754
    %v2018 = vunpack.c.l.b16 %v1755
    %v2019 = vunpack.c.l.b16 %v1756
    %v2020 = vunpack.c.l.b16 %v1757
    %v2021 = vunpack.c.l.b16 %v1758
    %v2022 = vunpack.c.l.b16 %v1759
    %v2023 = vunpack.c.l.b16 %v1760
    %v2024 = vunpack.c.l.b16 %v1761
    %v2025 = vunpack.c.l.b16 %v1762
    %v2026 = vunpack.c.l.b16 %v1763
    %v2027 = vunpack.c.l.b16 %v1764
    %v2028 = vunpack.c.l.b16 %v1765
    %v2029 = vunpack.c.l.b16 %v1766
    %v2030 = vunpack.c.l.b16 %v1767
    %v2031 = vunpack.c.l.b16 %v1768
    %v2032 = vunpack.c.l.b16 %v1769
    %v2033 = vunpack.c.l.b16 %v1770
    %v2034 = vunpack.c.l.b16 %v1771
    %v2035 = vunpack.c.l.b16 %v1772
    %v2036 = vunpack.c.l.b16 %v1773
    %v2037 = vunpack.c.l.b16 %v1774
    %v2038 = vunpack.c.l.b16 %v1775
    %v2039 = vunpack.c.l.b16 %v1776
    %v2040 = vunpack.c.l.b16 %v1777
    %v2041 = vunpack.c.l.b16 %v1778
    %v2042 = vunpack.c.l.b16 %v1779
    %v2043 = vunpack.c.l.b16 %v1780
    %v2044 = vunpack.c.l.b16 %v1781
    %v2045 = vunpack.c.l.b16 %v1782
    %v2046 = vunpack.c.l.b16 %v1783
    %v2047 = vunpack.c.l.b16 %v1784
    %v2048 = vunpack.c.l.b16 %v1785
    %v2049 = vunpack.c.l.b16 %v1786
    %v2050 = vunpack.c.l.b16 %v1787
    %v2051 = vunpack.c.l.b16 %v1788
    %v2052 = vunpack.c.l.b16 %v1789
    %v2053 = vunpack.c.l.b16 %v1790
    %v2054 = vunpack.c.l.b16 %v1791
    %v2055 = vunpack.c.l.b16 %v1792
    %v2056 = vunpack.c.l.b16 %v1793
    %v2057 = vunpack.c.l.b16 %v1794
    %v2058 = vunpack.c.l.b16 %v1795
    %v2059 = vunpack.c.l.b16 %v1796
    %v2060 = vunpack.c.l.b16 %v1797
    %v2061 = vunpack.c.l.b16 %v1798
    %v2062 = vunpack.c.l.b16 %v1799
    %v2063 = vunpack.c.l.b16 %v1800
    %v2064 = vunpack.c.l.b16 %v1801
    %v2065 = vunpack.c.l.b16 %v1802
    %v2066 = vunpack.c.l.b16 %v1803
    %v2067 = vunpack.c.l.b16 %v1804
    %v2068 = vunpack.c.l.b16 %v1805
    %v2069 = vunpack.c.l.b16 %v1806
    %v2070 = vunpack.c.l.b16 %v1807
    %v2071 = vunpack.c.l.b16 %v1808
    %v2072 = vunpack.c.l.b16 %v1809
    %v2073 = vunpack.c.l.b16 %v1810
    %v2074 = vunpack.c.l.b16 %v1811
    %v2075 = vunpack.c.l.b16 %v1812
    %v2076 = vunpack.c.l.b16 %v1813
    %v2077 = vunpack.c.l.b16 %v1814
    %v2078 = vunpack.c.l.b16 %v1815
    %v2079 = vunpack.c.l.b16 %v1816
    %v2080 = vunpack.c.l.b16 %v1817
    %v2081 = vunpack.c.l.b16 %v1818
    %v2082 = vunpack.c.l.b16 %v1819
    %v2083 = vunpack.c.l.b16 %v1820
    %v2084 = vunpack.c.l.b16 %v1821
    %v2085 = vunpack.c.l.b16 %v1822
    %v2086 = vunpack.c.l.b16 %v1823
    %v2087 = vunpack.c.l.b16 %v1824
    %v2088 = vunpack.c.l.b16 %v1825
    %v2089 = vunpack.c.l.b16 %v1826
    %v2090 = vpack.c.b16 %v1963, %v1962
    %v2091 = vpack.c.b16 %v1965, %v1964
    %v2092 = vpack.c.b16 %v1967, %v1966
    %v2093 = vpack.c.b16 %v1969, %v1968
    %v2094 = vpack.c.b16 %v1971, %v1970
    %v2095 = vpack.c.b16 %v1973, %v1972
    %v2096 = vpack.c.b16 %v1975, %v1974
    %v2097 = vpack.c.b16 %v1977, %v1976
    %v2098 = vpack.c.b16 %v1979, %v1978
    %v2099 = vpack.c.b16 %v1981, %v1980
    %v2100 = vpack.c.b16 %v1983, %v1982
    %v2101 = vpack.c.b16 %v1985, %v1984
    %v2102 = vpack.c.b16 %v1987, %v1986
    %v2103 = vpack.c.b16 %v1989, %v1988
    %v2104 = vpack.c.b16 %v1991, %v1990
    %v2105 = vpack.c.b16 %v1993, %v1992
    %v2106 = vpack.c.b16 %v1995, %v1994
    %v2107 = vpack.c.b16 %v1997, %v1996
    %v2108 = vpack.c.b16 %v1999, %v1998
    %v2109 = vpack.c.b16 %v2001, %v2000
    %v2110 = vpack.c.b16 %v2003, %v2002
    %v2111 = vpack.c.b16 %v2005, %v2004
    %v2112 = vpack.c.b16 %v2007, %v2006
    %v2113 = vpack.c.b16 %v2009, %v2008
    %v2114 = vpack.c.b16 %v2011, %v2010
    %v2115 = vpack.c.b16 %v2013, %v2012
    %v2116 = vpack.c.b16 %v2015, %v2014
    %v2117 = vpack.c.b16 %v2017, %v2016
    %v2118 = vpack.c.b16 %v2019, %v2018
    %v2119 = vpack.c.b16 %v2021, %v2020
    %v2120 = vpack.c.b16 %v2023, %v2022
    %v2121 = vpack.c.b16 %v2025, %v2024
    %v2122 = vpack.c.b16 %v2027, %v2026
    %v2123 = vpack.c.b16 %v2029, %v2028
    %v2124 = vpack.c.b16 %v2031, %v2030
    %v2125 = vpack.c.b16 %v2033, %v2032
    %v2126 = vpack.c.b16 %v2035, %v2034
    %v2127 = vpack.c.b16 %v2037, %v2036
    %v2128 = vpack.c.b16 %v2039, %v2038
    %v2129 = vpack.c.b16 %v2041, %v2040
    %v2130 = vpack.c.b16 %v2043, %v2042
    %v2131 = vpack.c.b16 %v2045, %v2044
    %v2132 = vpack.c.b16 %v2047, %v2046
    %v2133 = vpack.c.b16 %v2049, %v2048
    %v2134 = vpack.c.b16 %v2051, %v2050
    %v2135 = vpack.c.b16 %v2053, %v2052
    %v2136 = vpack.c.b16 %v2055, %v2054
    %v2137 = vpack.c.b16 %v2057, %v2056
    %v2138 = vpack.c.b16 %v2059, %v2058
    %v2139 = vpack.c.b16 %v2061, %v2060
    %v2140 = vpack.c.b16 %v2063, %v2062
    %v2141 = vpack.c.b16 %v2065, %v2064
    %v2142 = vpack.c.b16 %v2067, %v2066
    %v2143 = vpack.c.b16 %v2069, %v2068
    %v2144 = vpack.c.b16 %v2071, %v2070
    %v2145 = vpack.c.b16 %v2073, %v2072
    %v2146 = vpack.c.b16 %v2075, %v2074
    %v2147 = vpack.c.b16 %v2077, %v2076
    %v2148 = vpack.c.b16 %v2079, %v2078
    %v2149 = vpack.c.b16 %v2081, %v2080
    %v2150 = vpack.c.b16 %v2083, %v2082
    %v2151 = vpack.c.b16 %v2085, %v2084
    %v2152 = vpack.c.b16 %v2087, %v2086
    %v2153 = vpack.c.b16 %v2089, %v2088
    %2218 = vmatprep.subr.bf16.mxu0 0
    %2219 = vmatpush1.bf16.msra.mxu0 %v2090
    %2220 = vmatprep.subr.bf16.mxu0 0
    %2221 = vmatpush1.bf16.msra.mxu0 %v2091
    %2222 = vmatprep.subr.bf16.mxu0 0
    %2223 = vmatpush1.bf16.msra.mxu0 %v2092
    %2224 = vmatprep.subr.bf16.mxu0 0
    %2225 = vmatpush1.bf16.msra.mxu0 %v2093
    %2226 = vmatprep.subr.bf16.mxu0 0
    %2227 = vmatpush1.bf16.msra.mxu0 %v2094
    %2228 = vmatprep.subr.bf16.mxu0 0
    %2229 = vmatpush1.bf16.msra.mxu0 %v2095
    %2230 = vmatprep.subr.bf16.mxu0 0
    %2231 = vmatpush1.bf16.msra.mxu0 %v2096
    %2232 = vmatprep.subr.bf16.mxu0 0
    %2233 = vmatpush1.bf16.msra.mxu0 %v2097
    %2234 = vmatprep.subr.bf16.mxu0 0
    %2235 = vmatpush1.bf16.msra.mxu0 %v2098
    %2236 = vmatprep.subr.bf16.mxu0 0
    %2237 = vmatpush1.bf16.msra.mxu0 %v2099
    %2238 = vmatprep.subr.bf16.mxu0 0
    %2239 = vmatpush1.bf16.msra.mxu0 %v2100
    %2240 = vmatprep.subr.bf16.mxu0 0
    %2241 = vmatpush1.bf16.msra.mxu0 %v2101
    %2242 = vmatprep.subr.bf16.mxu0 0
    %2243 = vmatpush1.bf16.msra.mxu0 %v2102
    %2244 = vmatprep.subr.bf16.mxu0 0
    %2245 = vmatpush1.bf16.msra.mxu0 %v2103
    %2246 = vmatprep.subr.bf16.mxu0 0
    %2247 = vmatpush1.bf16.msra.mxu0 %v2104
    %2248 = vmatprep.subr.bf16.mxu0 0
    %2249 = vmatpush1.bf16.msra.mxu0 %v2105
    %2250 = vmatprep.mubr.bf16.mxu0 %v1692
    %2251 = vmatmul.mubr.bf16.gmra.mrb[0].mxu0 %v1691
    %v2252 = vpop.f32.mrb[0].mxu0
    %v2253 = vadd.f32 %v1832, %v2252
    %v2254 = vpop.f32.mrb[0].mxu0
    %v2255 = vpop.f32.mrb[0].mxu0
    %v2256 = vadd.f32 %v1832, %v2255
    %v2257 = vpop.f32.mrb[0].mxu0
    %2258 = vdwg.mxu0
    %2259 = vmatprep.subr.bf16.mxu0 0
    %2260 = vmatpush1.bf16.msra.mxu0 %v2106
    %2261 = vmatprep.subr.bf16.mxu0 0
    %2262 = vmatpush1.bf16.msra.mxu0 %v2107
    %2263 = vmatprep.subr.bf16.mxu0 0
    %2264 = vmatpush1.bf16.msra.mxu0 %v2108
    %2265 = vmatprep.subr.bf16.mxu0 0
    %2266 = vmatpush1.bf16.msra.mxu0 %v2109
    %2267 = vmatprep.subr.bf16.mxu0 0
    %2268 = vmatpush1.bf16.msra.mxu0 %v2110
    %2269 = vmatprep.subr.bf16.mxu0 0
    %2270 = vmatpush1.bf16.msra.mxu0 %v2111
    %2271 = vmatprep.subr.bf16.mxu0 0
    %2272 = vmatpush1.bf16.msra.mxu0 %v2112
    %2273 = vmatprep.subr.bf16.mxu0 0
    %2274 = vmatpush1.bf16.msra.mxu0 %v2113
    %2275 = vmatprep.subr.bf16.mxu0 0
    %2276 = vmatpush1.bf16.msra.mxu0 %v2114
    %2277 = vmatprep.subr.bf16.mxu0 0
    %2278 = vmatpush1.bf16.msra.mxu0 %v2115
    %2279 = vmatprep.subr.bf16.mxu0 0
    %2280 = vmatpush1.bf16.msra.mxu0 %v2116
    %2281 = vmatprep.subr.bf16.mxu0 0
    %2282 = vmatpush1.bf16.msra.mxu0 %v2117
    %2283 = vmatprep.subr.bf16.mxu0 0
    %2284 = vmatpush1.bf16.msra.mxu0 %v2118
    %2285 = vmatprep.subr.bf16.mxu0 0
    %2286 = vmatpush1.bf16.msra.mxu0 %v2119
    %2287 = vmatprep.subr.bf16.mxu0 0
    %2288 = vmatpush1.bf16.msra.mxu0 %v2120
    %2289 = vmatprep.subr.bf16.mxu0 0
    %2290 = vmatpush1.bf16.msra.mxu0 %v2121
    %2291 = vmatprep.mubr.bf16.mxu0 %v1694
    %2292 = vmatmul.mubr.bf16.gmra.mrb[0].mxu0 %v1693
    %v2293 = vpop.f32.mrb[0].mxu0
    %v2294 = vadd.f32 %v2253, %v2293
    %v2295 = vpop.f32.mrb[0].mxu0
    %v2296 = vpop.f32.mrb[0].mxu0
    %v2297 = vadd.f32 %v2256, %v2296
    %v2298 = vpop.f32.mrb[0].mxu0
    %2299 = vdwg.mxu0
    %2300 = vmatprep.subr.bf16.mxu0 0
    %2301 = vmatpush1.bf16.msra.mxu0 %v2122
    %2302 = vmatprep.subr.bf16.mxu0 0
    %2303 = vmatpush1.bf16.msra.mxu0 %v2123
    %2304 = vmatprep.subr.bf16.mxu0 0
    %2305 = vmatpush1.bf16.msra.mxu0 %v2124
    %2306 = vmatprep.subr.bf16.mxu0 0
    %2307 = vmatpush1.bf16.msra.mxu0 %v2125
    %2308 = vmatprep.subr.bf16.mxu0 0
    %2309 = vmatpush1.bf16.msra.mxu0 %v2126
    %2310 = vmatprep.subr.bf16.mxu0 0
    %2311 = vmatpush1.bf16.msra.mxu0 %v2127
    %2312 = vmatprep.subr.bf16.mxu0 0
    %2313 = vmatpush1.bf16.msra.mxu0 %v2128
    %2314 = vmatprep.subr.bf16.mxu0 0
    %2315 = vmatpush1.bf16.msra.mxu0 %v2129
    %2316 = vmatprep.subr.bf16.mxu0 0
    %2317 = vmatpush1.bf16.msra.mxu0 %v2130
    %2318 = vmatprep.subr.bf16.mxu0 0
    %2319 = vmatpush1.bf16.msra.mxu0 %v2131
    %2320 = vmatprep.subr.bf16.mxu0 0
    %2321 = vmatpush1.bf16.msra.mxu0 %v2132
    %2322 = vmatprep.subr.bf16.mxu0 0
    %2323 = vmatpush1.bf16.msra.mxu0 %v2133
    %2324 = vmatprep.subr.bf16.mxu0 0
    %2325 = vmatpush1.bf16.msra.mxu0 %v2134
    %2326 = vmatprep.subr.bf16.mxu0 0
    %2327 = vmatpush1.bf16.msra.mxu0 %v2135
    %2328 = vmatprep.subr.bf16.mxu0 0
    %2329 = vmatpush1.bf16.msra.mxu0 %v2136
    %2330 = vmatprep.subr.bf16.mxu0 0
    %2331 = vmatpush1.bf16.msra.mxu0 %v2137
    %2332 = vmatprep.mubr.bf16.mxu0 %v1696
    %2333 = vmatmul.mubr.bf16.gmra.mrb[0].mxu0 %v1695
    %v2334 = vpop.f32.mrb[0].mxu0
    %v2335 = vadd.f32 %v2294, %v2334
    %v2336 = vpop.f32.mrb[0].mxu0
    %v2337 = vpop.f32.mrb[0].mxu0
    %v2338 = vadd.f32 %v2297, %v2337
    %v2339 = vpop.f32.mrb[0].mxu0
    %2340 = vdwg.mxu0
    %2341 = vmatprep.subr.bf16.mxu0 0
    %2342 = vmatpush1.bf16.msra.mxu0 %v2138
    %2343 = vmatprep.subr.bf16.mxu0 0
    %2344 = vmatpush1.bf16.msra.mxu0 %v2139
    %2345 = vmatprep.subr.bf16.mxu0 0
    %2346 = vmatpush1.bf16.msra.mxu0 %v2140
    %2347 = vmatprep.subr.bf16.mxu0 0
    %2348 = vmatpush1.bf16.msra.mxu0 %v2141
    %2349 = vmatprep.subr.bf16.mxu0 0
    %2350 = vmatpush1.bf16.msra.mxu0 %v2142
    %2351 = vmatprep.subr.bf16.mxu0 0
    %2352 = vmatpush1.bf16.msra.mxu0 %v2143
    %2353 = vmatprep.subr.bf16.mxu0 0
    %2354 = vmatpush1.bf16.msra.mxu0 %v2144
    %2355 = vmatprep.subr.bf16.mxu0 0
    %2356 = vmatpush1.bf16.msra.mxu0 %v2145
    %2357 = vmatprep.subr.bf16.mxu0 0
    %2358 = vmatpush1.bf16.msra.mxu0 %v2146
    %2359 = vmatprep.subr.bf16.mxu0 0
    %2360 = vmatpush1.bf16.msra.mxu0 %v2147
    %2361 = vmatprep.subr.bf16.mxu0 0
    %2362 = vmatpush1.bf16.msra.mxu0 %v2148
    %2363 = vmatprep.subr.bf16.mxu0 0
    %2364 = vmatpush1.bf16.msra.mxu0 %v2149
    %2365 = vmatprep.subr.bf16.mxu0 0
    %2366 = vmatpush1.bf16.msra.mxu0 %v2150
    %2367 = vmatprep.subr.bf16.mxu0 0
    %2368 = vmatpush1.bf16.msra.mxu0 %v2151
    %2369 = vmatprep.subr.bf16.mxu0 0
    %2370 = vmatpush1.bf16.msra.mxu0 %v2152
    %2371 = vmatprep.subr.bf16.mxu0 0
    %2372 = vmatpush1.bf16.msra.mxu0 %v2153
    %2373 = vmatprep.mubr.bf16.mxu0 %v1698
    %2374 = vmatmul.mubr.bf16.gmra.mrb[0].mxu0 %v1697
    %v2375 = vpop.f32.mrb[0].mxu0
    %v2376 = vadd.f32 %v2335, %v2375
    %v2377 = vpop.f32.mrb[0].mxu0
    %v2378 = vpop.f32.mrb[0].mxu0
    %v2379 = vadd.f32 %v2338, %v2378
    %v2380 = vpop.f32.mrb[0].mxu0
    %2381 = vdwg.mxu0
    %v2382 = vadd.f32 %v1303, %v2376
    %v2383 = vadd.f32 %v1304, %v2379
    %2384 = vst.msk [vmem:[#allocation2] sm:$0xff] %vm61, %v2382
    %2385 = vst.msk [vmem:[#allocation2 + $0x8] sm:$0xff] %vm61, %v2383
    // Predicated region
    $region58: #{tpu_custom_call.1} parent=1 // pred_check
      _
    $region59: #{tpu_custom_call.1} parent=1 // pred_check_branch
      %2387 = sbr.rel (0) target = $region61
    $region60: #{tpu_custom_call.1} parent=1 // pred_region
      %s2389 = ssub.s32 256, 256
      %2390 = vsyncadd [#allocation3], %s2389
      %s2391 = sshll.u32 [#allocation2], 4
      %s2392 = int_to_ptr.vmem [resolvable:$true] %s2391
      %2397 = dma.vmem_to_hbm [thread:$0]  %s2392, 256, %s14, [#allocation3], 128, 128, 8
    $region61: #{tpu_custom_call.1} parent=1 // pred_fallthru
      _
    // Predicated region
    $region62: #{tpu_custom_call.1} parent=1 // pred_check
      _
    $region63: #{tpu_custom_call.1} parent=1 // pred_check_branch
      %2399 = sbr.rel (0) target = $region65
    $region64: #{tpu_custom_call.1} parent=1 // pred_region
      %2400 = dma.done [#allocation3], 256
    $region65: #{tpu_custom_call.1} parent=1 // pred_fallthru
      _
    %2401 = vsyncpa [#allocation3], 1

// kernel: tpu_custom_call.1
$region0: #{tpu_custom_call.1}
  #allocation0 [shape = 'u32[]', space=smem, size = 0x4, offset = 0x4, fixed_abs, tag = 'smem constant byte address 0x4 - core index']
  #allocation1 [shape = 'u32[144,128]{1,0:T(1,128)}', space=vmem, size = 0x12000, scoped, tag = 'internal scratch']
  %s0 = inlined_call_operand.vmem [shape: f32[2,8,32], index: 0, kind: input, shape index: {}]
  %s1 = inlined_call_operand.vmem [shape: s8[2,8,8], index: 1, kind: input, shape index: {}]
  %s2 = inlined_call_operand.vmem [shape: bf16[32,96], index: 2, kind: input, shape index: {}]
  %s3 = inlined_call_operand.vmem [shape: f32[1,96], index: 3, kind: input, shape index: {}]
  %s4 = inlined_call_operand.vmem [shape: bf16[32,32], index: 4, kind: input, shape index: {}]
  %s5 = inlined_call_operand.vmem [shape: f32[1,32], index: 5, kind: input, shape index: {}]
  %s6 = inlined_call_operand.vmem [shape: f32[1,32], index: 6, kind: input, shape index: {}]
  %s7 = inlined_call_operand.vmem [shape: f32[1,32], index: 7, kind: input, shape index: {}]
  %s8 = inlined_call_operand.vmem [shape: f32[1,32], index: 8, kind: input, shape index: {}]
  %s9 = inlined_call_operand.vmem [shape: f32[1,32], index: 9, kind: input, shape index: {}]
  %s10 = inlined_call_operand.vmem [shape: bf16[32,1024], index: 10, kind: input, shape index: {}]
  %s11 = inlined_call_operand.vmem [shape: f32[1,1024], index: 11, kind: input, shape index: {}]
  %s12 = inlined_call_operand.vmem [shape: bf16[1024,32], index: 12, kind: input, shape index: {}]
  %s13 = inlined_call_operand.vmem [shape: f32[1,32], index: 13, kind: input, shape index: {}]
  %s14 = inlined_call_operand.hbm [shape: f32[2,8,32], index: 14, kind: output, shape index: {}]
  %s15 = sld [smem:[#allocation0]]
  $region66: #{tpu_custom_call.1} parent=0
    _
  %s17 = ssub.s32 1, %s15
  %s18 = scalar_select 0, %s17, %s15
  $region1: #{tpu_custom_call.1} parent=0
    #allocation2 [shape = 'u8[8192]{0}', space=vmem, size = 0x2000, scoped, tag = 'output window, operand 0, single buffered']
    #allocation3 [shape = 's32[1]{0}', space=sflag, size = 0x4, scoped, tag = 'scoped memory for tpu_custom_call.1']
    %19 = vsyncpa [#allocation3], 0
    // Predicated region
    $region2: #{tpu_custom_call.1} parent=1 // pred_check
      _
    $region3: #{tpu_custom_call.1} parent=1 // pred_check_branch
      %21 = sbr.rel (0) target = $region5
    $region4: #{tpu_custom_call.1} parent=1 // pred_region
      _
    $region5: #{tpu_custom_call.1} parent=1 // pred_fallthru
      _
    // Predicated region
    $region6: #{tpu_custom_call.1} parent=1 // pred_check
      _
    $region7: #{tpu_custom_call.1} parent=1 // pred_check_branch
      %23 = sbr.rel (0) target = $region9
    $region8: #{tpu_custom_call.1} parent=1 // pred_region
      _
    $region9: #{tpu_custom_call.1} parent=1 // pred_fallthru
      _
    // Predicated region
    $region10: #{tpu_custom_call.1} parent=1 // pred_check
      _
    $region11: #{tpu_custom_call.1} parent=1 // pred_check_branch
      %25 = sbr.rel (0) target = $region13
    $region12: #{tpu_custom_call.1} parent=1 // pred_region
      _
    $region13: #{tpu_custom_call.1} parent=1 // pred_fallthru
      _
    // Predicated region
    $region14: #{tpu_custom_call.1} parent=1 // pred_check
      _
    $region15: #{tpu_custom_call.1} parent=1 // pred_check_branch
      %27 = sbr.rel (0) target = $region17
    $region16: #{tpu_custom_call.1} parent=1 // pred_region
      _
    $region17: #{tpu_custom_call.1} parent=1 // pred_fallthru
      _
    // Predicated region
    $region18: #{tpu_custom_call.1} parent=1 // pred_check
      _
    $region19: #{tpu_custom_call.1} parent=1 // pred_check_branch
      %29 = sbr.rel (0) target = $region21
    $region20: #{tpu_custom_call.1} parent=1 // pred_region
      _
    $region21: #{tpu_custom_call.1} parent=1 // pred_fallthru
      _
    // Predicated region
    $region22: #{tpu_custom_call.1} parent=1 // pred_check
      _
    $region23: #{tpu_custom_call.1} parent=1 // pred_check_branch
      %31 = sbr.rel (0) target = $region25
    $region24: #{tpu_custom_call.1} parent=1 // pred_region
      _
    $region25: #{tpu_custom_call.1} parent=1 // pred_fallthru
      _
    // Predicated region
    $region26: #{tpu_custom_call.1} parent=1 // pred_check
      _
    $region27: #{tpu_custom_call.1} parent=1 // pred_check_branch
      %33 = sbr.rel (0) target = $region29
    $region28: #{tpu_custom_call.1} parent=1 // pred_region
      _
    $region29: #{tpu_custom_call.1} parent=1 // pred_fallthru
      _
    // Predicated region
    $region30: #{tpu_custom_call.1} parent=1 // pred_check
      _
    $region31: #{tpu_custom_call.1} parent=1 // pred_check_branch
      %35 = sbr.rel (0) target = $region33
    $region32: #{tpu_custom_call.1} parent=1 // pred_region
      _
    $region33: #{tpu_custom_call.1} parent=1 // pred_fallthru
      _
    // Predicated region
    $region34: #{tpu_custom_call.1} parent=1 // pred_check
      _
    $region35: #{tpu_custom_call.1} parent=1 // pred_check_branch
      %37 = sbr.rel (0) target = $region37
    $region36: #{tpu_custom_call.1} parent=1 // pred_region
      _
    $region37: #{tpu_custom_call.1} parent=1 // pred_fallthru
      _
    // Predicated region
    $region38: #{tpu_custom_call.1} parent=1 // pred_check
      _
    $region39: #{tpu_custom_call.1} parent=1 // pred_check_branch
      %39 = sbr.rel (0) target = $region41
    $region40: #{tpu_custom_call.1} parent=1 // pred_region
      _
    $region41: #{tpu_custom_call.1} parent=1 // pred_fallthru
      _
    // Predicated region
    $region42: #{tpu_custom_call.1} parent=1 // pred_check
      _
    $region43: #{tpu_custom_call.1} parent=1 // pred_check_branch
      %41 = sbr.rel (0) target = $region45
    $region44: #{tpu_custom_call.1} parent=1 // pred_region
      _
    $region45: #{tpu_custom_call.1} parent=1 // pred_fallthru
      _
    // Predicated region
    $region46: #{tpu_custom_call.1} parent=1 // pred_check
      _
    $region47: #{tpu_custom_call.1} parent=1 // pred_check_branch
      %43 = sbr.rel (0) target = $region49
    $region48: #{tpu_custom_call.1} parent=1 // pred_region
      _
    $region49: #{tpu_custom_call.1} parent=1 // pred_fallthru
      _
    // Predicated region
    $region50: #{tpu_custom_call.1} parent=1 // pred_check
      _
    $region51: #{tpu_custom_call.1} parent=1 // pred_check_branch
      %45 = sbr.rel (0) target = $region53
    $region52: #{tpu_custom_call.1} parent=1 // pred_region
      _
    $region53: #{tpu_custom_call.1} parent=1 // pred_fallthru
      _
    // Predicated region
    $region54: #{tpu_custom_call.1} parent=1 // pred_check
      _
    $region55: #{tpu_custom_call.1} parent=1 // pred_check_branch
      %47 = sbr.rel (0) target = $region57
    $region56: #{tpu_custom_call.1} parent=1 // pred_region
      _
    $region57: #{tpu_custom_call.1} parent=1 // pred_fallthru
      _
    %v51 = vld [vmem:[%s0] sm:$0xff]
    %v52 = vld [vmem:[%s0 + $0x8] sm:$0xff]
    %v53 = vld [vmem:[%s1] sm:$0x3]
    %v54 = vld [vmem:[%s1 + $0x2] sm:$0x3]
    %vm55 = vnez %v53
    %vm56 = vnez %v54
    %v57 = vld [vmem:[%s6] sm:$0x1]
    %v58 = vld [vmem:[%s7] sm:$0x1]
    %v59 = vld [vmem:[%s8] sm:$0x1]
    %v60 = vld [vmem:[%s9] sm:$0x1]
    %vm61 = vcmask 261120
    %v62 = vsel %vm61, %v51, 0.0
    %63 = vadd.xlane.f32.xlu0 %v62
    %v64 = vpop.xlane.xlu0 %63
    %v65 = vsel %vm61, %v52, 0.0
    %66 = vadd.xlane.f32.xlu0 %v65
    %v67 = vpop.xlane.xlu0 %66
    %v68 = vrcp.pop 32.0
    %v69 = vmul.f32 %v64, %v68
    %v70 = vmul.f32 %v67, %v68
    %v71 = vsub.f32 %v51, %v69
    %v72 = vsub.f32 %v52, %v70
    %v73 = vmul.f32 %v71, %v71
    %v74 = vmul.f32 %v72, %v72
    %v75 = vsel %vm61, %v73, 0.0
    %76 = vadd.xlane.f32.xlu0 %v75
    %v77 = vpop.xlane.xlu0 %76
    %v78 = vsel %vm61, %v74, 0.0
    %79 = vadd.xlane.f32.xlu0 %v78
    %v80 = vpop.xlane.xlu0 %79
    %v81 = vrcp.pop 31.0
    %v82 = vmul.f32 %v77, %v81
    %v83 = vmul.f32 %v80, %v81
    %v84 = vrsqrt.pop %v82
    %v85 = vmul.f32 %v82, %v84
    %vm86 = vcmp.eq.f32.partialorder %v82, inf
    %v87 = vsel %vm86, %v82, %v85
    %vm88 = vcmp.eq.f32.partialorder %v82, 0.0
    %v89 = vand.u32 %v82, 2147483648
    %v90 = vsel %vm88, %v89, %v87
    %v91 = vrsqrt.pop %v83
    %v92 = vmul.f32 %v83, %v91
    %vm93 = vcmp.eq.f32.partialorder %v83, inf
    %v94 = vsel %vm93, %v83, %v92
    %vm95 = vcmp.eq.f32.partialorder %v83, 0.0
    %v96 = vand.u32 %v83, 2147483648
    %v97 = vsel %vm95, %v96, %v94
    %v98 = vadd.f32 %v90, 1e-06
    %v99 = vadd.f32 %v97, 1e-06
    %v101 = vlaneseq
    %v102 = vshrl.u32 %v101, 7
    %v103 = vsub.s32 0, %v102
    %v104 = vrot.slane %v57, %v103
    %v106 = vmul.f32 %v104, %v71
    %v107 = vmul.f32 %v104, %v72
    %v108 = vrcp.pop %v98
    %v109 = vmul.f32 %v106, %v108
    %v110 = vrcp.pop %v99
    %v111 = vmul.f32 %v107, %v110
    %v113 = vlaneseq
    %v114 = vshrl.u32 %v113, 7
    %v115 = vsub.s32 0, %v114
    %v116 = vrot.slane %v58, %v115
    %v118 = vadd.f32 %v109, %v116
    %v119 = vadd.f32 %v111, %v116
    %v120 = vpack.c.bf16 %v119, %v118
    %v121 = vld [vmem:[%s2] sm:$0xf]
    %v122 = vld [vmem:[%s2 + $0x4] sm:$0xf]
    %v123 = vld [vmem:[%s2 + $0x8] sm:$0xf]
    %v124 = vld [vmem:[%s2 + $0xc] sm:$0xf]
    %v125 = vld [vmem:[%s3] sm:$0x1]
    %v127 = vlaneseq
    %v128 = vshrl.u32 %v127, 7
    %v129 = vsub.s32 0, %v128
    %v130 = vrot.slane %v125, %v129
    %v136 = vunpack.c.l.b16 %v121
    %v137 = vunpack.c.l.b16 %v122
    %v138 = vunpack.c.l.b16 %v123
    %v139 = vunpack.c.l.b16 %v124
    %v140 = vpack.c.b16 %v137, %v136
    %v141 = vpack.c.b16 %v139, %v138
    %v145 = vsel %vm61, %v120, 0
    %147 = vmatprep.subr.bf16.mxu0 0
    %148 = vmatpush1.bf16.msra.mxu0 %v140
    %149 = vmatprep.subr.bf16.mxu0 0
    %150 = vmatpush1.bf16.msra.mxu0 %v141
    %151 = vmatprep.subr.bf16.mxu0 0
    %152 = vmatpush1.bf16.msra.mxu0 0
    %153 = vmatprep.subr.bf16.mxu0 0
    %154 = vmatpush1.bf16.msra.mxu0 0
    %155 = vmatprep.subr.bf16.mxu0 0
    %156 = vmatpush1.bf16.msra.mxu0 0
    %157 = vmatprep.subr.bf16.mxu0 0
    %158 = vmatpush1.bf16.msra.mxu0 0
    %159 = vmatprep.subr.bf16.mxu0 0
    %160 = vmatpush1.bf16.msra.mxu0 0
    %161 = vmatprep.subr.bf16.mxu0 0
    %162 = vmatpush1.bf16.msra.mxu0 0
    %163 = vmatprep.subr.bf16.mxu0 0
    %164 = vmatpush1.bf16.msra.mxu0 0
    %165 = vmatprep.subr.bf16.mxu0 0
    %166 = vmatpush1.bf16.msra.mxu0 0
    %167 = vmatprep.subr.bf16.mxu0 0
    %168 = vmatpush1.bf16.msra.mxu0 0
    %169 = vmatprep.subr.bf16.mxu0 0
    %170 = vmatpush1.bf16.msra.mxu0 0
    %171 = vmatprep.subr.bf16.mxu0 0
    %172 = vmatpush1.bf16.msra.mxu0 0
    %173 = vmatprep.subr.bf16.mxu0 0
    %174 = vmatpush1.bf16.msra.mxu0 0
    %175 = vmatprep.subr.bf16.mxu0 0
    %176 = vmatpush1.bf16.msra.mxu0 0
    %177 = vmatprep.subr.bf16.mxu0 0
    %178 = vmatpush1.bf16.msra.mxu0 0
    %179 = vmatprep.mubr.bf16.mxu0 0
    %180 = vmatmul.mubr.bf16.gmra.mrb[0].mxu0 %v145
    %v181 = vpop.f32.mrb[0].mxu0
    %v182 = vadd.f32 %v130, %v181
    %v183 = vpop.f32.mrb[0].mxu0
    %v184 = vpop.f32.mrb[0].mxu0
    %v185 = vadd.f32 %v130, %v184
    %v186 = vpop.f32.mrb[0].mxu0
    %187 = vdwg.mxu0
    %v188 = vpack.c.bf16 %v185, %v182
    %v190 = vunpack.c.l.b16 %v188
    %v191 = vunpack.c.h.b16 %v188
    %v192 = vpack.c.b16 %v190, %v190
    %v193 = vpack.c.b16 %v191, %v191
    %194 = vrot.lane.b32.xlu0 %v192, 96
    %v195 = vpop.permute.xlu0 %194
    %vm196 = vcmask 64512
    %v198 = vsel %vm196, %v192, 0
    %v201 = vsel %vm196, %v195, 0
    %203 = vmatprep.subr.bf16.mxu0 0
    %204 = vmatpush1.bf16.xpose.msra.mxu0 %v201
    %205 = vmatprep.subr.bf16.mxu0 0
    %206 = vmatpush1.bf16.xpose.msra.mxu0 0
    %207 = vmatprep.subr.bf16.mxu0 0
    %208 = vmatpush1.bf16.xpose.msra.mxu0 0
    %209 = vmatprep.subr.bf16.mxu0 0
    %210 = vmatpush1.bf16.xpose.msra.mxu0 0
    %211 = vmatprep.subr.bf16.mxu0 0
    %212 = vmatpush1.bf16.xpose.msra.mxu0 0
    %213 = vmatprep.subr.bf16.mxu0 0
    %214 = vmatpush1.bf16.xpose.msra.mxu0 0
    %215 = vmatprep.subr.bf16.mxu0 0
    %216 = vmatpush1.bf16.xpose.msra.mxu0 0
    %217 = vmatprep.subr.bf16.mxu0 0
    %218 = vmatpush1.bf16.xpose.msra.mxu0 0
    %219 = vmatprep.subr.bf16.mxu0 0
    %220 = vmatpush1.bf16.xpose.msra.mxu0 0
    %221 = vmatprep.subr.bf16.mxu0 0
    %222 = vmatpush1.bf16.xpose.msra.mxu0 0
    %223 = vmatprep.subr.bf16.mxu0 0
    %224 = vmatpush1.bf16.xpose.msra.mxu0 0
    %225 = vmatprep.subr.bf16.mxu0 0
    %226 = vmatpush1.bf16.xpose.msra.mxu0 0
    %227 = vmatprep.subr.bf16.mxu0 0
    %228 = vmatpush1.bf16.xpose.msra.mxu0 0
    %229 = vmatprep.subr.bf16.mxu0 0
    %230 = vmatpush1.bf16.xpose.msra.mxu0 0
    %231 = vmatprep.subr.bf16.mxu0 0
    %232 = vmatpush1.bf16.xpose.msra.mxu0 0
    %233 = vmatprep.subr.bf16.mxu0 0
    %234 = vmatpush1.bf16.xpose.msra.mxu0 0
    %235 = vmatprep.mubr.bf16.mxu0 0
    %236 = vmatmul.mubr.bf16.gmra.mrb[0].mxu0 %v198
    %v237 = vpop.f32.mrb[0].mxu0
    %v238 = vadd.f32 0.0, %v237
    %v239 = vpop.f32.mrb[0].mxu0
    %v240 = vpop.f32.mrb[0].mxu0
    %v241 = vpop.f32.mrb[0].mxu0
    %242 = vdwg.mxu0
    %243 = vrot.lane.b32.xlu0 %v193, 96
    %v244 = vpop.permute.xlu0 %243
    %v246 = vsel %vm196, %v193, 0
    %v249 = vsel %vm196, %v244, 0
    %251 = vmatprep.subr.bf16.mxu0 0
    %252 = vmatpush1.bf16.xpose.msra.mxu0 %v249
    %253 = vmatprep.subr.bf16.mxu0 0
    %254 = vmatpush1.bf16.xpose.msra.mxu0 0
    %255 = vmatprep.subr.bf16.mxu0 0
    %256 = vmatpush1.bf16.xpose.msra.mxu0 0
    %257 = vmatprep.subr.bf16.mxu0 0
    %258 = vmatpush1.bf16.xpose.msra.mxu0 0
    %259 = vmatprep.subr.bf16.mxu0 0
    %260 = vmatpush1.bf16.xpose.msra.mxu0 0
    %261 = vmatprep.subr.bf16.mxu0 0
    %262 = vmatpush1.bf16.xpose.msra.mxu0 0
    %263 = vmatprep.subr.bf16.mxu0 0
    %264 = vmatpush1.bf16.xpose.msra.mxu0 0
    %265 = vmatprep.subr.bf16.mxu0 0
    %266 = vmatpush1.bf16.xpose.msra.mxu0 0
    %267 = vmatprep.subr.bf16.mxu0 0
    %268 = vmatpush1.bf16.xpose.msra.mxu0 0
    %269 = vmatprep.subr.bf16.mxu0 0
    %270 = vmatpush1.bf16.xpose.msra.mxu0 0
    %271 = vmatprep.subr.bf16.mxu0 0
    %272 = vmatpush1.bf16.xpose.msra.mxu0 0
    %273 = vmatprep.subr.bf16.mxu0 0
    %274 = vmatpush1.bf16.xpose.msra.mxu0 0
    %275 = vmatprep.subr.bf16.mxu0 0
    %276 = vmatpush1.bf16.xpose.msra.mxu0 0
    %277 = vmatprep.subr.bf16.mxu0 0
    %278 = vmatpush1.bf16.xpose.msra.mxu0 0
    %279 = vmatprep.subr.bf16.mxu0 0
    %280 = vmatpush1.bf16.xpose.msra.mxu0 0
    %281 = vmatprep.subr.bf16.mxu0 0
    %282 = vmatpush1.bf16.xpose.msra.mxu0 0
    %283 = vmatprep.mubr.bf16.mxu0 0
    %284 = vmatmul.mubr.bf16.gmra.mrb[0].mxu0 %v246
    %v285 = vpop.f32.mrb[0].mxu0
    %v286 = vadd.f32 0.0, %v285
    %v287 = vpop.f32.mrb[0].mxu0
    %v288 = vpop.f32.mrb[0].mxu0
    %v289 = vpop.f32.mrb[0].mxu0
    %290 = vdwg.mxu0
    %v291 = vmul.f32 %v238, 0.35355338
    %v292 = vmul.f32 %v286, 0.35355338
    %v293 = vsel %vm55, 16843009, 0
    %v294 = vsel %vm56, 16843009, 0
    %v295 = vunpack.c.0.s8 %v293
    %v296 = vunpack.c.0.s8 %v294
    %vm297 = vcmp.ne.s32.totalorder %v295, 0
    %vm298 = vcmp.ne.s32.totalorder %v296, 0
    %v299 = vsel %vm297, %v291, -1e+09
    %v300 = vsel %vm298, %v292, -1e+09
    %v301 = vsel %vm196, %v299, -inf
    %302 = vmax.xlane.f32.xlu0 %v301
    %v303 = vpop.xlane.xlu0 %302
    %v304 = vsel %vm196, %v300, -inf
    %305 = vmax.xlane.f32.xlu0 %v304
    %v306 = vpop.xlane.xlu0 %305
    %v307 = vsub.f32 %v299, %v303
    %v308 = vsub.f32 %v300, %v306
    %v309 = vmul.f32 %v307, 1.442695
    %v310 = vpow.pop %v309
    %v311 = vmul.f32 %v308, 1.442695
    %v312 = vpow.pop %v311
    %v313 = vsel %vm196, %v310, 0.0
    %314 = vadd.xlane.f32.xlu0 %v313
    %v315 = vpop.xlane.xlu0 %314
    %v316 = vsel %vm196, %v312, 0.0
    %317 = vadd.xlane.f32.xlu0 %v316
    %v318 = vpop.xlane.xlu0 %317
    %v319 = vrcp.pop %v315
    %v320 = vmul.f32 %v310, %v319
    %v321 = vrcp.pop %v318
    %v322 = vmul.f32 %v312, %v321
    %v323 = vpack.c.bf16 %v320, %v320
    %v324 = vpack.c.bf16 %v322, %v322
    %325 = vrot.lane.b32.xlu0 %v192, 64
    %v326 = vpop.permute.xlu0 %325
    %v328 = vsel %vm196, %v323, 0
    %vm330 = vcmask 1043456
    %v332 = vsel %vm330, %v326, 0
    %334 = vmatprep.subr.bf16.mxu0 0
    %335 = vmatpush1.bf16.msra.mxu0 %v332
    %336 = vmatprep.subr.bf16.mxu0 0
    %337 = vmatpush1.bf16.msra.mxu0 0
    %338 = vmatprep.subr.bf16.mxu0 0
    %339 = vmatpush1.bf16.msra.mxu0 0
    %340 = vmatprep.subr.bf16.mxu0 0
    %341 = vmatpush1.bf16.msra.mxu0 0
    %342 = vmatprep.subr.bf16.mxu0 0
    %343 = vmatpush1.bf16.msra.mxu0 0
    %344 = vmatprep.subr.bf16.mxu0 0
    %345 = vmatpush1.bf16.msra.mxu0 0
    %346 = vmatprep.subr.bf16.mxu0 0
    %347 = vmatpush1.bf16.msra.mxu0 0
    %348 = vmatprep.subr.bf16.mxu0 0
    %349 = vmatpush1.bf16.msra.mxu0 0
    %350 = vmatprep.subr.bf16.mxu0 0
    %351 = vmatpush1.bf16.msra.mxu0 0
    %352 = vmatprep.subr.bf16.mxu0 0
    %353 = vmatpush1.bf16.msra.mxu0 0
    %354 = vmatprep.subr.bf16.mxu0 0
    %355 = vmatpush1.bf16.msra.mxu0 0
    %356 = vmatprep.subr.bf16.mxu0 0
    %357 = vmatpush1.bf16.msra.mxu0 0
    %358 = vmatprep.subr.bf16.mxu0 0
    %359 = vmatpush1.bf16.msra.mxu0 0
    %360 = vmatprep.subr.bf16.mxu0 0
    %361 = vmatpush1.bf16.msra.mxu0 0
    %362 = vmatprep.subr.bf16.mxu0 0
    %363 = vmatpush1.bf16.msra.mxu0 0
    %364 = vmatprep.subr.bf16.mxu0 0
    %365 = vmatpush1.bf16.msra.mxu0 0
    %366 = vmatprep.mubr.bf16.mxu0 0
    %367 = vmatmul.mubr.bf16.gmra.mrb[0].mxu0 %v328
    %v368 = vpop.f32.mrb[0].mxu0
    %v369 = vadd.f32 0.0, %v368
    %v370 = vpop.f32.mrb[0].mxu0
    %v371 = vpop.f32.mrb[0].mxu0
    %v372 = vpop.f32.mrb[0].mxu0
    %373 = vdwg.mxu0
    %374 = vrot.lane.b32.xlu0 %v193, 64
    %v375 = vpop.permute.xlu0 %374
    %v377 = vsel %vm196, %v324, 0
    %v380 = vsel %vm330, %v375, 0
    %382 = vmatprep.subr.bf16.mxu0 0
    %383 = vmatpush1.bf16.msra.mxu0 %v380
    %384 = vmatprep.subr.bf16.mxu0 0
    %385 = vmatpush1.bf16.msra.mxu0 0
    %386 = vmatprep.subr.bf16.mxu0 0
    %387 = vmatpush1.bf16.msra.mxu0 0
    %388 = vmatprep.subr.bf16.mxu0 0
    %389 = vmatpush1.bf16.msra.mxu0 0
    %390 = vmatprep.subr.bf16.mxu0 0
    %391 = vmatpush1.bf16.msra.mxu0 0
    %392 = vmatprep.subr.bf16.mxu0 0
    %393 = vmatpush1.bf16.msra.mxu0 0
    %394 = vmatprep.subr.bf16.mxu0 0
    %395 = vmatpush1.bf16.msra.mxu0 0
    %396 = vmatprep.subr.bf16.mxu0 0
    %397 = vmatpush1.bf16.msra.mxu0 0
    %398 = vmatprep.subr.bf16.mxu0 0
    %399 = vmatpush1.bf16.msra.mxu0 0
    %400 = vmatprep.subr.bf16.mxu0 0
    %401 = vmatpush1.bf16.msra.mxu0 0
    %402 = vmatprep.subr.bf16.mxu0 0
    %403 = vmatpush1.bf16.msra.mxu0 0
    %404 = vmatprep.subr.bf16.mxu0 0
    %405 = vmatpush1.bf16.msra.mxu0 0
    %406 = vmatprep.subr.bf16.mxu0 0
    %407 = vmatpush1.bf16.msra.mxu0 0
    %408 = vmatprep.subr.bf16.mxu0 0
    %409 = vmatpush1.bf16.msra.mxu0 0
    %410 = vmatprep.subr.bf16.mxu0 0
    %411 = vmatpush1.bf16.msra.mxu0 0
    %412 = vmatprep.subr.bf16.mxu0 0
    %413 = vmatpush1.bf16.msra.mxu0 0
    %414 = vmatprep.mubr.bf16.mxu0 0
    %415 = vmatmul.mubr.bf16.gmra.mrb[0].mxu0 %v377
    %v416 = vpop.f32.mrb[0].mxu0
    %v417 = vadd.f32 0.0, %v416
    %v418 = vpop.f32.mrb[0].mxu0
    %v419 = vpop.f32.mrb[0].mxu0
    %v420 = vpop.f32.mrb[0].mxu0
    %421 = vdwg.mxu0
    %v422 = vpack.c.bf16 %v417, %v369
    %v423 = vld [vmem:[%s4] sm:$0xf]
    %424 = vrot.lane.b32.xlu0 %v192, 120
    %v425 = vpop.permute.xlu0 %424
    %426 = vrot.lane.b32.xlu0 %v192, 88
    %v427 = vpop.permute.xlu0 %426
    %v429 = vsel %vm196, %v425, 0
    %v432 = vsel %vm196, %v427, 0
    %434 = vmatprep.subr.bf16.mxu0 0
    %435 = vmatpush1.bf16.xpose.msra.mxu0 %v432
    %436 = vmatprep.subr.bf16.mxu0 0
    %437 = vmatpush1.bf16.xpose.msra.mxu0 0
    %438 = vmatprep.subr.bf16.mxu0 0
    %439 = vmatpush1.bf16.xpose.msra.mxu0 0
    %440 = vmatprep.subr.bf16.mxu0 0
    %441 = vmatpush1.bf16.xpose.msra.mxu0 0
    %442 = vmatprep.subr.bf16.mxu0 0
    %443 = vmatpush1.bf16.xpose.msra.mxu0 0
    %444 = vmatprep.subr.bf16.mxu0 0
    %445 = vmatpush1.bf16.xpose.msra.mxu0 0
    %446 = vmatprep.subr.bf16.mxu0 0
    %447 = vmatpush1.bf16.xpose.msra.mxu0 0
    %448 = vmatprep.subr.bf16.mxu0 0
    %449 = vmatpush1.bf16.xpose.msra.mxu0 0
    %450 = vmatprep.subr.bf16.mxu0 0
    %451 = vmatpush1.bf16.xpose.msra.mxu0 0
    %452 = vmatprep.subr.bf16.mxu0 0
    %453 = vmatpush1.bf16.xpose.msra.mxu0 0
    %454 = vmatprep.subr.bf16.mxu0 0
    %455 = vmatpush1.bf16.xpose.msra.mxu0 0
    %456 = vmatprep.subr.bf16.mxu0 0
    %457 = vmatpush1.bf16.xpose.msra.mxu0 0
    %458 = vmatprep.subr.bf16.mxu0 0
    %459 = vmatpush1.bf16.xpose.msra.mxu0 0
    %460 = vmatprep.subr.bf16.mxu0 0
    %461 = vmatpush1.bf16.xpose.msra.mxu0 0
    %462 = vmatprep.subr.bf16.mxu0 0
    %463 = vmatpush1.bf16.xpose.msra.mxu0 0
    %464 = vmatprep.subr.bf16.mxu0 0
    %465 = vmatpush1.bf16.xpose.msra.mxu0 0
    %466 = vmatprep.mubr.bf16.mxu0 0
    %467 = vmatmul.mubr.bf16.gmra.mrb[0].mxu0 %v429
    %v468 = vpop.f32.mrb[0].mxu0
    %v469 = vadd.f32 0.0, %v468
    %v470 = vpop.f32.mrb[0].mxu0
    %v471 = vpop.f32.mrb[0].mxu0
    %v472 = vpop.f32.mrb[0].mxu0
    %473 = vdwg.mxu0
    %474 = vrot.lane.b32.xlu0 %v193, 120
    %v475 = vpop.permute.xlu0 %474
    %476 = vrot.lane.b32.xlu0 %v193, 88
    %v477 = vpop.permute.xlu0 %476
    %v479 = vsel %vm196, %v475, 0
    %v482 = vsel %vm196, %v477, 0
    %484 = vmatprep.subr.bf16.mxu0 0
    %485 = vmatpush1.bf16.xpose.msra.mxu0 %v482
    %486 = vmatprep.subr.bf16.mxu0 0
    %487 = vmatpush1.bf16.xpose.msra.mxu0 0
    %488 = vmatprep.subr.bf16.mxu0 0
    %489 = vmatpush1.bf16.xpose.msra.mxu0 0
    %490 = vmatprep.subr.bf16.mxu0 0
    %491 = vmatpush1.bf16.xpose.msra.mxu0 0
    %492 = vmatprep.subr.bf16.mxu0 0
    %493 = vmatpush1.bf16.xpose.msra.mxu0 0
    %494 = vmatprep.subr.bf16.mxu0 0
    %495 = vmatpush1.bf16.xpose.msra.mxu0 0
    %496 = vmatprep.subr.bf16.mxu0 0
    %497 = vmatpush1.bf16.xpose.msra.mxu0 0
    %498 = vmatprep.subr.bf16.mxu0 0
    %499 = vmatpush1.bf16.xpose.msra.mxu0 0
    %500 = vmatprep.subr.bf16.mxu0 0
    %501 = vmatpush1.bf16.xpose.msra.mxu0 0
    %502 = vmatprep.subr.bf16.mxu0 0
    %503 = vmatpush1.bf16.xpose.msra.mxu0 0
    %504 = vmatprep.subr.bf16.mxu0 0
    %505 = vmatpush1.bf16.xpose.msra.mxu0 0
    %506 = vmatprep.subr.bf16.mxu0 0
    %507 = vmatpush1.bf16.xpose.msra.mxu0 0
    %508 = vmatprep.subr.bf16.mxu0 0
    %509 = vmatpush1.bf16.xpose.msra.mxu0 0
    %510 = vmatprep.subr.bf16.mxu0 0
    %511 = vmatpush1.bf16.xpose.msra.mxu0 0
    %512 = vmatprep.subr.bf16.mxu0 0
    %513 = vmatpush1.bf16.xpose.msra.mxu0 0
    %514 = vmatprep.subr.bf16.mxu0 0
    %515 = vmatpush1.bf16.xpose.msra.mxu0 0
    %516 = vmatprep.mubr.bf16.mxu0 0
    %517 = vmatmul.mubr.bf16.gmra.mrb[0].mxu0 %v479
    %v518 = vpop.f32.mrb[0].mxu0
    %v519 = vadd.f32 0.0, %v518
    %v520 = vpop.f32.mrb[0].mxu0
    %v521 = vpop.f32.mrb[0].mxu0
    %v522 = vpop.f32.mrb[0].mxu0
    %523 = vdwg.mxu0
    %v524 = vmul.f32 %v469, 0.35355338
    %v525 = vmul.f32 %v519, 0.35355338
    %v526 = vsel %vm297, %v524, -1e+09
    %v527 = vsel %vm298, %v525, -1e+09
    %v528 = vsel %vm196, %v526, -inf
    %529 = vmax.xlane.f32.xlu0 %v528
    %v530 = vpop.xlane.xlu0 %529
    %v531 = vsel %vm196, %v527, -inf
    %532 = vmax.xlane.f32.xlu0 %v531
    %v533 = vpop.xlane.xlu0 %532
    %v534 = vsub.f32 %v526, %v530
    %v535 = vsub.f32 %v527, %v533
    %v536 = vmul.f32 %v534, 1.442695
    %v537 = vpow.pop %v536
    %v538 = vmul.f32 %v535, 1.442695
    %v539 = vpow.pop %v538
    %v540 = vsel %vm196, %v537, 0.0
    %541 = vadd.xlane.f32.xlu0 %v540
    %v542 = vpop.xlane.xlu0 %541
    %v543 = vsel %vm196, %v539, 0.0
    %544 = vadd.xlane.f32.xlu0 %v543
    %v545 = vpop.xlane.xlu0 %544
    %v546 = vrcp.pop %v542
    %v547 = vmul.f32 %v537, %v546
    %v548 = vrcp.pop %v545
    %v549 = vmul.f32 %v539, %v548
    %v550 = vpack.c.bf16 %v547, %v547
    %v551 = vpack.c.bf16 %v549, %v549
    %552 = vrot.lane.b32.xlu0 %v192, 56
    %v553 = vpop.permute.xlu0 %552
    %v555 = vsel %vm196, %v550, 0
    %v558 = vsel %vm330, %v553, 0
    %560 = vmatprep.subr.bf16.mxu0 0
    %561 = vmatpush1.bf16.msra.mxu0 %v558
    %562 = vmatprep.subr.bf16.mxu0 0
    %563 = vmatpush1.bf16.msra.mxu0 0
    %564 = vmatprep.subr.bf16.mxu0 0
    %565 = vmatpush1.bf16.msra.mxu0 0
    %566 = vmatprep.subr.bf16.mxu0 0
    %567 = vmatpush1.bf16.msra.mxu0 0
    %568 = vmatprep.subr.bf16.mxu0 0
    %569 = vmatpush1.bf16.msra.mxu0 0
    %570 = vmatprep.subr.bf16.mxu0 0
    %571 = vmatpush1.bf16.msra.mxu0 0
    %572 = vmatprep.subr.bf16.mxu0 0
    %573 = vmatpush1.bf16.msra.mxu0 0
    %574 = vmatprep.subr.bf16.mxu0 0
    %575 = vmatpush1.bf16.msra.mxu0 0
    %576 = vmatprep.subr.bf16.mxu0 0
    %577 = vmatpush1.bf16.msra.mxu0 0
    %578 = vmatprep.subr.bf16.mxu0 0
    %579 = vmatpush1.bf16.msra.mxu0 0
    %580 = vmatprep.subr.bf16.mxu0 0
    %581 = vmatpush1.bf16.msra.mxu0 0
    %582 = vmatprep.subr.bf16.mxu0 0
    %583 = vmatpush1.bf16.msra.mxu0 0
    %584 = vmatprep.subr.bf16.mxu0 0
    %585 = vmatpush1.bf16.msra.mxu0 0
    %586 = vmatprep.subr.bf16.mxu0 0
    %587 = vmatpush1.bf16.msra.mxu0 0
    %588 = vmatprep.subr.bf16.mxu0 0
    %589 = vmatpush1.bf16.msra.mxu0 0
    %590 = vmatprep.subr.bf16.mxu0 0
    %591 = vmatpush1.bf16.msra.mxu0 0
    %592 = vmatprep.mubr.bf16.mxu0 0
    %593 = vmatmul.mubr.bf16.gmra.mrb[0].mxu0 %v555
    %v594 = vpop.f32.mrb[0].mxu0
    %v595 = vadd.f32 0.0, %v594
    %v596 = vpop.f32.mrb[0].mxu0
    %v597 = vpop.f32.mrb[0].mxu0
    %v598 = vpop.f32.mrb[0].mxu0
    %599 = vdwg.mxu0
    %600 = vrot.lane.b32.xlu0 %v193, 56
    %v601 = vpop.permute.xlu0 %600
    %v603 = vsel %vm196, %v551, 0
    %v606 = vsel %vm330, %v601, 0
    %608 = vmatprep.subr.bf16.mxu0 0
    %609 = vmatpush1.bf16.msra.mxu0 %v606
    %610 = vmatprep.subr.bf16.mxu0 0
    %611 = vmatpush1.bf16.msra.mxu0 0
    %612 = vmatprep.subr.bf16.mxu0 0
    %613 = vmatpush1.bf16.msra.mxu0 0
    %614 = vmatprep.subr.bf16.mxu0 0
    %615 = vmatpush1.bf16.msra.mxu0 0
    %616 = vmatprep.subr.bf16.mxu0 0
    %617 = vmatpush1.bf16.msra.mxu0 0
    %618 = vmatprep.subr.bf16.mxu0 0
    %619 = vmatpush1.bf16.msra.mxu0 0
    %620 = vmatprep.subr.bf16.mxu0 0
    %621 = vmatpush1.bf16.msra.mxu0 0
    %622 = vmatprep.subr.bf16.mxu0 0
    %623 = vmatpush1.bf16.msra.mxu0 0
    %624 = vmatprep.subr.bf16.mxu0 0
    %625 = vmatpush1.bf16.msra.mxu0 0
    %626 = vmatprep.subr.bf16.mxu0 0
    %627 = vmatpush1.bf16.msra.mxu0 0
    %628 = vmatprep.subr.bf16.mxu0 0
    %629 = vmatpush1.bf16.msra.mxu0 0
    %630 = vmatprep.subr.bf16.mxu0 0
    %631 = vmatpush1.bf16.msra.mxu0 0
    %632 = vmatprep.subr.bf16.mxu0 0
    %633 = vmatpush1.bf16.msra.mxu0 0
    %634 = vmatprep.subr.bf16.mxu0 0
    %635 = vmatpush1.bf16.msra.mxu0 0
    %636 = vmatprep.subr.bf16.mxu0 0
    %637 = vmatpush1.bf16.msra.mxu0 0
    %638 = vmatprep.subr.bf16.mxu0 0
    %639 = vmatpush1.bf16.msra.mxu0 0
    %640 = vmatprep.mubr.bf16.mxu0 0
    %641 = vmatmul.mubr.bf16.gmra.mrb[0].mxu0 %v603
    %v642 = vpop.f32.mrb[0].mxu0
    %v643 = vadd.f32 0.0, %v642
    %v644 = vpop.f32.mrb[0].mxu0
    %v645 = vpop.f32.mrb[0].mxu0
    %v646 = vpop.f32.mrb[0].mxu0
    %647 = vdwg.mxu0
    %v648 = vpack.c.bf16 %v643, %v595
    %v649 = vld [vmem:[%s4 + $0x4] sm:$0xf]
    %v651 = vsel %vm196, %v648, 0
    %v654 = vsel %vm330, %v649, 0
    %656 = vmatprep.subr.bf16.mxu0 0
    %657 = vmatpush1.bf16.msra.mxu0 %v654
    %658 = vmatprep.subr.bf16.mxu0 0
    %659 = vmatpush1.bf16.msra.mxu0 0
    %660 = vmatprep.subr.bf16.mxu0 0
    %661 = vmatpush1.bf16.msra.mxu0 0
    %662 = vmatprep.subr.bf16.mxu0 0
    %663 = vmatpush1.bf16.msra.mxu0 0
    %664 = vmatprep.subr.bf16.mxu0 0
    %665 = vmatpush1.bf16.msra.mxu0 0
    %666 = vmatprep.subr.bf16.mxu0 0
    %667 = vmatpush1.bf16.msra.mxu0 0
    %668 = vmatprep.subr.bf16.mxu0 0
    %669 = vmatpush1.bf16.msra.mxu0 0
    %670 = vmatprep.subr.bf16.mxu0 0
    %671 = vmatpush1.bf16.msra.mxu0 0
    %672 = vmatprep.subr.bf16.mxu0 0
    %673 = vmatpush1.bf16.msra.mxu0 0
    %674 = vmatprep.subr.bf16.mxu0 0
    %675 = vmatpush1.bf16.msra.mxu0 0
    %676 = vmatprep.subr.bf16.mxu0 0
    %677 = vmatpush1.bf16.msra.mxu0 0
    %678 = vmatprep.subr.bf16.mxu0 0
    %679 = vmatpush1.bf16.msra.mxu0 0
    %680 = vmatprep.subr.bf16.mxu0 0
    %681 = vmatpush1.bf16.msra.mxu0 0
    %682 = vmatprep.subr.bf16.mxu0 0
    %683 = vmatpush1.bf16.msra.mxu0 0
    %684 = vmatprep.subr.bf16.mxu0 0
    %685 = vmatpush1.bf16.msra.mxu0 0
    %686 = vmatprep.subr.bf16.mxu0 0
    %687 = vmatpush1.bf16.msra.mxu0 0
    %688 = vmatprep.mubr.bf16.mxu0 0
    %689 = vmatmul.mubr.bf16.gmra.mrb[0].mxu0 %v651
    %v690 = vpop.f32.mrb[0].mxu0
    %v691 = vadd.f32 0.0, %v690
    %v692 = vpop.f32.mrb[0].mxu0
    %v693 = vpop.f32.mrb[0].mxu0
    %v694 = vadd.f32 0.0, %v693
    %v695 = vpop.f32.mrb[0].mxu0
    %696 = vdwg.mxu0
    %v698 = vsel %vm196, %v422, 0
    %v701 = vsel %vm330, %v423, 0
    %703 = vmatprep.subr.bf16.mxu0 0
    %704 = vmatpush1.bf16.msra.mxu0 %v701
    %705 = vmatprep.subr.bf16.mxu0 0
    %706 = vmatpush1.bf16.msra.mxu0 0
    %707 = vmatprep.subr.bf16.mxu0 0
    %708 = vmatpush1.bf16.msra.mxu0 0
    %709 = vmatprep.subr.bf16.mxu0 0
    %710 = vmatpush1.bf16.msra.mxu0 0
    %711 = vmatprep.subr.bf16.mxu0 0
    %712 = vmatpush1.bf16.msra.mxu0 0
    %713 = vmatprep.subr.bf16.mxu0 0
    %714 = vmatpush1.bf16.msra.mxu0 0
    %715 = vmatprep.subr.bf16.mxu0 0
    %716 = vmatpush1.bf16.msra.mxu0 0
    %717 = vmatprep.subr.bf16.mxu0 0
    %718 = vmatpush1.bf16.msra.mxu0 0
    %719 = vmatprep.subr.bf16.mxu0 0
    %720 = vmatpush1.bf16.msra.mxu0 0
    %721 = vmatprep.subr.bf16.mxu0 0
    %722 = vmatpush1.bf16.msra.mxu0 0
    %723 = vmatprep.subr.bf16.mxu0 0
    %724 = vmatpush1.bf16.msra.mxu0 0
    %725 = vmatprep.subr.bf16.mxu0 0
    %726 = vmatpush1.bf16.msra.mxu0 0
    %727 = vmatprep.subr.bf16.mxu0 0
    %728 = vmatpush1.bf16.msra.mxu0 0
    %729 = vmatprep.subr.bf16.mxu0 0
    %730 = vmatpush1.bf16.msra.mxu0 0
    %731 = vmatprep.subr.bf16.mxu0 0
    %732 = vmatpush1.bf16.msra.mxu0 0
    %733 = vmatprep.subr.bf16.mxu0 0
    %734 = vmatpush1.bf16.msra.mxu0 0
    %735 = vmatprep.mubr.bf16.mxu0 0
    %736 = vmatmul.mubr.bf16.gmra.mrb[0].mxu0 %v698
    %v737 = vpop.f32.mrb[0].mxu0
    %v738 = vadd.f32 %v691, %v737
    %v739 = vpop.f32.mrb[0].mxu0
    %v740 = vpop.f32.mrb[0].mxu0
    %v741 = vadd.f32 %v694, %v740
    %v742 = vpop.f32.mrb[0].mxu0
    %743 = vdwg.mxu0
    %744 = vrot.lane.b32.xlu0 %v192, 112
    %v745 = vpop.permute.xlu0 %744
    %746 = vrot.lane.b32.xlu0 %v192, 80
    %v747 = vpop.permute.xlu0 %746
    %v749 = vsel %vm196, %v745, 0
    %v752 = vsel %vm196, %v747, 0
    %754 = vmatprep.subr.bf16.mxu0 0
    %755 = vmatpush1.bf16.xpose.msra.mxu0 %v752
    %756 = vmatprep.subr.bf16.mxu0 0
    %757 = vmatpush1.bf16.xpose.msra.mxu0 0
    %758 = vmatprep.subr.bf16.mxu0 0
    %759 = vmatpush1.bf16.xpose.msra.mxu0 0
    %760 = vmatprep.subr.bf16.mxu0 0
    %761 = vmatpush1.bf16.xpose.msra.mxu0 0
    %762 = vmatprep.subr.bf16.mxu0 0
    %763 = vmatpush1.bf16.xpose.msra.mxu0 0
    %764 = vmatprep.subr.bf16.mxu0 0
    %765 = vmatpush1.bf16.xpose.msra.mxu0 0
    %766 = vmatprep.subr.bf16.mxu0 0
    %767 = vmatpush1.bf16.xpose.msra.mxu0 0
    %768 = vmatprep.subr.bf16.mxu0 0
    %769 = vmatpush1.bf16.xpose.msra.mxu0 0
    %770 = vmatprep.subr.bf16.mxu0 0
    %771 = vmatpush1.bf16.xpose.msra.mxu0 0
    %772 = vmatprep.subr.bf16.mxu0 0
    %773 = vmatpush1.bf16.xpose.msra.mxu0 0
    %774 = vmatprep.subr.bf16.mxu0 0
    %775 = vmatpush1.bf16.xpose.msra.mxu0 0
    %776 = vmatprep.subr.bf16.mxu0 0
    %777 = vmatpush1.bf16.xpose.msra.mxu0 0
    %778 = vmatprep.subr.bf16.mxu0 0
    %779 = vmatpush1.bf16.xpose.msra.mxu0 0
    %780 = vmatprep.subr.bf16.mxu0 0
    %781 = vmatpush1.bf16.xpose.msra.mxu0 0
    %782 = vmatprep.subr.bf16.mxu0 0
    %783 = vmatpush1.bf16.xpose.msra.mxu0 0
    %784 = vmatprep.subr.bf16.mxu0 0
    %785 = vmatpush1.bf16.xpose.msra.mxu0 0
    %786 = vmatprep.mubr.bf16.mxu0 0
    %787 = vmatmul.mubr.bf16.gmra.mrb[0].mxu0 %v749
    %v788 = vpop.f32.mrb[0].mxu0
    %v789 = vadd.f32 0.0, %v788
    %v790 = vpop.f32.mrb[0].mxu0
    %v791 = vpop.f32.mrb[0].mxu0
    %v792 = vpop.f32.mrb[0].mxu0
    %793 = vdwg.mxu0
    %794 = vrot.lane.b32.xlu0 %v193, 112
    %v795 = vpop.permute.xlu0 %794
    %796 = vrot.lane.b32.xlu0 %v193, 80
    %v797 = vpop.permute.xlu0 %796
    %v799 = vsel %vm196, %v795, 0
    %v802 = vsel %vm196, %v797, 0
    %804 = vmatprep.subr.bf16.mxu0 0
    %805 = vmatpush1.bf16.xpose.msra.mxu0 %v802
    %806 = vmatprep.subr.bf16.mxu0 0
    %807 = vmatpush1.bf16.xpose.msra.mxu0 0
    %808 = vmatprep.subr.bf16.mxu0 0
    %809 = vmatpush1.bf16.xpose.msra.mxu0 0
    %810 = vmatprep.subr.bf16.mxu0 0
    %811 = vmatpush1.bf16.xpose.msra.mxu0 0
    %812 = vmatprep.subr.bf16.mxu0 0
    %813 = vmatpush1.bf16.xpose.msra.mxu0 0
    %814 = vmatprep.subr.bf16.mxu0 0
    %815 = vmatpush1.bf16.xpose.msra.mxu0 0
    %816 = vmatprep.subr.bf16.mxu0 0
    %817 = vmatpush1.bf16.xpose.msra.mxu0 0
    %818 = vmatprep.subr.bf16.mxu0 0
    %819 = vmatpush1.bf16.xpose.msra.mxu0 0
    %820 = vmatprep.subr.bf16.mxu0 0
    %821 = vmatpush1.bf16.xpose.msra.mxu0 0
    %822 = vmatprep.subr.bf16.mxu0 0
    %823 = vmatpush1.bf16.xpose.msra.mxu0 0
    %824 = vmatprep.subr.bf16.mxu0 0
    %825 = vmatpush1.bf16.xpose.msra.mxu0 0
    %826 = vmatprep.subr.bf16.mxu0 0
    %827 = vmatpush1.bf16.xpose.msra.mxu0 0
    %828 = vmatprep.subr.bf16.mxu0 0
    %829 = vmatpush1.bf16.xpose.msra.mxu0 0
    %830 = vmatprep.subr.bf16.mxu0 0
    %831 = vmatpush1.bf16.xpose.msra.mxu0 0
    %832 = vmatprep.subr.bf16.mxu0 0
    %833 = vmatpush1.bf16.xpose.msra.mxu0 0
    %834 = vmatprep.subr.bf16.mxu0 0
    %835 = vmatpush1.bf16.xpose.msra.mxu0 0
    %836 = vmatprep.mubr.bf16.mxu0 0
    %837 = vmatmul.mubr.bf16.gmra.mrb[0].mxu0 %v799
    %v838 = vpop.f32.mrb[0].mxu0
    %v839 = vadd.f32 0.0, %v838
    %v840 = vpop.f32.mrb[0].mxu0
    %v841 = vpop.f32.mrb[0].mxu0
    %v842 = vpop.f32.mrb[0].mxu0
    %843 = vdwg.mxu0
    %v844 = vmul.f32 %v789, 0.35355338
    %v845 = vmul.f32 %v839, 0.35355338
    %v846 = vsel %vm297, %v844, -1e+09
    %v847 = vsel %vm298, %v845, -1e+09
    %v848 = vsel %vm196, %v846, -inf
    %849 = vmax.xlane.f32.xlu0 %v848
    %v850 = vpop.xlane.xlu0 %849
    %v851 = vsel %vm196, %v847, -inf
    %852 = vmax.xlane.f32.xlu0 %v851
    %v853 = vpop.xlane.xlu0 %852
    %v854 = vsub.f32 %v846, %v850
    %v855 = vsub.f32 %v847, %v853
    %v856 = vmul.f32 %v854, 1.442695
    %v857 = vpow.pop %v856
    %v858 = vmul.f32 %v855, 1.442695
    %v859 = vpow.pop %v858
    %v860 = vsel %vm196, %v857, 0.0
    %861 = vadd.xlane.f32.xlu0 %v860
    %v862 = vpop.xlane.xlu0 %861
    %v863 = vsel %vm196, %v859, 0.0
    %864 = vadd.xlane.f32.xlu0 %v863
    %v865 = vpop.xlane.xlu0 %864
    %v866 = vrcp.pop %v862
    %v867 = vmul.f32 %v857, %v866
    %v868 = vrcp.pop %v865
    %v869 = vmul.f32 %v859, %v868
    %v870 = vpack.c.bf16 %v867, %v867
    %v871 = vpack.c.bf16 %v869, %v869
    %872 = vrot.lane.b32.xlu0 %v192, 48
    %v873 = vpop.permute.xlu0 %872
    %v875 = vsel %vm196, %v870, 0
    %v878 = vsel %vm330, %v873, 0
    %880 = vmatprep.subr.bf16.mxu0 0
    %881 = vmatpush1.bf16.msra.mxu0 %v878
    %882 = vmatprep.subr.bf16.mxu0 0
    %883 = vmatpush1.bf16.msra.mxu0 0
    %884 = vmatprep.subr.bf16.mxu0 0
    %885 = vmatpush1.bf16.msra.mxu0 0
    %886 = vmatprep.subr.bf16.mxu0 0
    %887 = vmatpush1.bf16.msra.mxu0 0
    %888 = vmatprep.subr.bf16.mxu0 0
    %889 = vmatpush1.bf16.msra.mxu0 0
    %890 = vmatprep.subr.bf16.mxu0 0
    %891 = vmatpush1.bf16.msra.mxu0 0
    %892 = vmatprep.subr.bf16.mxu0 0
    %893 = vmatpush1.bf16.msra.mxu0 0
    %894 = vmatprep.subr.bf16.mxu0 0
    %895 = vmatpush1.bf16.msra.mxu0 0
    %896 = vmatprep.subr.bf16.mxu0 0
    %897 = vmatpush1.bf16.msra.mxu0 0
    %898 = vmatprep.subr.bf16.mxu0 0
    %899 = vmatpush1.bf16.msra.mxu0 0
    %900 = vmatprep.subr.bf16.mxu0 0
    %901 = vmatpush1.bf16.msra.mxu0 0
    %902 = vmatprep.subr.bf16.mxu0 0
    %903 = vmatpush1.bf16.msra.mxu0 0
    %904 = vmatprep.subr.bf16.mxu0 0
    %905 = vmatpush1.bf16.msra.mxu0 0
    %906 = vmatprep.subr.bf16.mxu0 0
    %907 = vmatpush1.bf16.msra.mxu0 0
    %908 = vmatprep.subr.bf16.mxu0 0
    %909 = vmatpush1.bf16.msra.mxu0 0
    %910 = vmatprep.subr.bf16.mxu0 0
    %911 = vmatpush1.bf16.msra.mxu0 0
    %912 = vmatprep.mubr.bf16.mxu0 0
    %913 = vmatmul.mubr.bf16.gmra.mrb[0].mxu0 %v875
    %v914 = vpop.f32.mrb[0].mxu0
    %v915 = vadd.f32 0.0, %v914
    %v916 = vpop.f32.mrb[0].mxu0
    %v917 = vpop.f32.mrb[0].mxu0
    %v918 = vpop.f32.mrb[0].mxu0
    %919 = vdwg.mxu0
    %920 = vrot.lane.b32.xlu0 %v193, 48
    %v921 = vpop.permute.xlu0 %920
    %v923 = vsel %vm196, %v871, 0
    %v926 = vsel %vm330, %v921, 0
    %928 = vmatprep.subr.bf16.mxu0 0
    %929 = vmatpush1.bf16.msra.mxu0 %v926
    %930 = vmatprep.subr.bf16.mxu0 0
    %931 = vmatpush1.bf16.msra.mxu0 0
    %932 = vmatprep.subr.bf16.mxu0 0
    %933 = vmatpush1.bf16.msra.mxu0 0
    %934 = vmatprep.subr.bf16.mxu0 0
    %935 = vmatpush1.bf16.msra.mxu0 0
    %936 = vmatprep.subr.bf16.mxu0 0
    %937 = vmatpush1.bf16.msra.mxu0 0
    %938 = vmatprep.subr.bf16.mxu0 0
    %939 = vmatpush1.bf16.msra.mxu0 0
    %940 = vmatprep.subr.bf16.mxu0 0
    %941 = vmatpush1.bf16.msra.mxu0 0
    %942 = vmatprep.subr.bf16.mxu0 0
    %943 = vmatpush1.bf16.msra.mxu0 0
    %944 = vmatprep.subr.bf16.mxu0 0
    %945 = vmatpush1.bf16.msra.mxu0 0
    %946 = vmatprep.subr.bf16.mxu0 0
    %947 = vmatpush1.bf16.msra.mxu0 0
    %948 = vmatprep.subr.bf16.mxu0 0
    %949 = vmatpush1.bf16.msra.mxu0 0
    %950 = vmatprep.subr.bf16.mxu0 0
    %951 = vmatpush1.bf16.msra.mxu0 0
    %952 = vmatprep.subr.bf16.mxu0 0
    %953 = vmatpush1.bf16.msra.mxu0 0
    %954 = vmatprep.subr.bf16.mxu0 0
    %955 = vmatpush1.bf16.msra.mxu0 0
    %956 = vmatprep.subr.bf16.mxu0 0
    %957 = vmatpush1.bf16.msra.mxu0 0
    %958 = vmatprep.subr.bf16.mxu0 0
    %959 = vmatpush1.bf16.msra.mxu0 0
    %960 = vmatprep.mubr.bf16.mxu0 0
    %961 = vmatmul.mubr.bf16.gmra.mrb[0].mxu0 %v923
    %v962 = vpop.f32.mrb[0].mxu0
    %v963 = vadd.f32 0.0, %v962
    %v964 = vpop.f32.mrb[0].mxu0
    %v965 = vpop.f32.mrb[0].mxu0
    %v966 = vpop.f32.mrb[0].mxu0
    %967 = vdwg.mxu0
    %v968 = vpack.c.bf16 %v963, %v915
    %v969 = vld [vmem:[%s4 + $0x8] sm:$0xf]
    %v971 = vsel %vm196, %v968, 0
    %v974 = vsel %vm330, %v969, 0
    %976 = vmatprep.subr.bf16.mxu0 0
    %977 = vmatpush1.bf16.msra.mxu0 %v974
    %978 = vmatprep.subr.bf16.mxu0 0
    %979 = vmatpush1.bf16.msra.mxu0 0
    %980 = vmatprep.subr.bf16.mxu0 0
    %981 = vmatpush1.bf16.msra.mxu0 0
    %982 = vmatprep.subr.bf16.mxu0 0
    %983 = vmatpush1.bf16.msra.mxu0 0
    %984 = vmatprep.subr.bf16.mxu0 0
    %985 = vmatpush1.bf16.msra.mxu0 0
    %986 = vmatprep.subr.bf16.mxu0 0
    %987 = vmatpush1.bf16.msra.mxu0 0
    %988 = vmatprep.subr.bf16.mxu0 0
    %989 = vmatpush1.bf16.msra.mxu0 0
    %990 = vmatprep.subr.bf16.mxu0 0
    %991 = vmatpush1.bf16.msra.mxu0 0
    %992 = vmatprep.subr.bf16.mxu0 0
    %993 = vmatpush1.bf16.msra.mxu0 0
    %994 = vmatprep.subr.bf16.mxu0 0
    %995 = vmatpush1.bf16.msra.mxu0 0
    %996 = vmatprep.subr.bf16.mxu0 0
    %997 = vmatpush1.bf16.msra.mxu0 0
    %998 = vmatprep.subr.bf16.mxu0 0
    %999 = vmatpush1.bf16.msra.mxu0 0
    %1000 = vmatprep.subr.bf16.mxu0 0
    %1001 = vmatpush1.bf16.msra.mxu0 0
    %1002 = vmatprep.subr.bf16.mxu0 0
    %1003 = vmatpush1.bf16.msra.mxu0 0
    %1004 = vmatprep.subr.bf16.mxu0 0
    %1005 = vmatpush1.bf16.msra.mxu0 0
    %1006 = vmatprep.subr.bf16.mxu0 0
    %1007 = vmatpush1.bf16.msra.mxu0 0
    %1008 = vmatprep.mubr.bf16.mxu0 0
    %1009 = vmatmul.mubr.bf16.gmra.mrb[0].mxu0 %v971
    %v1010 = vpop.f32.mrb[0].mxu0
    %v1011 = vadd.f32 0.0, %v1010
    %v1012 = vpop.f32.mrb[0].mxu0
    %v1013 = vpop.f32.mrb[0].mxu0
    %v1014 = vadd.f32 0.0, %v1013
    %v1015 = vpop.f32.mrb[0].mxu0
    %1016 = vdwg.mxu0
    %v1017 = vadd.f32 %v738, %v1011
    %v1018 = vadd.f32 %v741, %v1014
    %1019 = vrot.lane.b32.xlu0 %v192, 104
    %v1020 = vpop.permute.xlu0 %1019
    %1021 = vrot.lane.b32.xlu0 %v192, 72
    %v1022 = vpop.permute.xlu0 %1021
    %v1024 = vsel %vm196, %v1020, 0
    %v1027 = vsel %vm196, %v1022, 0
    %1029 = vmatprep.subr.bf16.mxu0 0
    %1030 = vmatpush1.bf16.xpose.msra.mxu0 %v1027
    %1031 = vmatprep.subr.bf16.mxu0 0
    %1032 = vmatpush1.bf16.xpose.msra.mxu0 0
    %1033 = vmatprep.subr.bf16.mxu0 0
    %1034 = vmatpush1.bf16.xpose.msra.mxu0 0
    %1035 = vmatprep.subr.bf16.mxu0 0
    %1036 = vmatpush1.bf16.xpose.msra.mxu0 0
    %1037 = vmatprep.subr.bf16.mxu0 0
    %1038 = vmatpush1.bf16.xpose.msra.mxu0 0
    %1039 = vmatprep.subr.bf16.mxu0 0
    %1040 = vmatpush1.bf16.xpose.msra.mxu0 0
    %1041 = vmatprep.subr.bf16.mxu0 0
    %1042 = vmatpush1.bf16.xpose.msra.mxu0 0
    %1043 = vmatprep.subr.bf16.mxu0 0
    %1044 = vmatpush1.bf16.xpose.msra.mxu0 0
    %1045 = vmatprep.subr.bf16.mxu0 0
    %1046 = vmatpush1.bf16.xpose.msra.mxu0 0
    %1047 = vmatprep.subr.bf16.mxu0 0
    %1048 = vmatpush1.bf16.xpose.msra.mxu0 0
    %1049 = vmatprep.subr.bf16.mxu0 0
    %1050 = vmatpush1.bf16.xpose.msra.mxu0 0
    %1051 = vmatprep.subr.bf16.mxu0 0
    %1052 = vmatpush1.bf16.xpose.msra.mxu0 0
    %1053 = vmatprep.subr.bf16.mxu0 0
    %1054 = vmatpush1.bf16.xpose.msra.mxu0 0
    %1055 = vmatprep.subr.bf16.mxu0 0
    %1056 = vmatpush1.bf16.xpose.msra.mxu0 0
    %1057 = vmatprep.subr.bf16.mxu0 0
    %1058 = vmatpush1.bf16.xpose.msra.mxu0 0
    %1059 = vmatprep.subr.bf16.mxu0 0
    %1060 = vmatpush1.bf16.xpose.msra.mxu0 0
    %1061 = vmatprep.mubr.bf16.mxu0 0
    %1062 = vmatmul.mubr.bf16.gmra.mrb[0].mxu0 %v1024
    %v1063 = vpop.f32.mrb[0].mxu0
    %v1064 = vadd.f32 0.0, %v1063
    %v1065 = vpop.f32.mrb[0].mxu0
    %v1066 = vpop.f32.mrb[0].mxu0
    %v1067 = vpop.f32.mrb[0].mxu0
    %1068 = vdwg.mxu0
    %1069 = vrot.lane.b32.xlu0 %v193, 104
    %v1070 = vpop.permute.xlu0 %1069
    %1071 = vrot.lane.b32.xlu0 %v193, 72
    %v1072 = vpop.permute.xlu0 %1071
    %v1074 = vsel %vm196, %v1070, 0
    %v1077 = vsel %vm196, %v1072, 0
    %1079 = vmatprep.subr.bf16.mxu0 0
    %1080 = vmatpush1.bf16.xpose.msra.mxu0 %v1077
    %1081 = vmatprep.subr.bf16.mxu0 0
    %1082 = vmatpush1.bf16.xpose.msra.mxu0 0
    %1083 = vmatprep.subr.bf16.mxu0 0
    %1084 = vmatpush1.bf16.xpose.msra.mxu0 0
    %1085 = vmatprep.subr.bf16.mxu0 0
    %1086 = vmatpush1.bf16.xpose.msra.mxu0 0
    %1087 = vmatprep.subr.bf16.mxu0 0
    %1088 = vmatpush1.bf16.xpose.msra.mxu0 0
    %1089 = vmatprep.subr.bf16.mxu0 0
    %1090 = vmatpush1.bf16.xpose.msra.mxu0 0
    %1091 = vmatprep.subr.bf16.mxu0 0
    %1092 = vmatpush1.bf16.xpose.msra.mxu0 0
    %1093 = vmatprep.subr.bf16.mxu0 0
    %1094 = vmatpush1.bf16.xpose.msra.mxu0 0
    %1095 = vmatprep.subr.bf16.mxu0 0
    %1096 = vmatpush1.bf16.xpose.msra.mxu0 0
    %1097 = vmatprep.subr.bf16.mxu0 0
    %1098 = vmatpush1.bf16.xpose.msra.mxu0 0
    %1099 = vmatprep.subr.bf16.mxu0 0
    %1100 = vmatpush1.bf16.xpose.msra.mxu0 0
    %1101 = vmatprep.subr.bf16.mxu0 0
    %1102 = vmatpush1.bf16.xpose.msra.mxu0 0
    %1103 = vmatprep.subr.bf16.mxu0 0
    %1104 = vmatpush1.bf16.xpose.msra.mxu0 0
    %1105 = vmatprep.subr.bf16.mxu0 0
    %1106 = vmatpush1.bf16.xpose.msra.mxu0 0
    %1107 = vmatprep.subr.bf16.mxu0 0
    %1108 = vmatpush1.bf16.xpose.msra.mxu0 0
    %1109 = vmatprep.subr.bf16.mxu0 0
    %1110 = vmatpush1.bf16.xpose.msra.mxu0 0
    %1111 = vmatprep.mubr.bf16.mxu0 0
    %1112 = vmatmul.mubr.bf16.gmra.mrb[0].mxu0 %v1074
    %v1113 = vpop.f32.mrb[0].mxu0
    %v1114 = vadd.f32 0.0, %v1113
    %v1115 = vpop.f32.mrb[0].mxu0
    %v1116 = vpop.f32.mrb[0].mxu0
    %v1117 = vpop.f32.mrb[0].mxu0
    %1118 = vdwg.mxu0
    %v1119 = vmul.f32 %v1064, 0.35355338
    %v1120 = vmul.f32 %v1114, 0.35355338
    %v1121 = vsel %vm297, %v1119, -1e+09
    %v1122 = vsel %vm298, %v1120, -1e+09
    %v1123 = vsel %vm196, %v1121, -inf
    %1124 = vmax.xlane.f32.xlu0 %v1123
    %v1125 = vpop.xlane.xlu0 %1124
    %v1126 = vsel %vm196, %v1122, -inf
    %1127 = vmax.xlane.f32.xlu0 %v1126
    %v1128 = vpop.xlane.xlu0 %1127
    %v1129 = vsub.f32 %v1121, %v1125
    %v1130 = vsub.f32 %v1122, %v1128
    %v1131 = vmul.f32 %v1129, 1.442695
    %v1132 = vpow.pop %v1131
    %v1133 = vmul.f32 %v1130, 1.442695
    %v1134 = vpow.pop %v1133
    %v1135 = vsel %vm196, %v1132, 0.0
    %1136 = vadd.xlane.f32.xlu0 %v1135
    %v1137 = vpop.xlane.xlu0 %1136
    %v1138 = vsel %vm196, %v1134, 0.0
    %1139 = vadd.xlane.f32.xlu0 %v1138
    %v1140 = vpop.xlane.xlu0 %1139
    %v1141 = vrcp.pop %v1137
    %v1142 = vmul.f32 %v1132, %v1141
    %v1143 = vrcp.pop %v1140
    %v1144 = vmul.f32 %v1134, %v1143
    %v1145 = vpack.c.bf16 %v1142, %v1142
    %v1146 = vpack.c.bf16 %v1144, %v1144
    %1147 = vrot.lane.b32.xlu0 %v192, 40
    %v1148 = vpop.permute.xlu0 %1147
    %v1150 = vsel %vm196, %v1145, 0
    %v1153 = vsel %vm330, %v1148, 0
    %1155 = vmatprep.subr.bf16.mxu0 0
    %1156 = vmatpush1.bf16.msra.mxu0 %v1153
    %1157 = vmatprep.subr.bf16.mxu0 0
    %1158 = vmatpush1.bf16.msra.mxu0 0
    %1159 = vmatprep.subr.bf16.mxu0 0
    %1160 = vmatpush1.bf16.msra.mxu0 0
    %1161 = vmatprep.subr.bf16.mxu0 0
    %1162 = vmatpush1.bf16.msra.mxu0 0
    %1163 = vmatprep.subr.bf16.mxu0 0
    %1164 = vmatpush1.bf16.msra.mxu0 0
    %1165 = vmatprep.subr.bf16.mxu0 0
    %1166 = vmatpush1.bf16.msra.mxu0 0
    %1167 = vmatprep.subr.bf16.mxu0 0
    %1168 = vmatpush1.bf16.msra.mxu0 0
    %1169 = vmatprep.subr.bf16.mxu0 0
    %1170 = vmatpush1.bf16.msra.mxu0 0
    %1171 = vmatprep.subr.bf16.mxu0 0
    %1172 = vmatpush1.bf16.msra.mxu0 0
    %1173 = vmatprep.subr.bf16.mxu0 0
    %1174 = vmatpush1.bf16.msra.mxu0 0
    %1175 = vmatprep.subr.bf16.mxu0 0
    %1176 = vmatpush1.bf16.msra.mxu0 0
    %1177 = vmatprep.subr.bf16.mxu0 0
    %1178 = vmatpush1.bf16.msra.mxu0 0
    %1179 = vmatprep.subr.bf16.mxu0 0
    %1180 = vmatpush1.bf16.msra.mxu0 0
    %1181 = vmatprep.subr.bf16.mxu0 0
    %1182 = vmatpush1.bf16.msra.mxu0 0
    %1183 = vmatprep.subr.bf16.mxu0 0
    %1184 = vmatpush1.bf16.msra.mxu0 0
    %1185 = vmatprep.subr.bf16.mxu0 0
    %1186 = vmatpush1.bf16.msra.mxu0 0
    %1187 = vmatprep.mubr.bf16.mxu0 0
    %1188 = vmatmul.mubr.bf16.gmra.mrb[0].mxu0 %v1150
    %v1189 = vpop.f32.mrb[0].mxu0
    %v1190 = vadd.f32 0.0, %v1189
    %v1191 = vpop.f32.mrb[0].mxu0
    %v1192 = vpop.f32.mrb[0].mxu0
    %v1193 = vpop.f32.mrb[0].mxu0
    %1194 = vdwg.mxu0
    %1195 = vrot.lane.b32.xlu0 %v193, 40
    %v1196 = vpop.permute.xlu0 %1195
    %v1198 = vsel %vm196, %v1146, 0
    %v1201 = vsel %vm330, %v1196, 0
    %1203 = vmatprep.subr.bf16.mxu0 0
    %1204 = vmatpush1.bf16.msra.mxu0 %v1201
    %1205 = vmatprep.subr.bf16.mxu0 0
    %1206 = vmatpush1.bf16.msra.mxu0 0
    %1207 = vmatprep.subr.bf16.mxu0 0
    %1208 = vmatpush1.bf16.msra.mxu0 0
    %1209 = vmatprep.subr.bf16.mxu0 0
    %1210 = vmatpush1.bf16.msra.mxu0 0
    %1211 = vmatprep.subr.bf16.mxu0 0
    %1212 = vmatpush1.bf16.msra.mxu0 0
    %1213 = vmatprep.subr.bf16.mxu0 0
    %1214 = vmatpush1.bf16.msra.mxu0 0
    %1215 = vmatprep.subr.bf16.mxu0 0
    %1216 = vmatpush1.bf16.msra.mxu0 0
    %1217 = vmatprep.subr.bf16.mxu0 0
    %1218 = vmatpush1.bf16.msra.mxu0 0
    %1219 = vmatprep.subr.bf16.mxu0 0
    %1220 = vmatpush1.bf16.msra.mxu0 0
    %1221 = vmatprep.subr.bf16.mxu0 0
    %1222 = vmatpush1.bf16.msra.mxu0 0
    %1223 = vmatprep.subr.bf16.mxu0 0
    %1224 = vmatpush1.bf16.msra.mxu0 0
    %1225 = vmatprep.subr.bf16.mxu0 0
    %1226 = vmatpush1.bf16.msra.mxu0 0
    %1227 = vmatprep.subr.bf16.mxu0 0
    %1228 = vmatpush1.bf16.msra.mxu0 0
    %1229 = vmatprep.subr.bf16.mxu0 0
    %1230 = vmatpush1.bf16.msra.mxu0 0
    %1231 = vmatprep.subr.bf16.mxu0 0
    %1232 = vmatpush1.bf16.msra.mxu0 0
    %1233 = vmatprep.subr.bf16.mxu0 0
    %1234 = vmatpush1.bf16.msra.mxu0 0
    %1235 = vmatprep.mubr.bf16.mxu0 0
    %1236 = vmatmul.mubr.bf16.gmra.mrb[0].mxu0 %v1198
    %v1237 = vpop.f32.mrb[0].mxu0
    %v1238 = vadd.f32 0.0, %v1237
    %v1239 = vpop.f32.mrb[0].mxu0
    %v1240 = vpop.f32.mrb[0].mxu0
    %v1241 = vpop.f32.mrb[0].mxu0
    %1242 = vdwg.mxu0
    %v1243 = vpack.c.bf16 %v1238, %v1190
    %v1244 = vld [vmem:[%s4 + $0xc] sm:$0xf]
    %v1246 = vsel %vm196, %v1243, 0
    %v1249 = vsel %vm330, %v1244, 0
    %1251 = vmatprep.subr.bf16.mxu0 0
    %1252 = vmatpush1.bf16.msra.mxu0 %v1249
    %1253 = vmatprep.subr.bf16.mxu0 0
    %1254 = vmatpush1.bf16.msra.mxu0 0
    %1255 = vmatprep.subr.bf16.mxu0 0
    %1256 = vmatpush1.bf16.msra.mxu0 0
    %1257 = vmatprep.subr.bf16.mxu0 0
    %1258 = vmatpush1.bf16.msra.mxu0 0
    %1259 = vmatprep.subr.bf16.mxu0 0
    %1260 = vmatpush1.bf16.msra.mxu0 0
    %1261 = vmatprep.subr.bf16.mxu0 0
    %1262 = vmatpush1.bf16.msra.mxu0 0
    %1263 = vmatprep.subr.bf16.mxu0 0
    %1264 = vmatpush1.bf16.msra.mxu0 0
    %1265 = vmatprep.subr.bf16.mxu0 0
    %1266 = vmatpush1.bf16.msra.mxu0 0
    %1267 = vmatprep.subr.bf16.mxu0 0
    %1268 = vmatpush1.bf16.msra.mxu0 0
    %1269 = vmatprep.subr.bf16.mxu0 0
    %1270 = vmatpush1.bf16.msra.mxu0 0
    %1271 = vmatprep.subr.bf16.mxu0 0
    %1272 = vmatpush1.bf16.msra.mxu0 0
    %1273 = vmatprep.subr.bf16.mxu0 0
    %1274 = vmatpush1.bf16.msra.mxu0 0
    %1275 = vmatprep.subr.bf16.mxu0 0
    %1276 = vmatpush1.bf16.msra.mxu0 0
    %1277 = vmatprep.subr.bf16.mxu0 0
    %1278 = vmatpush1.bf16.msra.mxu0 0
    %1279 = vmatprep.subr.bf16.mxu0 0
    %1280 = vmatpush1.bf16.msra.mxu0 0
    %1281 = vmatprep.subr.bf16.mxu0 0
    %1282 = vmatpush1.bf16.msra.mxu0 0
    %1283 = vmatprep.mubr.bf16.mxu0 0
    %1284 = vmatmul.mubr.bf16.gmra.mrb[0].mxu0 %v1246
    %v1285 = vpop.f32.mrb[0].mxu0
    %v1286 = vadd.f32 0.0, %v1285
    %v1287 = vpop.f32.mrb[0].mxu0
    %v1288 = vpop.f32.mrb[0].mxu0
    %v1289 = vadd.f32 0.0, %v1288
    %v1290 = vpop.f32.mrb[0].mxu0
    %1291 = vdwg.mxu0
    %v1292 = vadd.f32 %v1017, %v1286
    %v1293 = vadd.f32 %v1018, %v1289
    %v1294 = vld [vmem:[%s5] sm:$0x1]
    %v1296 = vlaneseq
    %v1297 = vshrl.u32 %v1296, 7
    %v1298 = vsub.s32 0, %v1297
    %v1299 = vrot.slane %v1294, %v1298
    %v1301 = vadd.f32 %v1292, %v1299
    %v1302 = vadd.f32 %v1293, %v1299
    %v1303 = vadd.f32 %v51, %v1301
    %v1304 = vadd.f32 %v52, %v1302
    %v1305 = vsel %vm61, %v1303, 0.0
    %1306 = vadd.xlane.f32.xlu0 %v1305
    %v1307 = vpop.xlane.xlu0 %1306
    %v1308 = vsel %vm61, %v1304, 0.0
    %1309 = vadd.xlane.f32.xlu0 %v1308
    %v1310 = vpop.xlane.xlu0 %1309
    %v1311 = vmul.f32 %v1307, %v68
    %v1312 = vmul.f32 %v1310, %v68
    %v1313 = vsub.f32 %v1303, %v1311
    %v1314 = vsub.f32 %v1304, %v1312
    %v1315 = vmul.f32 %v1313, %v1313
    %v1316 = vmul.f32 %v1314, %v1314
    %v1317 = vsel %vm61, %v1315, 0.0
    %1318 = vadd.xlane.f32.xlu0 %v1317
    %v1319 = vpop.xlane.xlu0 %1318
    %v1320 = vsel %vm61, %v1316, 0.0
    %1321 = vadd.xlane.f32.xlu0 %v1320
    %v1322 = vpop.xlane.xlu0 %1321
    %v1323 = vmul.f32 %v1319, %v81
    %v1324 = vmul.f32 %v1322, %v81
    %v1325 = vrsqrt.pop %v1323
    %v1326 = vmul.f32 %v1323, %v1325
    %vm1327 = vcmp.eq.f32.partialorder %v1323, inf
    %v1328 = vsel %vm1327, %v1323, %v1326
    %vm1329 = vcmp.eq.f32.partialorder %v1323, 0.0
    %v1330 = vand.u32 %v1323, 2147483648
    %v1331 = vsel %vm1329, %v1330, %v1328
    %v1332 = vrsqrt.pop %v1324
    %v1333 = vmul.f32 %v1324, %v1332
    %vm1334 = vcmp.eq.f32.partialorder %v1324, inf
    %v1335 = vsel %vm1334, %v1324, %v1333
    %vm1336 = vcmp.eq.f32.partialorder %v1324, 0.0
    %v1337 = vand.u32 %v1324, 2147483648
    %v1338 = vsel %vm1336, %v1337, %v1335
    %v1339 = vadd.f32 %v1331, 1e-06
    %v1340 = vadd.f32 %v1338, 1e-06
    %v1342 = vlaneseq
    %v1343 = vshrl.u32 %v1342, 7
    %v1344 = vsub.s32 0, %v1343
    %v1345 = vrot.slane %v59, %v1344
    %v1347 = vmul.f32 %v1345, %v1313
    %v1348 = vmul.f32 %v1345, %v1314
    %v1349 = vrcp.pop %v1339
    %v1350 = vmul.f32 %v1347, %v1349
    %v1351 = vrcp.pop %v1340
    %v1352 = vmul.f32 %v1348, %v1351
    %v1354 = vlaneseq
    %v1355 = vshrl.u32 %v1354, 7
    %v1356 = vsub.s32 0, %v1355
    %v1357 = vrot.slane %v60, %v1356
    %v1359 = vadd.f32 %v1350, %v1357
    %v1360 = vadd.f32 %v1352, %v1357
    %v1361 = vpack.c.bf16 %v1360, %v1359
    %v1362 = vld [vmem:[%s10] sm:$0xff]
    %v1363 = vld [vmem:[%s10 + $0x8] sm:$0xff]
    %v1364 = vld [vmem:[%s10 + $0x10] sm:$0xff]
    %v1365 = vld [vmem:[%s10 + $0x18] sm:$0xff]
    %v1366 = vld [vmem:[%s10 + $0x20] sm:$0xff]
    %v1367 = vld [vmem:[%s10 + $0x28] sm:$0xff]
    %v1368 = vld [vmem:[%s10 + $0x30] sm:$0xff]
    %v1369 = vld [vmem:[%s10 + $0x38] sm:$0xff]
    %v1370 = vld [vmem:[%s10 + $0x40] sm:$0xff]
    %v1371 = vld [vmem:[%s10 + $0x48] sm:$0xff]
    %v1372 = vld [vmem:[%s10 + $0x50] sm:$0xff]
    %v1373 = vld [vmem:[%s10 + $0x58] sm:$0xff]
    %v1374 = vld [vmem:[%s10 + $0x60] sm:$0xff]
    %v1375 = vld [vmem:[%s10 + $0x68] sm:$0xff]
    %v1376 = vld [vmem:[%s10 + $0x70] sm:$0xff]
    %v1377 = vld [vmem:[%s10 + $0x78] sm:$0xff]
    %v1378 = vld [vmem:[%s11] sm:$0xff]
    %v1380 = vlaneseq
    %v1381 = vshrl.u32 %v1380, 7
    %v1382 = vsub.s32 0, %v1381
    %v1383 = vrot.slane %v1378, %v1382
    %v1384 = vlaneseq
    %v1385 = vshrl.u32 %v1384, 7
    %v1386 = vsub.s32 1, %v1385
    %v1387 = vrot.slane %v1378, %v1386
    %v1388 = vlaneseq
    %v1389 = vshrl.u32 %v1388, 7
    %v1390 = vsub.s32 2, %v1389
    %v1391 = vrot.slane %v1378, %v1390
    %v1392 = vlaneseq
    %v1393 = vshrl.u32 %v1392, 7
    %v1394 = vsub.s32 3, %v1393
    %v1395 = vrot.slane %v1378, %v1394
    %v1396 = vlaneseq
    %v1397 = vshrl.u32 %v1396, 7
    %v1398 = vsub.s32 4, %v1397
    %v1399 = vrot.slane %v1378, %v1398
    %v1400 = vlaneseq
    %v1401 = vshrl.u32 %v1400, 7
    %v1402 = vsub.s32 5, %v1401
    %v1403 = vrot.slane %v1378, %v1402
    %v1404 = vlaneseq
    %v1405 = vshrl.u32 %v1404, 7
    %v1406 = vsub.s32 6, %v1405
    %v1407 = vrot.slane %v1378, %v1406
    %v1408 = vlaneseq
    %v1409 = vshrl.u32 %v1408, 7
    %v1410 = vsub.s32 7, %v1409
    %v1411 = vrot.slane %v1378, %v1410
    %v1436 = vunpack.c.l.b16 %v1362
    %v1437 = vunpack.c.h.b16 %v1362
    %v1438 = vunpack.c.l.b16 %v1363
    %v1439 = vunpack.c.h.b16 %v1363
    %v1440 = vunpack.c.l.b16 %v1364
    %v1441 = vunpack.c.h.b16 %v1364
    %v1442 = vunpack.c.l.b16 %v1365
    %v1443 = vunpack.c.h.b16 %v1365
    %v1444 = vunpack.c.l.b16 %v1366
    %v1445 = vunpack.c.h.b16 %v1366
    %v1446 = vunpack.c.l.b16 %v1367
    %v1447 = vunpack.c.h.b16 %v1367
    %v1448 = vunpack.c.l.b16 %v1368
    %v1449 = vunpack.c.h.b16 %v1368
    %v1450 = vunpack.c.l.b16 %v1369
    %v1451 = vunpack.c.h.b16 %v1369
    %v1452 = vunpack.c.l.b16 %v1370
    %v1453 = vunpack.c.h.b16 %v1370
    %v1454 = vunpack.c.l.b16 %v1371
    %v1455 = vunpack.c.h.b16 %v1371
    %v1456 = vunpack.c.l.b16 %v1372
    %v1457 = vunpack.c.h.b16 %v1372
    %v1458 = vunpack.c.l.b16 %v1373
    %v1459 = vunpack.c.h.b16 %v1373
    %v1460 = vunpack.c.l.b16 %v1374
    %v1461 = vunpack.c.h.b16 %v1374
    %v1462 = vunpack.c.l.b16 %v1375
    %v1463 = vunpack.c.h.b16 %v1375
    %v1464 = vunpack.c.l.b16 %v1376
    %v1465 = vunpack.c.h.b16 %v1376
    %v1466 = vunpack.c.l.b16 %v1377
    %v1467 = vunpack.c.h.b16 %v1377
    %v1468 = vpack.c.b16 %v1444, %v1436
    %v1469 = vpack.c.b16 %v1445, %v1437
    %v1470 = vpack.c.b16 %v1446, %v1438
    %v1471 = vpack.c.b16 %v1447, %v1439
    %v1472 = vpack.c.b16 %v1448, %v1440
    %v1473 = vpack.c.b16 %v1449, %v1441
    %v1474 = vpack.c.b16 %v1450, %v1442
    %v1475 = vpack.c.b16 %v1451, %v1443
    %v1476 = vpack.c.b16 %v1460, %v1452
    %v1477 = vpack.c.b16 %v1461, %v1453
    %v1478 = vpack.c.b16 %v1462, %v1454
    %v1479 = vpack.c.b16 %v1463, %v1455
    %v1480 = vpack.c.b16 %v1464, %v1456
    %v1481 = vpack.c.b16 %v1465, %v1457
    %v1482 = vpack.c.b16 %v1466, %v1458
    %v1483 = vpack.c.b16 %v1467, %v1459
    %v1501 = vsel %vm61, %v1361, 0
    %1503 = vmatprep.subr.bf16.mxu0 %v1469
    %1504 = vmatpush1.bf16.msra.mxu0 %v1468
    %1505 = vmatprep.subr.bf16.mxu0 %v1477
    %1506 = vmatpush1.bf16.msra.mxu0 %v1476
    %1507 = vmatprep.subr.bf16.mxu0 0
    %1508 = vmatpush1.bf16.msra.mxu0 0
    %1509 = vmatprep.subr.bf16.mxu0 0
    %1510 = vmatpush1.bf16.msra.mxu0 0
    %1511 = vmatprep.subr.bf16.mxu0 0
    %1512 = vmatpush1.bf16.msra.mxu0 0
    %1513 = vmatprep.subr.bf16.mxu0 0
    %1514 = vmatpush1.bf16.msra.mxu0 0
    %1515 = vmatprep.subr.bf16.mxu0 0
    %1516 = vmatpush1.bf16.msra.mxu0 0
    %1517 = vmatprep.subr.bf16.mxu0 0
    %1518 = vmatpush1.bf16.msra.mxu0 0
    %1519 = vmatprep.subr.bf16.mxu0 0
    %1520 = vmatpush1.bf16.msra.mxu0 0
    %1521 = vmatprep.subr.bf16.mxu0 0
    %1522 = vmatpush1.bf16.msra.mxu0 0
    %1523 = vmatprep.subr.bf16.mxu0 0
    %1524 = vmatpush1.bf16.msra.mxu0 0
    %1525 = vmatprep.subr.bf16.mxu0 0
    %1526 = vmatpush1.bf16.msra.mxu0 0
    %1527 = vmatprep.subr.bf16.mxu0 0
    %1528 = vmatpush1.bf16.msra.mxu0 0
    %1529 = vmatprep.subr.bf16.mxu0 0
    %1530 = vmatpush1.bf16.msra.mxu0 0
    %1531 = vmatprep.subr.bf16.mxu0 0
    %1532 = vmatpush1.bf16.msra.mxu0 0
    %1533 = vmatprep.subr.bf16.mxu0 0
    %1534 = vmatpush1.bf16.msra.mxu0 0
    %1535 = vmatprep.mubr.bf16.mxu0 0
    %1536 = vmatmul.mubr.bf16.gmra.mrb[0].mxu0 %v1501
    %v1537 = vpop.f32.mrb[0].mxu0
    %v1538 = vadd.f32 %v1383, %v1537
    %v1539 = vpop.f32.mrb[0].mxu0
    %v1540 = vadd.f32 %v1387, %v1539
    %v1541 = vpop.f32.mrb[0].mxu0
    %v1542 = vadd.f32 %v1383, %v1541
    %v1543 = vpop.f32.mrb[0].mxu0
    %v1544 = vadd.f32 %v1387, %v1543
    %1545 = vdwg.mxu0
    %1546 = vmatprep.subr.bf16.mxu0 %v1471
    %1547 = vmatpush1.bf16.msra.mxu0 %v1470
    %1548 = vmatprep.subr.bf16.mxu0 %v1479
    %1549 = vmatpush1.bf16.msra.mxu0 %v1478
    %1550 = vmatprep.subr.bf16.mxu0 0
    %1551 = vmatpush1.bf16.msra.mxu0 0
    %1552 = vmatprep.subr.bf16.mxu0 0
    %1553 = vmatpush1.bf16.msra.mxu0 0
    %1554 = vmatprep.subr.bf16.mxu0 0
    %1555 = vmatpush1.bf16.msra.mxu0 0
    %1556 = vmatprep.subr.bf16.mxu0 0
    %1557 = vmatpush1.bf16.msra.mxu0 0
    %1558 = vmatprep.subr.bf16.mxu0 0
    %1559 = vmatpush1.bf16.msra.mxu0 0
    %1560 = vmatprep.subr.bf16.mxu0 0
    %1561 = vmatpush1.bf16.msra.mxu0 0
    %1562 = vmatprep.subr.bf16.mxu0 0
    %1563 = vmatpush1.bf16.msra.mxu0 0
    %1564 = vmatprep.subr.bf16.mxu0 0
    %1565 = vmatpush1.bf16.msra.mxu0 0
    %1566 = vmatprep.subr.bf16.mxu0 0
    %1567 = vmatpush1.bf16.msra.mxu0 0
    %1568 = vmatprep.subr.bf16.mxu0 0
    %1569 = vmatpush1.bf16.msra.mxu0 0
    %1570 = vmatprep.subr.bf16.mxu0 0
    %1571 = vmatpush1.bf16.msra.mxu0 0
    %1572 = vmatprep.subr.bf16.mxu0 0
    %1573 = vmatpush1.bf16.msra.mxu0 0
    %1574 = vmatprep.subr.bf16.mxu0 0
    %1575 = vmatpush1.bf16.msra.mxu0 0
    %1576 = vmatprep.subr.bf16.mxu0 0
    %1577 = vmatpush1.bf16.msra.mxu0 0
    %1578 = vmatprep.mubr.bf16.mxu0 0
    %1579 = vmatmul.mubr.bf16.gmra.mrb[0].mxu0 %v1501
    %v1580 = vpop.f32.mrb[0].mxu0
    %v1581 = vadd.f32 %v1391, %v1580
    %v1582 = vpop.f32.mrb[0].mxu0
    %v1583 = vadd.f32 %v1395, %v1582
    %v1584 = vpop.f32.mrb[0].mxu0
    %v1585 = vadd.f32 %v1391, %v1584
    %v1586 = vpop.f32.mrb[0].mxu0
    %v1587 = vadd.f32 %v1395, %v1586
    %1588 = vdwg.mxu0
    %1589 = vmatprep.subr.bf16.mxu0 %v1473
    %1590 = vmatpush1.bf16.msra.mxu0 %v1472
    %1591 = vmatprep.subr.bf16.mxu0 %v1481
    %1592 = vmatpush1.bf16.msra.mxu0 %v1480
    %1593 = vmatprep.subr.bf16.mxu0 0
    %1594 = vmatpush1.bf16.msra.mxu0 0
    %1595 = vmatprep.subr.bf16.mxu0 0
    %1596 = vmatpush1.bf16.msra.mxu0 0
    %1597 = vmatprep.subr.bf16.mxu0 0
    %1598 = vmatpush1.bf16.msra.mxu0 0
    %1599 = vmatprep.subr.bf16.mxu0 0
    %1600 = vmatpush1.bf16.msra.mxu0 0
    %1601 = vmatprep.subr.bf16.mxu0 0
    %1602 = vmatpush1.bf16.msra.mxu0 0
    %1603 = vmatprep.subr.bf16.mxu0 0
    %1604 = vmatpush1.bf16.msra.mxu0 0
    %1605 = vmatprep.subr.bf16.mxu0 0
    %1606 = vmatpush1.bf16.msra.mxu0 0
    %1607 = vmatprep.subr.bf16.mxu0 0
    %1608 = vmatpush1.bf16.msra.mxu0 0
    %1609 = vmatprep.subr.bf16.mxu0 0
    %1610 = vmatpush1.bf16.msra.mxu0 0
    %1611 = vmatprep.subr.bf16.mxu0 0
    %1612 = vmatpush1.bf16.msra.mxu0 0
    %1613 = vmatprep.subr.bf16.mxu0 0
    %1614 = vmatpush1.bf16.msra.mxu0 0
    %1615 = vmatprep.subr.bf16.mxu0 0
    %1616 = vmatpush1.bf16.msra.mxu0 0
    %1617 = vmatprep.subr.bf16.mxu0 0
    %1618 = vmatpush1.bf16.msra.mxu0 0
    %1619 = vmatprep.subr.bf16.mxu0 0
    %1620 = vmatpush1.bf16.msra.mxu0 0
    %1621 = vmatprep.mubr.bf16.mxu0 0
    %1622 = vmatmul.mubr.bf16.gmra.mrb[0].mxu0 %v1501
    %v1623 = vpop.f32.mrb[0].mxu0
    %v1624 = vadd.f32 %v1399, %v1623
    %v1625 = vpop.f32.mrb[0].mxu0
    %v1626 = vadd.f32 %v1403, %v1625
    %v1627 = vpop.f32.mrb[0].mxu0
    %v1628 = vadd.f32 %v1399, %v1627
    %v1629 = vpop.f32.mrb[0].mxu0
    %v1630 = vadd.f32 %v1403, %v1629
    %1631 = vdwg.mxu0
    %1632 = vmatprep.subr.bf16.mxu0 %v1475
    %1633 = vmatpush1.bf16.msra.mxu0 %v1474
    %1634 = vmatprep.subr.bf16.mxu0 %v1483
    %1635 = vmatpush1.bf16.msra.mxu0 %v1482
    %1636 = vmatprep.subr.bf16.mxu0 0
    %1637 = vmatpush1.bf16.msra.mxu0 0
    %1638 = vmatprep.subr.bf16.mxu0 0
    %1639 = vmatpush1.bf16.msra.mxu0 0
    %1640 = vmatprep.subr.bf16.mxu0 0
    %1641 = vmatpush1.bf16.msra.mxu0 0
    %1642 = vmatprep.subr.bf16.mxu0 0
    %1643 = vmatpush1.bf16.msra.mxu0 0
    %1644 = vmatprep.subr.bf16.mxu0 0
    %1645 = vmatpush1.bf16.msra.mxu0 0
    %1646 = vmatprep.subr.bf16.mxu0 0
    %1647 = vmatpush1.bf16.msra.mxu0 0
    %1648 = vmatprep.subr.bf16.mxu0 0
    %1649 = vmatpush1.bf16.msra.mxu0 0
    %1650 = vmatprep.subr.bf16.mxu0 0
    %1651 = vmatpush1.bf16.msra.mxu0 0
    %1652 = vmatprep.subr.bf16.mxu0 0
    %1653 = vmatpush1.bf16.msra.mxu0 0
    %1654 = vmatprep.subr.bf16.mxu0 0
    %1655 = vmatpush1.bf16.msra.mxu0 0
    %1656 = vmatprep.subr.bf16.mxu0 0
    %1657 = vmatpush1.bf16.msra.mxu0 0
    %1658 = vmatprep.subr.bf16.mxu0 0
    %1659 = vmatpush1.bf16.msra.mxu0 0
    %1660 = vmatprep.subr.bf16.mxu0 0
    %1661 = vmatpush1.bf16.msra.mxu0 0
    %1662 = vmatprep.subr.bf16.mxu0 0
    %1663 = vmatpush1.bf16.msra.mxu0 0
    %1664 = vmatprep.mubr.bf16.mxu0 0
    %1665 = vmatmul.mubr.bf16.gmra.mrb[0].mxu0 %v1501
    %v1666 = vpop.f32.mrb[0].mxu0
    %v1667 = vadd.f32 %v1407, %v1666
    %v1668 = vpop.f32.mrb[0].mxu0
    %v1669 = vadd.f32 %v1411, %v1668
    %v1670 = vpop.f32.mrb[0].mxu0
    %v1671 = vadd.f32 %v1407, %v1670
    %v1672 = vpop.f32.mrb[0].mxu0
    %v1673 = vadd.f32 %v1411, %v1672
    %1674 = vdwg.mxu0
    %v1675 = vmax.f32 %v1538, 0.0
    %v1676 = vmax.f32 %v1540, 0.0
    %v1677 = vmax.f32 %v1581, 0.0
    %v1678 = vmax.f32 %v1583, 0.0
    %v1679 = vmax.f32 %v1624, 0.0
    %v1680 = vmax.f32 %v1626, 0.0
    %v1681 = vmax.f32 %v1667, 0.0
    %v1682 = vmax.f32 %v1669, 0.0
    %v1683 = vmax.f32 %v1542, 0.0
    %v1684 = vmax.f32 %v1544, 0.0
    %v1685 = vmax.f32 %v1585, 0.0
    %v1686 = vmax.f32 %v1587, 0.0
    %v1687 = vmax.f32 %v1628, 0.0
    %v1688 = vmax.f32 %v1630, 0.0
    %v1689 = vmax.f32 %v1671, 0.0
    %v1690 = vmax.f32 %v1673, 0.0
    %v1691 = vpack.c.bf16 %v1683, %v1675
    %v1692 = vpack.c.bf16 %v1684, %v1676
    %v1693 = vpack.c.bf16 %v1685, %v1677
    %v1694 = vpack.c.bf16 %v1686, %v1678
    %v1695 = vpack.c.bf16 %v1687, %v1679
    %v1696 = vpack.c.bf16 %v1688, %v1680
    %v1697 = vpack.c.bf16 %v1689, %v1681
    %v1698 = vpack.c.bf16 %v1690, %v1682
    %v1699 = vld [vmem:[%s12] sm:$0xf]
    %v1700 = vld [vmem:[%s12 + $0x4] sm:$0xf]
    %v1701 = vld [vmem:[%s12 + $0x8] sm:$0xf]
    %v1702 = vld [vmem:[%s12 + $0xc] sm:$0xf]
    %v1703 = vld [vmem:[%s12 + $0x10] sm:$0xf]
    %v1704 = vld [vmem:[%s12 + $0x14] sm:$0xf]
    %v1705 = vld [vmem:[%s12 + $0x18] sm:$0xf]
    %v1706 = vld [vmem:[%s12 + $0x1c] sm:$0xf]
    %v1707 = vld [vmem:[%s12 + $0x20] sm:$0xf]
    %v1708 = vld [vmem:[%s12 + $0x24] sm:$0xf]
    %v1709 = vld [vmem:[%s12 + $0x28] sm:$0xf]
    %v1710 = vld [vmem:[%s12 + $0x2c] sm:$0xf]
    %v1711 = vld [vmem:[%s12 + $0x30] sm:$0xf]
    %v1712 = vld [vmem:[%s12 + $0x34] sm:$0xf]
    %v1713 = vld [vmem:[%s12 + $0x38] sm:$0xf]
    %v1714 = vld [vmem:[%s12 + $0x3c] sm:$0xf]
    %v1715 = vld [vmem:[%s12 + $0x40] sm:$0xf]
    %v1716 = vld [vmem:[%s12 + $0x44] sm:$0xf]
    %v1717 = vld [vmem:[%s12 + $0x48] sm:$0xf]
    %v1718 = vld [vmem:[%s12 + $0x4c] sm:$0xf]
    %v1719 = vld [vmem:[%s12 + $0x50] sm:$0xf]
    %v1720 = vld [vmem:[%s12 + $0x54] sm:$0xf]
    %v1721 = vld [vmem:[%s12 + $0x58] sm:$0xf]
    %v1722 = vld [vmem:[%s12 + $0x5c] sm:$0xf]
    %v1723 = vld [vmem:[%s12 + $0x60] sm:$0xf]
    %v1724 = vld [vmem:[%s12 + $0x64] sm:$0xf]
    %v1725 = vld [vmem:[%s12 + $0x68] sm:$0xf]
    %v1726 = vld [vmem:[%s12 + $0x6c] sm:$0xf]
    %v1727 = vld [vmem:[%s12 + $0x70] sm:$0xf]
    %v1728 = vld [vmem:[%s12 + $0x74] sm:$0xf]
    %v1729 = vld [vmem:[%s12 + $0x78] sm:$0xf]
    %v1730 = vld [vmem:[%s12 + $0x7c] sm:$0xf]
    %v1731 = vld [vmem:[%s12 + $0x80] sm:$0xf]
    %v1732 = vld [vmem:[%s12 + $0x84] sm:$0xf]
    %v1733 = vld [vmem:[%s12 + $0x88] sm:$0xf]
    %v1734 = vld [vmem:[%s12 + $0x8c] sm:$0xf]
    %v1735 = vld [vmem:[%s12 + $0x90] sm:$0xf]
    %v1736 = vld [vmem:[%s12 + $0x94] sm:$0xf]
    %v1737 = vld [vmem:[%s12 + $0x98] sm:$0xf]
    %v1738 = vld [vmem:[%s12 + $0x9c] sm:$0xf]
    %v1739 = vld [vmem:[%s12 + $0xa0] sm:$0xf]
    %v1740 = vld [vmem:[%s12 + $0xa4] sm:$0xf]
    %v1741 = vld [vmem:[%s12 + $0xa8] sm:$0xf]
    %v1742 = vld [vmem:[%s12 + $0xac] sm:$0xf]
    %v1743 = vld [vmem:[%s12 + $0xb0] sm:$0xf]
    %v1744 = vld [vmem:[%s12 + $0xb4] sm:$0xf]
    %v1745 = vld [vmem:[%s12 + $0xb8] sm:$0xf]
    %v1746 = vld [vmem:[%s12 + $0xbc] sm:$0xf]
    %v1747 = vld [vmem:[%s12 + $0xc0] sm:$0xf]
    %v1748 = vld [vmem:[%s12 + $0xc4] sm:$0xf]
    %v1749 = vld [vmem:[%s12 + $0xc8] sm:$0xf]
    %v1750 = vld [vmem:[%s12 + $0xcc] sm:$0xf]
    %v1751 = vld [vmem:[%s12 + $0xd0] sm:$0xf]
    %v1752 = vld [vmem:[%s12 + $0xd4] sm:$0xf]
    %v1753 = vld [vmem:[%s12 + $0xd8] sm:$0xf]
    %v1754 = vld [vmem:[%s12 + $0xdc] sm:$0xf]
    %v1755 = vld [vmem:[%s12 + $0xe0] sm:$0xf]
    %v1756 = vld [vmem:[%s12 + $0xe4] sm:$0xf]
    %v1757 = vld [vmem:[%s12 + $0xe8] sm:$0xf]
    %v1758 = vld [vmem:[%s12 + $0xec] sm:$0xf]
    %v1759 = vld [vmem:[%s12 + $0xf0] sm:$0xf]
    %v1760 = vld [vmem:[%s12 + $0xf4] sm:$0xf]
    %v1761 = vld [vmem:[%s12 + $0xf8] sm:$0xf]
    %v1762 = vld [vmem:[%s12 + $0xfc] sm:$0xf]
    %v1763 = vld [vmem:[%s12 + $0x100] sm:$0xf]
    %v1764 = vld [vmem:[%s12 + $0x104] sm:$0xf]
    %v1765 = vld [vmem:[%s12 + $0x108] sm:$0xf]
    %v1766 = vld [vmem:[%s12 + $0x10c] sm:$0xf]
    %v1767 = vld [vmem:[%s12 + $0x110] sm:$0xf]
    %v1768 = vld [vmem:[%s12 + $0x114] sm:$0xf]
    %v1769 = vld [vmem:[%s12 + $0x118] sm:$0xf]
    %v1770 = vld [vmem:[%s12 + $0x11c] sm:$0xf]
    %v1771 = vld [vmem:[%s12 + $0x120] sm:$0xf]
    %v1772 = vld [vmem:[%s12 + $0x124] sm:$0xf]
    %v1773 = vld [vmem:[%s12 + $0x128] sm:$0xf]
    %v1774 = vld [vmem:[%s12 + $0x12c] sm:$0xf]
    %v1775 = vld [vmem:[%s12 + $0x130] sm:$0xf]
    %v1776 = vld [vmem:[%s12 + $0x134] sm:$0xf]
    %v1777 = vld [vmem:[%s12 + $0x138] sm:$0xf]
    %v1778 = vld [vmem:[%s12 + $0x13c] sm:$0xf]
    %v1779 = vld [vmem:[%s12 + $0x140] sm:$0xf]
    %v1780 = vld [vmem:[%s12 + $0x144] sm:$0xf]
    %v1781 = vld [vmem:[%s12 + $0x148] sm:$0xf]
    %v1782 = vld [vmem:[%s12 + $0x14c] sm:$0xf]
    %v1783 = vld [vmem:[%s12 + $0x150] sm:$0xf]
    %v1784 = vld [vmem:[%s12 + $0x154] sm:$0xf]
    %v1785 = vld [vmem:[%s12 + $0x158] sm:$0xf]
    %v1786 = vld [vmem:[%s12 + $0x15c] sm:$0xf]
    %v1787 = vld [vmem:[%s12 + $0x160] sm:$0xf]
    %v1788 = vld [vmem:[%s12 + $0x164] sm:$0xf]
    %v1789 = vld [vmem:[%s12 + $0x168] sm:$0xf]
    %v1790 = vld [vmem:[%s12 + $0x16c] sm:$0xf]
    %v1791 = vld [vmem:[%s12 + $0x170] sm:$0xf]
    %v1792 = vld [vmem:[%s12 + $0x174] sm:$0xf]
    %v1793 = vld [vmem:[%s12 + $0x178] sm:$0xf]
    %v1794 = vld [vmem:[%s12 + $0x17c] sm:$0xf]
    %v1795 = vld [vmem:[%s12 + $0x180] sm:$0xf]
    %v1796 = vld [vmem:[%s12 + $0x184] sm:$0xf]
    %v1797 = vld [vmem:[%s12 + $0x188] sm:$0xf]
    %v1798 = vld [vmem:[%s12 + $0x18c] sm:$0xf]
    %v1799 = vld [vmem:[%s12 + $0x190] sm:$0xf]
    %v1800 = vld [vmem:[%s12 + $0x194] sm:$0xf]
    %v1801 = vld [vmem:[%s12 + $0x198] sm:$0xf]
    %v1802 = vld [vmem:[%s12 + $0x19c] sm:$0xf]
    %v1803 = vld [vmem:[%s12 + $0x1a0] sm:$0xf]
    %v1804 = vld [vmem:[%s12 + $0x1a4] sm:$0xf]
    %v1805 = vld [vmem:[%s12 + $0x1a8] sm:$0xf]
    %v1806 = vld [vmem:[%s12 + $0x1ac] sm:$0xf]
    %v1807 = vld [vmem:[%s12 + $0x1b0] sm:$0xf]
    %v1808 = vld [vmem:[%s12 + $0x1b4] sm:$0xf]
    %v1809 = vld [vmem:[%s12 + $0x1b8] sm:$0xf]
    %v1810 = vld [vmem:[%s12 + $0x1bc] sm:$0xf]
    %v1811 = vld [vmem:[%s12 + $0x1c0] sm:$0xf]
    %v1812 = vld [vmem:[%s12 + $0x1c4] sm:$0xf]
    %v1813 = vld [vmem:[%s12 + $0x1c8] sm:$0xf]
    %v1814 = vld [vmem:[%s12 + $0x1cc] sm:$0xf]
    %v1815 = vld [vmem:[%s12 + $0x1d0] sm:$0xf]
    %v1816 = vld [vmem:[%s12 + $0x1d4] sm:$0xf]
    %v1817 = vld [vmem:[%s12 + $0x1d8] sm:$0xf]
    %v1818 = vld [vmem:[%s12 + $0x1dc] sm:$0xf]
    %v1819 = vld [vmem:[%s12 + $0x1e0] sm:$0xf]
    %v1820 = vld [vmem:[%s12 + $0x1e4] sm:$0xf]
    %v1821 = vld [vmem:[%s12 + $0x1e8] sm:$0xf]
    %v1822 = vld [vmem:[%s12 + $0x1ec] sm:$0xf]
    %v1823 = vld [vmem:[%s12 + $0x1f0] sm:$0xf]
    %v1824 = vld [vmem:[%s12 + $0x1f4] sm:$0xf]
    %v1825 = vld [vmem:[%s12 + $0x1f8] sm:$0xf]
    %v1826 = vld [vmem:[%s12 + $0x1fc] sm:$0xf]
    %v1827 = vld [vmem:[%s13] sm:$0x1]
    %v1829 = vlaneseq
    %v1830 = vshrl.u32 %v1829, 7
    %v1831 = vsub.s32 0, %v1830
    %v1832 = vrot.slane %v1827, %v1831
    %v1962 = vunpack.c.l.b16 %v1699
    %v1963 = vunpack.c.l.b16 %v1700
    %v1964 = vunpack.c.l.b16 %v1701
    %v1965 = vunpack.c.l.b16 %v1702
    %v1966 = vunpack.c.l.b16 %v1703
    %v1967 = vunpack.c.l.b16 %v1704
    %v1968 = vunpack.c.l.b16 %v1705
    %v1969 = vunpack.c.l.b16 %v1706
    %v1970 = vunpack.c.l.b16 %v1707
    %v1971 = vunpack.c.l.b16 %v1708
    %v1972 = vunpack.c.l.b16 %v1709
    %v1973 = vunpack.c.l.b16 %v1710
    %v1974 = vunpack.c.l.b16 %v1711
    %v1975 = vunpack.c.l.b16 %v1712
    %v1976 = vunpack.c.l.b16 %v1713
    %v1977 = vunpack.c.l.b16 %v1714
    %v1978 = vunpack.c.l.b16 %v1715
    %v1979 = vunpack.c.l.b16 %v1716
    %v1980 = vunpack.c.l.b16 %v1717
    %v1981 = vunpack.c.l.b16 %v1718
    %v1982 = vunpack.c.l.b16 %v1719
    %v1983 = vunpack.c.l.b16 %v1720
    %v1984 = vunpack.c.l.b16 %v1721
    %v1985 = vunpack.c.l.b16 %v1722
    %v1986 = vunpack.c.l.b16 %v1723
    %v1987 = vunpack.c.l.b16 %v1724
    %v1988 = vunpack.c.l.b16 %v1725
    %v1989 = vunpack.c.l.b16 %v1726
    %v1990 = vunpack.c.l.b16 %v1727
    %v1991 = vunpack.c.l.b16 %v1728
    %v1992 = vunpack.c.l.b16 %v1729
    %v1993 = vunpack.c.l.b16 %v1730
    %v1994 = vunpack.c.l.b16 %v1731
    %v1995 = vunpack.c.l.b16 %v1732
    %v1996 = vunpack.c.l.b16 %v1733
    %v1997 = vunpack.c.l.b16 %v1734
    %v1998 = vunpack.c.l.b16 %v1735
    %v1999 = vunpack.c.l.b16 %v1736
    %v2000 = vunpack.c.l.b16 %v1737
    %v2001 = vunpack.c.l.b16 %v1738
    %v2002 = vunpack.c.l.b16 %v1739
    %v2003 = vunpack.c.l.b16 %v1740
    %v2004 = vunpack.c.l.b16 %v1741
    %v2005 = vunpack.c.l.b16 %v1742
    %v2006 = vunpack.c.l.b16 %v1743
    %v2007 = vunpack.c.l.b16 %v1744
    %v2008 = vunpack.c.l.b16 %v1745
    %v2009 = vunpack.c.l.b16 %v1746
    %v2010 = vunpack.c.l.b16 %v1747
    %v2011 = vunpack.c.l.b16 %v1748
    %v2012 = vunpack.c.l.b16 %v1749
    %v2013 = vunpack.c.l.b16 %v1750
    %v2014 = vunpack.c.l.b16 %v1751
    %v2015 = vunpack.c.l.b16 %v1752
    %v2016 = vunpack.c.l.b16 %v1753
    %v2017 = vunpack.c.l.b16 %v1754
    %v2018 = vunpack.c.l.b16 %v1755
    %v2019 = vunpack.c.l.b16 %v1756
    %v2020 = vunpack.c.l.b16 %v1757
    %v2021 = vunpack.c.l.b16 %v1758
    %v2022 = vunpack.c.l.b16 %v1759
    %v2023 = vunpack.c.l.b16 %v1760
    %v2024 = vunpack.c.l.b16 %v1761
    %v2025 = vunpack.c.l.b16 %v1762
    %v2026 = vunpack.c.l.b16 %v1763
    %v2027 = vunpack.c.l.b16 %v1764
    %v2028 = vunpack.c.l.b16 %v1765
    %v2029 = vunpack.c.l.b16 %v1766
    %v2030 = vunpack.c.l.b16 %v1767
    %v2031 = vunpack.c.l.b16 %v1768
    %v2032 = vunpack.c.l.b16 %v1769
    %v2033 = vunpack.c.l.b16 %v1770
    %v2034 = vunpack.c.l.b16 %v1771
    %v2035 = vunpack.c.l.b16 %v1772
    %v2036 = vunpack.c.l.b16 %v1773
    %v2037 = vunpack.c.l.b16 %v1774
    %v2038 = vunpack.c.l.b16 %v1775
    %v2039 = vunpack.c.l.b16 %v1776
    %v2040 = vunpack.c.l.b16 %v1777
    %v2041 = vunpack.c.l.b16 %v1778
    %v2042 = vunpack.c.l.b16 %v1779
    %v2043 = vunpack.c.l.b16 %v1780
    %v2044 = vunpack.c.l.b16 %v1781
    %v2045 = vunpack.c.l.b16 %v1782
    %v2046 = vunpack.c.l.b16 %v1783
    %v2047 = vunpack.c.l.b16 %v1784
    %v2048 = vunpack.c.l.b16 %v1785
    %v2049 = vunpack.c.l.b16 %v1786
    %v2050 = vunpack.c.l.b16 %v1787
    %v2051 = vunpack.c.l.b16 %v1788
    %v2052 = vunpack.c.l.b16 %v1789
    %v2053 = vunpack.c.l.b16 %v1790
    %v2054 = vunpack.c.l.b16 %v1791
    %v2055 = vunpack.c.l.b16 %v1792
    %v2056 = vunpack.c.l.b16 %v1793
    %v2057 = vunpack.c.l.b16 %v1794
    %v2058 = vunpack.c.l.b16 %v1795
    %v2059 = vunpack.c.l.b16 %v1796
    %v2060 = vunpack.c.l.b16 %v1797
    %v2061 = vunpack.c.l.b16 %v1798
    %v2062 = vunpack.c.l.b16 %v1799
    %v2063 = vunpack.c.l.b16 %v1800
    %v2064 = vunpack.c.l.b16 %v1801
    %v2065 = vunpack.c.l.b16 %v1802
    %v2066 = vunpack.c.l.b16 %v1803
    %v2067 = vunpack.c.l.b16 %v1804
    %v2068 = vunpack.c.l.b16 %v1805
    %v2069 = vunpack.c.l.b16 %v1806
    %v2070 = vunpack.c.l.b16 %v1807
    %v2071 = vunpack.c.l.b16 %v1808
    %v2072 = vunpack.c.l.b16 %v1809
    %v2073 = vunpack.c.l.b16 %v1810
    %v2074 = vunpack.c.l.b16 %v1811
    %v2075 = vunpack.c.l.b16 %v1812
    %v2076 = vunpack.c.l.b16 %v1813
    %v2077 = vunpack.c.l.b16 %v1814
    %v2078 = vunpack.c.l.b16 %v1815
    %v2079 = vunpack.c.l.b16 %v1816
    %v2080 = vunpack.c.l.b16 %v1817
    %v2081 = vunpack.c.l.b16 %v1818
    %v2082 = vunpack.c.l.b16 %v1819
    %v2083 = vunpack.c.l.b16 %v1820
    %v2084 = vunpack.c.l.b16 %v1821
    %v2085 = vunpack.c.l.b16 %v1822
    %v2086 = vunpack.c.l.b16 %v1823
    %v2087 = vunpack.c.l.b16 %v1824
    %v2088 = vunpack.c.l.b16 %v1825
    %v2089 = vunpack.c.l.b16 %v1826
    %v2090 = vpack.c.b16 %v1963, %v1962
    %v2091 = vpack.c.b16 %v1965, %v1964
    %v2092 = vpack.c.b16 %v1967, %v1966
    %v2093 = vpack.c.b16 %v1969, %v1968
    %v2094 = vpack.c.b16 %v1971, %v1970
    %v2095 = vpack.c.b16 %v1973, %v1972
    %v2096 = vpack.c.b16 %v1975, %v1974
    %v2097 = vpack.c.b16 %v1977, %v1976
    %v2098 = vpack.c.b16 %v1979, %v1978
    %v2099 = vpack.c.b16 %v1981, %v1980
    %v2100 = vpack.c.b16 %v1983, %v1982
    %v2101 = vpack.c.b16 %v1985, %v1984
    %v2102 = vpack.c.b16 %v1987, %v1986
    %v2103 = vpack.c.b16 %v1989, %v1988
    %v2104 = vpack.c.b16 %v1991, %v1990
    %v2105 = vpack.c.b16 %v1993, %v1992
    %v2106 = vpack.c.b16 %v1995, %v1994
    %v2107 = vpack.c.b16 %v1997, %v1996
    %v2108 = vpack.c.b16 %v1999, %v1998
    %v2109 = vpack.c.b16 %v2001, %v2000
    %v2110 = vpack.c.b16 %v2003, %v2002
    %v2111 = vpack.c.b16 %v2005, %v2004
    %v2112 = vpack.c.b16 %v2007, %v2006
    %v2113 = vpack.c.b16 %v2009, %v2008
    %v2114 = vpack.c.b16 %v2011, %v2010
    %v2115 = vpack.c.b16 %v2013, %v2012
    %v2116 = vpack.c.b16 %v2015, %v2014
    %v2117 = vpack.c.b16 %v2017, %v2016
    %v2118 = vpack.c.b16 %v2019, %v2018
    %v2119 = vpack.c.b16 %v2021, %v2020
    %v2120 = vpack.c.b16 %v2023, %v2022
    %v2121 = vpack.c.b16 %v2025, %v2024
    %v2122 = vpack.c.b16 %v2027, %v2026
    %v2123 = vpack.c.b16 %v2029, %v2028
    %v2124 = vpack.c.b16 %v2031, %v2030
    %v2125 = vpack.c.b16 %v2033, %v2032
    %v2126 = vpack.c.b16 %v2035, %v2034
    %v2127 = vpack.c.b16 %v2037, %v2036
    %v2128 = vpack.c.b16 %v2039, %v2038
    %v2129 = vpack.c.b16 %v2041, %v2040
    %v2130 = vpack.c.b16 %v2043, %v2042
    %v2131 = vpack.c.b16 %v2045, %v2044
    %v2132 = vpack.c.b16 %v2047, %v2046
    %v2133 = vpack.c.b16 %v2049, %v2048
    %v2134 = vpack.c.b16 %v2051, %v2050
    %v2135 = vpack.c.b16 %v2053, %v2052
    %v2136 = vpack.c.b16 %v2055, %v2054
    %v2137 = vpack.c.b16 %v2057, %v2056
    %v2138 = vpack.c.b16 %v2059, %v2058
    %v2139 = vpack.c.b16 %v2061, %v2060
    %v2140 = vpack.c.b16 %v2063, %v2062
    %v2141 = vpack.c.b16 %v2065, %v2064
    %v2142 = vpack.c.b16 %v2067, %v2066
    %v2143 = vpack.c.b16 %v2069, %v2068
    %v2144 = vpack.c.b16 %v2071, %v2070
    %v2145 = vpack.c.b16 %v2073, %v2072
    %v2146 = vpack.c.b16 %v2075, %v2074
    %v2147 = vpack.c.b16 %v2077, %v2076
    %v2148 = vpack.c.b16 %v2079, %v2078
    %v2149 = vpack.c.b16 %v2081, %v2080
    %v2150 = vpack.c.b16 %v2083, %v2082
    %v2151 = vpack.c.b16 %v2085, %v2084
    %v2152 = vpack.c.b16 %v2087, %v2086
    %v2153 = vpack.c.b16 %v2089, %v2088
    %2218 = vmatprep.subr.bf16.mxu0 0
    %2219 = vmatpush1.bf16.msra.mxu0 %v2090
    %2220 = vmatprep.subr.bf16.mxu0 0
    %2221 = vmatpush1.bf16.msra.mxu0 %v2091
    %2222 = vmatprep.subr.bf16.mxu0 0
    %2223 = vmatpush1.bf16.msra.mxu0 %v2092
    %2224 = vmatprep.subr.bf16.mxu0 0
    %2225 = vmatpush1.bf16.msra.mxu0 %v2093
    %2226 = vmatprep.subr.bf16.mxu0 0
    %2227 = vmatpush1.bf16.msra.mxu0 %v2094
    %2228 = vmatprep.subr.bf16.mxu0 0
    %2229 = vmatpush1.bf16.msra.mxu0 %v2095
    %2230 = vmatprep.subr.bf16.mxu0 0
    %2231 = vmatpush1.bf16.msra.mxu0 %v2096
    %2232 = vmatprep.subr.bf16.mxu0 0
    %2233 = vmatpush1.bf16.msra.mxu0 %v2097
    %2234 = vmatprep.subr.bf16.mxu0 0
    %2235 = vmatpush1.bf16.msra.mxu0 %v2098
    %2236 = vmatprep.subr.bf16.mxu0 0
    %2237 = vmatpush1.bf16.msra.mxu0 %v2099
    %2238 = vmatprep.subr.bf16.mxu0 0
    %2239 = vmatpush1.bf16.msra.mxu0 %v2100
    %2240 = vmatprep.subr.bf16.mxu0 0
    %2241 = vmatpush1.bf16.msra.mxu0 %v2101
    %2242 = vmatprep.subr.bf16.mxu0 0
    %2243 = vmatpush1.bf16.msra.mxu0 %v2102
    %2244 = vmatprep.subr.bf16.mxu0 0
    %2245 = vmatpush1.bf16.msra.mxu0 %v2103
    %2246 = vmatprep.subr.bf16.mxu0 0
    %2247 = vmatpush1.bf16.msra.mxu0 %v2104
    %2248 = vmatprep.subr.bf16.mxu0 0
    %2249 = vmatpush1.bf16.msra.mxu0 %v2105
    %2250 = vmatprep.mubr.bf16.mxu0 %v1692
    %2251 = vmatmul.mubr.bf16.gmra.mrb[0].mxu0 %v1691
    %v2252 = vpop.f32.mrb[0].mxu0
    %v2253 = vadd.f32 %v1832, %v2252
    %v2254 = vpop.f32.mrb[0].mxu0
    %v2255 = vpop.f32.mrb[0].mxu0
    %v2256 = vadd.f32 %v1832, %v2255
    %v2257 = vpop.f32.mrb[0].mxu0
    %2258 = vdwg.mxu0
    %2259 = vmatprep.subr.bf16.mxu0 0
    %2260 = vmatpush1.bf16.msra.mxu0 %v2106
    %2261 = vmatprep.subr.bf16.mxu0 0
    %2262 = vmatpush1.bf16.msra.mxu0 %v2107
    %2263 = vmatprep.subr.bf16.mxu0 0
    %2264 = vmatpush1.bf16.msra.mxu0 %v2108
    %2265 = vmatprep.subr.bf16.mxu0 0
    %2266 = vmatpush1.bf16.msra.mxu0 %v2109
    %2267 = vmatprep.subr.bf16.mxu0 0
    %2268 = vmatpush1.bf16.msra.mxu0 %v2110
    %2269 = vmatprep.subr.bf16.mxu0 0
    %2270 = vmatpush1.bf16.msra.mxu0 %v2111
    %2271 = vmatprep.subr.bf16.mxu0 0
    %2272 = vmatpush1.bf16.msra.mxu0 %v2112
    %2273 = vmatprep.subr.bf16.mxu0 0
    %2274 = vmatpush1.bf16.msra.mxu0 %v2113
    %2275 = vmatprep.subr.bf16.mxu0 0
    %2276 = vmatpush1.bf16.msra.mxu0 %v2114
    %2277 = vmatprep.subr.bf16.mxu0 0
    %2278 = vmatpush1.bf16.msra.mxu0 %v2115
    %2279 = vmatprep.subr.bf16.mxu0 0
    %2280 = vmatpush1.bf16.msra.mxu0 %v2116
    %2281 = vmatprep.subr.bf16.mxu0 0
    %2282 = vmatpush1.bf16.msra.mxu0 %v2117
    %2283 = vmatprep.subr.bf16.mxu0 0
    %2284 = vmatpush1.bf16.msra.mxu0 %v2118
    %2285 = vmatprep.subr.bf16.mxu0 0
    %2286 = vmatpush1.bf16.msra.mxu0 %v2119
    %2287 = vmatprep.subr.bf16.mxu0 0
    %2288 = vmatpush1.bf16.msra.mxu0 %v2120
    %2289 = vmatprep.subr.bf16.mxu0 0
    %2290 = vmatpush1.bf16.msra.mxu0 %v2121
    %2291 = vmatprep.mubr.bf16.mxu0 %v1694
    %2292 = vmatmul.mubr.bf16.gmra.mrb[0].mxu0 %v1693
    %v2293 = vpop.f32.mrb[0].mxu0
    %v2294 = vadd.f32 %v2253, %v2293
    %v2295 = vpop.f32.mrb[0].mxu0
    %v2296 = vpop.f32.mrb[0].mxu0
    %v2297 = vadd.f32 %v2256, %v2296
    %v2298 = vpop.f32.mrb[0].mxu0
    %2299 = vdwg.mxu0
    %2300 = vmatprep.subr.bf16.mxu0 0
    %2301 = vmatpush1.bf16.msra.mxu0 %v2122
    %2302 = vmatprep.subr.bf16.mxu0 0
    %2303 = vmatpush1.bf16.msra.mxu0 %v2123
    %2304 = vmatprep.subr.bf16.mxu0 0
    %2305 = vmatpush1.bf16.msra.mxu0 %v2124
    %2306 = vmatprep.subr.bf16.mxu0 0
    %2307 = vmatpush1.bf16.msra.mxu0 %v2125
    %2308 = vmatprep.subr.bf16.mxu0 0
    %2309 = vmatpush1.bf16.msra.mxu0 %v2126
    %2310 = vmatprep.subr.bf16.mxu0 0
    %2311 = vmatpush1.bf16.msra.mxu0 %v2127
    %2312 = vmatprep.subr.bf16.mxu0 0
    %2313 = vmatpush1.bf16.msra.mxu0 %v2128
    %2314 = vmatprep.subr.bf16.mxu0 0
    %2315 = vmatpush1.bf16.msra.mxu0 %v2129
    %2316 = vmatprep.subr.bf16.mxu0 0
    %2317 = vmatpush1.bf16.msra.mxu0 %v2130
    %2318 = vmatprep.subr.bf16.mxu0 0
    %2319 = vmatpush1.bf16.msra.mxu0 %v2131
    %2320 = vmatprep.subr.bf16.mxu0 0
    %2321 = vmatpush1.bf16.msra.mxu0 %v2132
    %2322 = vmatprep.subr.bf16.mxu0 0
    %2323 = vmatpush1.bf16.msra.mxu0 %v2133
    %2324 = vmatprep.subr.bf16.mxu0 0
    %2325 = vmatpush1.bf16.msra.mxu0 %v2134
    %2326 = vmatprep.subr.bf16.mxu0 0
    %2327 = vmatpush1.bf16.msra.mxu0 %v2135
    %2328 = vmatprep.subr.bf16.mxu0 0
    %2329 = vmatpush1.bf16.msra.mxu0 %v2136
    %2330 = vmatprep.subr.bf16.mxu0 0
    %2331 = vmatpush1.bf16.msra.mxu0 %v2137
    %2332 = vmatprep.mubr.bf16.mxu0 %v1696
    %2333 = vmatmul.mubr.bf16.gmra.mrb[0].mxu0 %v1695
    %v2334 = vpop.f32.mrb[0].mxu0
    %v2335 = vadd.f32 %v2294, %v2334
    %v2336 = vpop.f32.mrb[0].mxu0
    %v2337 = vpop.f32.mrb[0].mxu0
    %v2338 = vadd.f32 %v2297, %v2337
    %v2339 = vpop.f32.mrb[0].mxu0
    %2340 = vdwg.mxu0
    %2341 = vmatprep.subr.bf16.mxu0 0
    %2342 = vmatpush1.bf16.msra.mxu0 %v2138
    %2343 = vmatprep.subr.bf16.mxu0 0
    %2344 = vmatpush1.bf16.msra.mxu0 %v2139
    %2345 = vmatprep.subr.bf16.mxu0 0
    %2346 = vmatpush1.bf16.msra.mxu0 %v2140
    %2347 = vmatprep.subr.bf16.mxu0 0
    %2348 = vmatpush1.bf16.msra.mxu0 %v2141
    %2349 = vmatprep.subr.bf16.mxu0 0
    %2350 = vmatpush1.bf16.msra.mxu0 %v2142
    %2351 = vmatprep.subr.bf16.mxu0 0
    %2352 = vmatpush1.bf16.msra.mxu0 %v2143
    %2353 = vmatprep.subr.bf16.mxu0 0
    %2354 = vmatpush1.bf16.msra.mxu0 %v2144
    %2355 = vmatprep.subr.bf16.mxu0 0
    %2356 = vmatpush1.bf16.msra.mxu0 %v2145
    %2357 = vmatprep.subr.bf16.mxu0 0
    %2358 = vmatpush1.bf16.msra.mxu0 %v2146
    %2359 = vmatprep.subr.bf16.mxu0 0
    %2360 = vmatpush1.bf16.msra.mxu0 %v2147
    %2361 = vmatprep.subr.bf16.mxu0 0
    %2362 = vmatpush1.bf16.msra.mxu0 %v2148
    %2363 = vmatprep.subr.bf16.mxu0 0
    %2364 = vmatpush1.bf16.msra.mxu0 %v2149
    %2365 = vmatprep.subr.bf16.mxu0 0
    %2366 = vmatpush1.bf16.msra.mxu0 %v2150
    %2367 = vmatprep.subr.bf16.mxu0 0
    %2368 = vmatpush1.bf16.msra.mxu0 %v2151
    %2369 = vmatprep.subr.bf16.mxu0 0
    %2370 = vmatpush1.bf16.msra.mxu0 %v2152
    %2371 = vmatprep.subr.bf16.mxu0 0
    %2372 = vmatpush1.bf16.msra.mxu0 %v2153
    %2373 = vmatprep.mubr.bf16.mxu0 %v1698
    %2374 = vmatmul.mubr.bf16.gmra.mrb[0].mxu0 %v1697
    %v2375 = vpop.f32.mrb[0].mxu0
    %v2376 = vadd.f32 %v2335, %v2375
    %v2377 = vpop.f32.mrb[0].mxu0
    %v2378 = vpop.f32.mrb[0].mxu0
    %v2379 = vadd.f32 %v2338, %v2378
    %v2380 = vpop.f32.mrb[0].mxu0
    %2381 = vdwg.mxu0
    %v2382 = vadd.f32 %v1303, %v2376
    %v2383 = vadd.f32 %v1304, %v2379
    %2384 = vst.msk [vmem:[#allocation2] sm:$0xff] %vm61, %v2382
    %2385 = vst.msk [vmem:[#allocation2 + $0x8] sm:$0xff] %vm61, %v2383
    // Predicated region
    $region58: #{tpu_custom_call.1} parent=1 // pred_check
      _
    $region59: #{tpu_custom_call.1} parent=1 // pred_check_branch
      %2387 = sbr.rel (0) target = $region61
    $region60: #{tpu_custom_call.1} parent=1 // pred_region
      %s2389 = ssub.s32 256, 256
      %2390 = vsyncadd [#allocation3], %s2389
      %s2391 = sshll.u32 [#allocation2], 4
      %s2392 = int_to_ptr.vmem [resolvable:$true] %s2391
      %2397 = dma.vmem_to_hbm [thread:$0]  %s2392, 256, %s14, [#allocation3], 128, 128, 8
    $region61: #{tpu_custom_call.1} parent=1 // pred_fallthru
      _
    // Predicated region
    $region62: #{tpu_custom_call.1} parent=1 // pred_check
      _
    $region63: #{tpu_custom_call.1} parent=1 // pred_check_branch
      %2399 = sbr.rel (0) target = $region65
    $region64: #{tpu_custom_call.1} parent=1 // pred_region
      %2400 = dma.done [#allocation3], 256
    $region65: #{tpu_custom_call.1} parent=1 // pred_fallthru
      _
    %2401 = vsyncpa [#allocation3], 1

</llo_original>
